<compile_context>
chip_gen: v5e
topology: v5e:2x2
jax: 0.10.0
libtpu: 0.0.40
codegen_flags: <defaults>
</compile_context>

<pallas_src>
import jax
import jax.numpy as jnp
from jax import lax
from jax.experimental import pallas as pl
from jax.experimental.pallas import tpu as pltpu


# ------------------------------ Pallas kernel -------------------------------

def _encoder_block_kernel(x_ref, w1_ref, b1_ref, w2_ref, b2_ref,
                          out1_ref, out2_ref,
                          xpad_ref, y1pad_ref, patch1_ref, patch2_ref):
    # Per grid step (one batch element):
    #   x_ref:      (1, H, W, Cin)
    #   w1_ref:     (9*Cin, Cmid)    BN1-folded conv1 weights (im2col layout)
    #   b1_ref:     (1, Cmid)        folded conv1 bias + BN1 shift
    #   w2_ref:     (9*Cmid, Cout)   BN2-folded conv2 weights
    #   b2_ref:     (1, Cout)        folded conv2 bias + BN2 shift
    #   out1_ref:   (1, H, W, Cout)
    #   out2_ref:   (1, H//2, W//2, Cout)
    #   xpad_ref:   (H+2, W+2, Cin)  VMEM scratch, zero-padded conv1 input
    #   y1pad_ref:  (H+2, W+2, Cmid) VMEM scratch, zero-padded conv2 input
    #   patch1_ref: (H*W, 9*Cin)     VMEM scratch, conv1 im2col patches
    #   patch2_ref: (H*W, 9*Cmid)    VMEM scratch, conv2 im2col patches
    H, W, Cin = x_ref.shape[1], x_ref.shape[2], x_ref.shape[3]
    Cmid = b1_ref.shape[1]
    Cout = b2_ref.shape[1]
    Ho, Wo = out2_ref.shape[1], out2_ref.shape[2]

    def zero_border(pad_ref, c):
        # Only the 1-pixel halo needs zeroing; the interior is fully
        # overwritten every grid step, so skip the full-buffer zero store.
        pad_ref[0:1, :, :] = jnp.zeros((1, W + 2, c), jnp.float32)
        pad_ref[H + 1:H + 2, :, :] = jnp.zeros((1, W + 2, c), jnp.float32)
        pad_ref[:, 0:1, :] = jnp.zeros((H + 2, 1, c), jnp.float32)
        pad_ref[:, W + 1:W + 2, :] = jnp.zeros((H + 2, 1, c), jnp.float32)

    def conv3x3_bias_relu(pad_ref, patch_ref, c_in, w2d, bias):
        # Build the (H*W, 9*c_in) im2col patch matrix in VMEM, then a single
        # MXU matmul with K = 9*c_in (f32 accumulation), bias, ReLU.
        # All reshapes keep the minor dim (= channels) unchanged.
        for dy in range(3):
            for dx in range(3):
                t = dy * 3 + dx
                patch_ref[:, t * c_in:(t + 1) * c_in] = (
                    pad_ref[dy:dy + H, dx:dx + W, :].reshape(H * W, c_in))
        y = jnp.dot(patch_ref[...], w2d, preferred_element_type=jnp.float32)
        return jnp.maximum(y + bias, 0.0)            # (H*W, c_out), f32

    # ---- conv1 + BN1 + ReLU (zero padding done in VMEM, not in HBM) -------
    zero_border(xpad_ref, Cin)
    xpad_ref[1:H + 1, 1:W + 1, :] = x_ref[0].astype(jnp.float32)
    y1 = conv3x3_bias_relu(xpad_ref, patch1_ref, Cin, w1_ref[...], b1_ref[...])

    # ---- conv2 + BN2 + ReLU (intermediate activation never leaves VMEM) ---
    zero_border(y1pad_ref, Cmid)
    y1pad_ref[1:H + 1, 1:W + 1, :] = y1.reshape(H, W, Cmid)
    y2 = conv3x3_bias_relu(y1pad_ref, patch2_ref, Cmid, w2_ref[...], b2_ref[...])

    # ---- out1 (DoubleConv output) ------------------------------------------
    out1_ref[...] = y2.reshape(1, H, W, Cout).astype(out1_ref.dtype)

    # ---- fused MaxPool2d(2,2), floor semantics for odd H/W ------------------
    y2r = y2.reshape(H, W, Cout)[:Ho * 2, :Wo * 2, :]
    m = jnp.max(y2r.reshape(Ho, 2, Wo * 2, Cout), axis=1)
    p = jnp.max(m.reshape(Ho, Wo, 2, Cout), axis=2)
    out2_ref[...] = p.reshape(1, Ho, Wo, Cout).astype(out2_ref.dtype)


# --------------------------------- Wrapper ----------------------------------

def encoder_block_fused(x_nhwc, params):
    """Fused DoubleConv (eval-mode BN/dropout) + 2x2 max-pool.  NHWC in/out."""
    (w1, b1), (w2, b2) = params
    N, H, W, Cin = x_nhwc.shape
    Cmid = w1.shape[-1]
    Cout = w2.shape[-1]
    Ho, Wo = H // 2, W // 2

    # Advisory cost hint for XLA's scheduler around the custom call.
    flops = 2 * N * H * W * 9 * (Cin * Cmid + Cmid * Cout)
    bytes_accessed = 4 * (x_nhwc.size + N * H * W * Cout + N * Ho * Wo * Cout
                          + w1.size + b1.size + w2.size + b2.size)
    cost = pl.CostEstimate(flops=flops, transcendentals=0,
                           bytes_accessed=bytes_accessed)

    # TODO(synk): at production sizes (e.g. 512x512x64) add a halo'd spatial
    # row-tile grid axis (and optionally bf16 MXU inputs) so blocks fit v7x's
    # 64 MiB VMEM and shard across both v7x TensorCores; at these test sizes a
    # whole image per grid step fits comfortably.
    return pl.pallas_call(
        _encoder_block_kernel,
        out_shape=(
            jax.ShapeDtypeStruct((N, H, W, Cout), x_nhwc.dtype),
            jax.ShapeDtypeStruct((N, Ho, Wo, Cout), x_nhwc.dtype),
        ),
        grid=(N,),
        in_specs=[
            pl.BlockSpec((1, H, W, Cin), lambda n: (n, 0, 0, 0)),
            pl.BlockSpec((9 * Cin, Cmid), lambda n: (0, 0)),
            pl.BlockSpec((1, Cmid), lambda n: (0, 0)),
            pl.BlockSpec((9 * Cmid, Cout), lambda n: (0, 0)),
            pl.BlockSpec((1, Cout), lambda n: (0, 0)),
        ],
        out_specs=(
            pl.BlockSpec((1, H, W, Cout), lambda n: (n, 0, 0, 0)),
            pl.BlockSpec((1, Ho, Wo, Cout), lambda n: (n, 0, 0, 0)),
        ),
        scratch_shapes=[
            pltpu.VMEM((H + 2, W + 2, Cin), jnp.float32),
            pltpu.VMEM((H + 2, W + 2, Cmid), jnp.float32),
            pltpu.VMEM((H * W, 9 * Cin), jnp.float32),
            pltpu.VMEM((H * W, 9 * Cmid), jnp.float32),
        ],
        compiler_params=pltpu.CompilerParams(
            dimension_semantics=("parallel",)),
        cost_estimate=cost,
    )(x_nhwc, w1, b1, w2, b2)


# ------------------------- Parameter initialization -------------------------

def init_encoder_block_params(key, in_channels, out_channels=None, eps=1e-5):
    """Deterministic synthetic params for DoubleConv(in, out, dropout=0.2).

    BatchNorm (eval-mode) is folded into the conv weights/bias:
      scale = gamma / sqrt(var + eps)
      w_folded = w * scale            (per output channel)
      b_folded = (conv_b - mean) * scale + beta
    Weights are stored in im2col layout (9*Cin, Cout) matching the kernel.
    """
    if out_channels is None:
        out_channels = 2 * in_channels
    params = []
    cin = in_channels
    for _ in range(2):
        key, k1, k2, k3, k4, k5, k6 = jax.random.split(key, 7)
        w = 0.1 * jax.random.normal(k1, (3, 3, cin, out_channels), jnp.float32)
        conv_b = 0.1 * jax.random.normal(k2, (out_channels,), jnp.float32)
        gamma = 1.0 + 0.1 * jax.random.normal(k3, (out_channels,), jnp.float32)
        beta = 0.1 * jax.random.normal(k4, (out_channels,), jnp.float32)
        run_mean = 0.1 * jax.random.normal(k5, (out_channels,), jnp.float32)
        run_var = jnp.abs(
            1.0 + 0.1 * jax.random.normal(k6, (out_channels,), jnp.float32))
        scale = gamma / jnp.sqrt(run_var + eps)
        w_folded = (w * scale).reshape(9 * cin, out_channels)
        b_folded = ((conv_b - run_mean) * scale + beta).reshape(1, out_channels)
        params.append((w_folded, b_folded))
        cin = out_channels
    return params


# ------------------------------ Forward pass ---------------------------------

def encoder_block_forward(x_nchw, params):
    """Mirrors EncoderBlock.forward: returns (out1, out2) in NCHW."""
    x = jnp.transpose(x_nchw, (0, 2, 3, 1))           # NCHW -> NHWC
    # TODO(synk): training-mode Dropout(p=0.2) is stochastic; identity (eval
    # mode) is used here, consistent with eval-mode BatchNorm above.
    out1, out2 = encoder_block_fused(x, params)
    return (jnp.transpose(out1, (0, 3, 1, 2)),        # NHWC -> NCHW
            jnp.transpose(out2, (0, 3, 1, 2)))


# -------------------------- Pure-JAX reference -------------------------------

def _reference_forward(x_nchw, params):
    x = jnp.transpose(x_nchw, (0, 2, 3, 1)).astype(jnp.float32)
    for (w2d, b2d) in params:
        cin = w2d.shape[0] // 9
        cout = w2d.shape[1]
        w = w2d.reshape(3, 3, cin, cout)
        y = lax.conv_general_dilated(
            x, w, window_strides=(1, 1), padding=((1, 1), (1, 1)),
            dimension_numbers=("NHWC", "HWIO", "NHWC"))
        x = jnp.maximum(y + b2d.reshape(1, 1, 1, cout), 0.0)
    out1 = x
    N, H, W, C = out1.shape
    out2 = out1[:, :(H // 2) * 2, :(W // 2) * 2, :].reshape(
        N, H // 2, 2, W // 2, 2, C).max(axis=(2, 4))
    return (jnp.transpose(out1, (0, 3, 1, 2)),
            jnp.transpose(out2, (0, 3, 1, 2)))


# ---------------------------------- Main -------------------------------------

if __name__ == "__main__":
    key = jax.random.PRNGKey(0)
    k_x, k_p = jax.random.split(key)

    N, C_in, H, W = 2, 4, 16, 16
    x = jax.random.normal(k_x, (N, C_in, H, W), jnp.float32)

    params = init_encoder_block_params(k_p, C_in)     # out_channels = 2*C_in = 8

    out1, out2 = encoder_block_forward(x, params)
    jax.block_until_ready(out1)
    jax.block_until_ready(out2)

    assert out1.shape == (N, 2 * C_in, H, W), out1.shape
    assert out2.shape == (N, 2 * C_in, H // 2, W // 2), out2.shape

    r1, r2 = _reference_forward(x, params)
    assert jnp.allclose(out1, r1, atol=1e-4, rtol=1e-4), float(
        jnp.max(jnp.abs(out1 - r1)))
    assert jnp.allclose(out2, r2, atol=1e-4, rtol=1e-4), float(
        jnp.max(jnp.abs(out2 - r2)))

    print("KERNEL_OK")
</pallas_src>

<mosaic_0001>
module attributes {stable_mosaic.version = 11 : i64} {
  func.func @_encoder_block_kernel(%arg0: i32, %arg1: memref<1x16x16x4xf32, #tpu.memory_space<vmem>>, %arg2: memref<36x8xf32, #tpu.memory_space<vmem>>, %arg3: memref<1x8xf32, #tpu.memory_space<vmem>>, %arg4: memref<72x8xf32, #tpu.memory_space<vmem>>, %arg5: memref<1x8xf32, #tpu.memory_space<vmem>>, %arg6: memref<1x16x16x8xf32, #tpu.memory_space<vmem>>, %arg7: memref<1x8x8x8xf32, #tpu.memory_space<vmem>>, %arg8: memref<18x18x4xf32, #tpu.memory_space<vmem>>, %arg9: memref<18x18x8xf32, #tpu.memory_space<vmem>>, %arg10: memref<256x36xf32, #tpu.memory_space<vmem>>, %arg11: memref<256x72xf32, #tpu.memory_space<vmem>>) attributes {dimension_semantics = [#tpu.dimension_semantics<parallel>], iteration_bounds = array<i64: 2>, scalar_prefetch = 0 : i64, scratch_operands = 4 : i64, tpu.core_type = #tpu.core_type<tc>, window_params = [{transform_indices = @transform_0, window_bounds = array<i64: 1, 16, 16, 4>}, {pipeline_mode = #tpu.pipeline_mode<synchronous>, transform_indices = @transform_1, window_bounds = array<i64: 36, 8>}, {pipeline_mode = #tpu.pipeline_mode<synchronous>, transform_indices = @transform_2, window_bounds = array<i64: 1, 8>}, {pipeline_mode = #tpu.pipeline_mode<synchronous>, transform_indices = @transform_3, window_bounds = array<i64: 72, 8>}, {pipeline_mode = #tpu.pipeline_mode<synchronous>, transform_indices = @transform_4, window_bounds = array<i64: 1, 8>}, {transform_indices = @transform_5, window_bounds = array<i64: 1, 16, 16, 8>}, {transform_indices = @transform_6, window_bounds = array<i64: 1, 8, 8, 8>}]} {
    %cst = arith.constant 0.000000e+00 : f32
    %0 = vector.broadcast %cst : f32 to vector<1x18x4xf32>
    %c0 = arith.constant 0 : index
    %c0_0 = arith.constant 0 : index
    %c0_1 = arith.constant 0 : index
    %1 = vector.load %arg8[%c0, %c0_0, %c0_1] : memref<18x18x4xf32, #tpu.memory_space<vmem>>, vector<1x18x4xf32>
    tpu.vector_store %arg8[%c0, %c0_0, %c0_1], %0 {strides = array<i32>} : memref<18x18x4xf32, #tpu.memory_space<vmem>>, vector<1x18x4xf32>,
    %cst_2 = arith.constant 0.000000e+00 : f32
    %2 = vector.broadcast %cst_2 : f32 to vector<1x18x4xf32>
    %c17 = arith.constant 17 : index
    %c0_3 = arith.constant 0 : index
    %c0_4 = arith.constant 0 : index
    %3 = vector.load %arg8[%c17, %c0_3, %c0_4] : memref<18x18x4xf32, #tpu.memory_space<vmem>>, vector<1x18x4xf32>
    tpu.vector_store %arg8[%c17, %c0_3, %c0_4], %2 {strides = array<i32>} : memref<18x18x4xf32, #tpu.memory_space<vmem>>, vector<1x18x4xf32>,
    %cst_5 = arith.constant 0.000000e+00 : f32
    %4 = vector.broadcast %cst_5 : f32 to vector<18x1x4xf32>
    %c0_6 = arith.constant 0 : index
    %c0_7 = arith.constant 0 : index
    %c0_8 = arith.constant 0 : index
    %5 = vector.load %arg8[%c0_6, %c0_7, %c0_8] : memref<18x18x4xf32, #tpu.memory_space<vmem>>, vector<18x1x4xf32>
    tpu.vector_store %arg8[%c0_6, %c0_7, %c0_8], %4 {strides = array<i32>} : memref<18x18x4xf32, #tpu.memory_space<vmem>>, vector<18x1x4xf32>,
    %cst_9 = arith.constant 0.000000e+00 : f32
    %6 = vector.broadcast %cst_9 : f32 to vector<18x1x4xf32>
    %c0_10 = arith.constant 0 : index
    %c17_11 = arith.constant 17 : index
    %c0_12 = arith.constant 0 : index
    %7 = vector.load %arg8[%c0_10, %c17_11, %c0_12] : memref<18x18x4xf32, #tpu.memory_space<vmem>>, vector<18x1x4xf32>
    tpu.vector_store %arg8[%c0_10, %c17_11, %c0_12], %6 {strides = array<i32>} : memref<18x18x4xf32, #tpu.memory_space<vmem>>, vector<18x1x4xf32>,
    %c0_13 = arith.constant 0 : index
    %c0_14 = arith.constant 0 : index
    %c0_15 = arith.constant 0 : index
    %c0_16 = arith.constant 0 : index
    %8 = vector.load %arg1[%c0_13, %c0_14, %c0_15, %c0_16] : memref<1x16x16x4xf32, #tpu.memory_space<vmem>>, vector<1x16x16x4xf32>
    %9 = vector.shape_cast %8 : vector<1x16x16x4xf32> to vector<16x16x4xf32>
    %c1 = arith.constant 1 : index
    %c1_17 = arith.constant 1 : index
    %c0_18 = arith.constant 0 : index
    %10 = vector.load %arg8[%c1, %c1_17, %c0_18] : memref<18x18x4xf32, #tpu.memory_space<vmem>>, vector<16x16x4xf32>
    tpu.vector_store %arg8[%c1, %c1_17, %c0_18], %9 {strides = array<i32>} : memref<18x18x4xf32, #tpu.memory_space<vmem>>, vector<16x16x4xf32>,
    %c0_19 = arith.constant 0 : index
    %c0_20 = arith.constant 0 : index
    %11 = vector.load %arg2[%c0_19, %c0_20] : memref<36x8xf32, #tpu.memory_space<vmem>>, vector<36x8xf32>
    %c0_21 = arith.constant 0 : index
    %c0_22 = arith.constant 0 : index
    %12 = vector.load %arg3[%c0_21, %c0_22] : memref<1x8xf32, #tpu.memory_space<vmem>>, vector<1x8xf32>
    %c0_23 = arith.constant 0 : index
    %c0_24 = arith.constant 0 : index
    %c0_25 = arith.constant 0 : index
    %13 = vector.load %arg8[%c0_23, %c0_24, %c0_25] : memref<18x18x4xf32, #tpu.memory_space<vmem>>, vector<16x16x4xf32>
    %14 = vector.shape_cast %13 : vector<16x16x4xf32> to vector<256x4xf32>
    %c0_26 = arith.constant 0 : index
    %c0_27 = arith.constant 0 : index
    %15 = vector.load %arg10[%c0_26, %c0_27] : memref<256x36xf32, #tpu.memory_space<vmem>>, vector<256x4xf32>
    tpu.vector_store %arg10[%c0_26, %c0_27], %14 {strides = array<i32>} : memref<256x36xf32, #tpu.memory_space<vmem>>, vector<256x4xf32>,
    %c0_28 = arith.constant 0 : index
    %c1_29 = arith.constant 1 : index
    %c0_30 = arith.constant 0 : index
    %16 = vector.load %arg8[%c0_28, %c1_29, %c0_30] : memref<18x18x4xf32, #tpu.memory_space<vmem>>, vector<16x16x4xf32>
    %17 = vector.shape_cast %16 : vector<16x16x4xf32> to vector<256x4xf32>
    %c0_31 = arith.constant 0 : index
    %c4 = arith.constant 4 : index
    %18 = vector.load %arg10[%c0_31, %c4] : memref<256x36xf32, #tpu.memory_space<vmem>>, vector<256x4xf32>
    tpu.vector_store %arg10[%c0_31, %c4], %17 {strides = array<i32>} : memref<256x36xf32, #tpu.memory_space<vmem>>, vector<256x4xf32>,
    %c0_32 = arith.constant 0 : index
    %c2 = arith.constant 2 : index
    %c0_33 = arith.constant 0 : index
    %19 = vector.load %arg8[%c0_32, %c2, %c0_33] : memref<18x18x4xf32, #tpu.memory_space<vmem>>, vector<16x16x4xf32>
    %20 = vector.shape_cast %19 : vector<16x16x4xf32> to vector<256x4xf32>
    %c0_34 = arith.constant 0 : index
    %c8 = arith.constant 8 : index
    %21 = vector.load %arg10[%c0_34, %c8] : memref<256x36xf32, #tpu.memory_space<vmem>>, vector<256x4xf32>
    tpu.vector_store %arg10[%c0_34, %c8], %20 {strides = array<i32>} : memref<256x36xf32, #tpu.memory_space<vmem>>, vector<256x4xf32>,
    %c1_35 = arith.constant 1 : index
    %c0_36 = arith.constant 0 : index
    %c0_37 = arith.constant 0 : index
    %22 = vector.load %arg8[%c1_35, %c0_36, %c0_37] : memref<18x18x4xf32, #tpu.memory_space<vmem>>, vector<16x16x4xf32>
    %23 = vector.shape_cast %22 : vector<16x16x4xf32> to vector<256x4xf32>
    %c0_38 = arith.constant 0 : index
    %c12 = arith.constant 12 : index
    %24 = vector.load %arg10[%c0_38, %c12] : memref<256x36xf32, #tpu.memory_space<vmem>>, vector<256x4xf32>
    tpu.vector_store %arg10[%c0_38, %c12], %23 {strides = array<i32>} : memref<256x36xf32, #tpu.memory_space<vmem>>, vector<256x4xf32>,
    %c1_39 = arith.constant 1 : index
    %c1_40 = arith.constant 1 : index
    %c0_41 = arith.constant 0 : index
    %25 = vector.load %arg8[%c1_39, %c1_40, %c0_41] : memref<18x18x4xf32, #tpu.memory_space<vmem>>, vector<16x16x4xf32>
    %26 = vector.shape_cast %25 : vector<16x16x4xf32> to vector<256x4xf32>
    %c0_42 = arith.constant 0 : index
    %c16 = arith.constant 16 : index
    %27 = vector.load %arg10[%c0_42, %c16] : memref<256x36xf32, #tpu.memory_space<vmem>>, vector<256x4xf32>
    tpu.vector_store %arg10[%c0_42, %c16], %26 {strides = array<i32>} : memref<256x36xf32, #tpu.memory_space<vmem>>, vector<256x4xf32>,
    %c1_43 = arith.constant 1 : index
    %c2_44 = arith.constant 2 : index
    %c0_45 = arith.constant 0 : index
    %28 = vector.load %arg8[%c1_43, %c2_44, %c0_45] : memref<18x18x4xf32, #tpu.memory_space<vmem>>, vector<16x16x4xf32>
    %29 = vector.shape_cast %28 : vector<16x16x4xf32> to vector<256x4xf32>
    %c0_46 = arith.constant 0 : index
    %c20 = arith.constant 20 : index
    %30 = vector.load %arg10[%c0_46, %c20] : memref<256x36xf32, #tpu.memory_space<vmem>>, vector<256x4xf32>
    tpu.vector_store %arg10[%c0_46, %c20], %29 {strides = array<i32>} : memref<256x36xf32, #tpu.memory_space<vmem>>, vector<256x4xf32>,
    %c2_47 = arith.constant 2 : index
    %c0_48 = arith.constant 0 : index
    %c0_49 = arith.constant 0 : index
    %31 = vector.load %arg8[%c2_47, %c0_48, %c0_49] : memref<18x18x4xf32, #tpu.memory_space<vmem>>, vector<16x16x4xf32>
    %32 = vector.shape_cast %31 : vector<16x16x4xf32> to vector<256x4xf32>
    %c0_50 = arith.constant 0 : index
    %c24 = arith.constant 24 : index
    %33 = vector.load %arg10[%c0_50, %c24] : memref<256x36xf32, #tpu.memory_space<vmem>>, vector<256x4xf32>
    tpu.vector_store %arg10[%c0_50, %c24], %32 {strides = array<i32>} : memref<256x36xf32, #tpu.memory_space<vmem>>, vector<256x4xf32>,
    %c2_51 = arith.constant 2 : index
    %c1_52 = arith.constant 1 : index
    %c0_53 = arith.constant 0 : index
    %34 = vector.load %arg8[%c2_51, %c1_52, %c0_53] : memref<18x18x4xf32, #tpu.memory_space<vmem>>, vector<16x16x4xf32>
    %35 = vector.shape_cast %34 : vector<16x16x4xf32> to vector<256x4xf32>
    %c0_54 = arith.constant 0 : index
    %c28 = arith.constant 28 : index
    %36 = vector.load %arg10[%c0_54, %c28] : memref<256x36xf32, #tpu.memory_space<vmem>>, vector<256x4xf32>
    tpu.vector_store %arg10[%c0_54, %c28], %35 {strides = array<i32>} : memref<256x36xf32, #tpu.memory_space<vmem>>, vector<256x4xf32>,
    %c2_55 = arith.constant 2 : index
    %c2_56 = arith.constant 2 : index
    %c0_57 = arith.constant 0 : index
    %37 = vector.load %arg8[%c2_55, %c2_56, %c0_57] : memref<18x18x4xf32, #tpu.memory_space<vmem>>, vector<16x16x4xf32>
    %38 = vector.shape_cast %37 : vector<16x16x4xf32> to vector<256x4xf32>
    %c0_58 = arith.constant 0 : index
    %c32 = arith.constant 32 : index
    %39 = vector.load %arg10[%c0_58, %c32] : memref<256x36xf32, #tpu.memory_space<vmem>>, vector<256x4xf32>
    tpu.vector_store %arg10[%c0_58, %c32], %38 {strides = array<i32>} : memref<256x36xf32, #tpu.memory_space<vmem>>, vector<256x4xf32>,
    %c0_59 = arith.constant 0 : index
    %c0_60 = arith.constant 0 : index
    %40 = vector.load %arg10[%c0_59, %c0_60] : memref<256x36xf32, #tpu.memory_space<vmem>>, vector<256x36xf32>
    %cst_61 = arith.constant dense<0.000000e+00> : vector<256x8xf32>
    %41 = tpu.matmul %40, %11, %cst_61 {dimension_numbers = #tpu.dot_dimension_numbers<[1], [0], [0], [1], [0, 0, 1, 1], [], []>} : vector<256x36xf32>, vector<36x8xf32>, vector<256x8xf32> -> vector<256x8xf32>
    %42 = vector.broadcast %12 : vector<1x8xf32> to vector<256x8xf32>
    %43 = arith.addf %41, %42 : vector<256x8xf32>
    %cst_62 = arith.constant 0.000000e+00 : f32
    %44 = vector.broadcast %cst_62 : f32 to vector<256x8xf32>
    %45 = arith.maximumf %43, %44 : vector<256x8xf32>
    %cst_63 = arith.constant 0.000000e+00 : f32
    %46 = vector.broadcast %cst_63 : f32 to vector<1x18x8xf32>
    %c0_64 = arith.constant 0 : index
    %c0_65 = arith.constant 0 : index
    %c0_66 = arith.constant 0 : index
    %47 = vector.load %arg9[%c0_64, %c0_65, %c0_66] : memref<18x18x8xf32, #tpu.memory_space<vmem>>, vector<1x18x8xf32>
    tpu.vector_store %arg9[%c0_64, %c0_65, %c0_66], %46 {strides = array<i32>} : memref<18x18x8xf32, #tpu.memory_space<vmem>>, vector<1x18x8xf32>,
    %cst_67 = arith.constant 0.000000e+00 : f32
    %48 = vector.broadcast %cst_67 : f32 to vector<1x18x8xf32>
    %c17_68 = arith.constant 17 : index
    %c0_69 = arith.constant 0 : index
    %c0_70 = arith.constant 0 : index
    %49 = vector.load %arg9[%c17_68, %c0_69, %c0_70] : memref<18x18x8xf32, #tpu.memory_space<vmem>>, vector<1x18x8xf32>
    tpu.vector_store %arg9[%c17_68, %c0_69, %c0_70], %48 {strides = array<i32>} : memref<18x18x8xf32, #tpu.memory_space<vmem>>, vector<1x18x8xf32>,
    %cst_71 = arith.constant 0.000000e+00 : f32
    %50 = vector.broadcast %cst_71 : f32 to vector<18x1x8xf32>
    %c0_72 = arith.constant 0 : index
    %c0_73 = arith.constant 0 : index
    %c0_74 = arith.constant 0 : index
    %51 = vector.load %arg9[%c0_72, %c0_73, %c0_74] : memref<18x18x8xf32, #tpu.memory_space<vmem>>, vector<18x1x8xf32>
    tpu.vector_store %arg9[%c0_72, %c0_73, %c0_74], %50 {strides = array<i32>} : memref<18x18x8xf32, #tpu.memory_space<vmem>>, vector<18x1x8xf32>,
    %cst_75 = arith.constant 0.000000e+00 : f32
    %52 = vector.broadcast %cst_75 : f32 to vector<18x1x8xf32>
    %c0_76 = arith.constant 0 : index
    %c17_77 = arith.constant 17 : index
    %c0_78 = arith.constant 0 : index
    %53 = vector.load %arg9[%c0_76, %c17_77, %c0_78] : memref<18x18x8xf32, #tpu.memory_space<vmem>>, vector<18x1x8xf32>
    tpu.vector_store %arg9[%c0_76, %c17_77, %c0_78], %52 {strides = array<i32>} : memref<18x18x8xf32, #tpu.memory_space<vmem>>, vector<18x1x8xf32>,
    %54 = vector.shape_cast %45 : vector<256x8xf32> to vector<16x16x8xf32>
    %c1_79 = arith.constant 1 : index
    %c1_80 = arith.constant 1 : index
    %c0_81 = arith.constant 0 : index
    %55 = vector.load %arg9[%c1_79, %c1_80, %c0_81] : memref<18x18x8xf32, #tpu.memory_space<vmem>>, vector<16x16x8xf32>
    tpu.vector_store %arg9[%c1_79, %c1_80, %c0_81], %54 {strides = array<i32>} : memref<18x18x8xf32, #tpu.memory_space<vmem>>, vector<16x16x8xf32>,
    %c0_82 = arith.constant 0 : index
    %c0_83 = arith.constant 0 : index
    %56 = vector.load %arg4[%c0_82, %c0_83] : memref<72x8xf32, #tpu.memory_space<vmem>>, vector<72x8xf32>
    %c0_84 = arith.constant 0 : index
    %c0_85 = arith.constant 0 : index
    %57 = vector.load %arg5[%c0_84, %c0_85] : memref<1x8xf32, #tpu.memory_space<vmem>>, vector<1x8xf32>
    %c0_86 = arith.constant 0 : index
    %c0_87 = arith.constant 0 : index
    %c0_88 = arith.constant 0 : index
    %58 = vector.load %arg9[%c0_86, %c0_87, %c0_88] : memref<18x18x8xf32, #tpu.memory_space<vmem>>, vector<16x16x8xf32>
    %59 = vector.shape_cast %58 : vector<16x16x8xf32> to vector<256x8xf32>
    %c0_89 = arith.constant 0 : index
    %c0_90 = arith.constant 0 : index
    %60 = vector.load %arg11[%c0_89, %c0_90] : memref<256x72xf32, #tpu.memory_space<vmem>>, vector<256x8xf32>
    tpu.vector_store %arg11[%c0_89, %c0_90], %59 {strides = array<i32>} : memref<256x72xf32, #tpu.memory_space<vmem>>, vector<256x8xf32>,
    %c0_91 = arith.constant 0 : index
    %c1_92 = arith.constant 1 : index
    %c0_93 = arith.constant 0 : index
    %61 = vector.load %arg9[%c0_91, %c1_92, %c0_93] : memref<18x18x8xf32, #tpu.memory_space<vmem>>, vector<16x16x8xf32>
    %62 = vector.shape_cast %61 : vector<16x16x8xf32> to vector<256x8xf32>
    %c0_94 = arith.constant 0 : index
    %c8_95 = arith.constant 8 : index
    %63 = vector.load %arg11[%c0_94, %c8_95] : memref<256x72xf32, #tpu.memory_space<vmem>>, vector<256x8xf32>
    tpu.vector_store %arg11[%c0_94, %c8_95], %62 {strides = array<i32>} : memref<256x72xf32, #tpu.memory_space<vmem>>, vector<256x8xf32>,
    %c0_96 = arith.constant 0 : index
    %c2_97 = arith.constant 2 : index
    %c0_98 = arith.constant 0 : index
    %64 = vector.load %arg9[%c0_96, %c2_97, %c0_98] : memref<18x18x8xf32, #tpu.memory_space<vmem>>, vector<16x16x8xf32>
    %65 = vector.shape_cast %64 : vector<16x16x8xf32> to vector<256x8xf32>
    %c0_99 = arith.constant 0 : index
    %c16_100 = arith.constant 16 : index
    %66 = vector.load %arg11[%c0_99, %c16_100] : memref<256x72xf32, #tpu.memory_space<vmem>>, vector<256x8xf32>
    tpu.vector_store %arg11[%c0_99, %c16_100], %65 {strides = array<i32>} : memref<256x72xf32, #tpu.memory_space<vmem>>, vector<256x8xf32>,
    %c1_101 = arith.constant 1 : index
    %c0_102 = arith.constant 0 : index
    %c0_103 = arith.constant 0 : index
    %67 = vector.load %arg9[%c1_101, %c0_102, %c0_103] : memref<18x18x8xf32, #tpu.memory_space<vmem>>, vector<16x16x8xf32>
    %68 = vector.shape_cast %67 : vector<16x16x8xf32> to vector<256x8xf32>
    %c0_104 = arith.constant 0 : index
    %c24_105 = arith.constant 24 : index
    %69 = vector.load %arg11[%c0_104, %c24_105] : memref<256x72xf32, #tpu.memory_space<vmem>>, vector<256x8xf32>
    tpu.vector_store %arg11[%c0_104, %c24_105], %68 {strides = array<i32>} : memref<256x72xf32, #tpu.memory_space<vmem>>, vector<256x8xf32>,
    %c1_106 = arith.constant 1 : index
    %c1_107 = arith.constant 1 : index
    %c0_108 = arith.constant 0 : index
    %70 = vector.load %arg9[%c1_106, %c1_107, %c0_108] : memref<18x18x8xf32, #tpu.memory_space<vmem>>, vector<16x16x8xf32>
    %71 = vector.shape_cast %70 : vector<16x16x8xf32> to vector<256x8xf32>
    %c0_109 = arith.constant 0 : index
    %c32_110 = arith.constant 32 : index
    %72 = vector.load %arg11[%c0_109, %c32_110] : memref<256x72xf32, #tpu.memory_space<vmem>>, vector<256x8xf32>
    tpu.vector_store %arg11[%c0_109, %c32_110], %71 {strides = array<i32>} : memref<256x72xf32, #tpu.memory_space<vmem>>, vector<256x8xf32>,
    %c1_111 = arith.constant 1 : index
    %c2_112 = arith.constant 2 : index
    %c0_113 = arith.constant 0 : index
    %73 = vector.load %arg9[%c1_111, %c2_112, %c0_113] : memref<18x18x8xf32, #tpu.memory_space<vmem>>, vector<16x16x8xf32>
    %74 = vector.shape_cast %73 : vector<16x16x8xf32> to vector<256x8xf32>
    %c0_114 = arith.constant 0 : index
    %c40 = arith.constant 40 : index
    %75 = vector.load %arg11[%c0_114, %c40] : memref<256x72xf32, #tpu.memory_space<vmem>>, vector<256x8xf32>
    tpu.vector_store %arg11[%c0_114, %c40], %74 {strides = array<i32>} : memref<256x72xf32, #tpu.memory_space<vmem>>, vector<256x8xf32>,
    %c2_115 = arith.constant 2 : index
    %c0_116 = arith.constant 0 : index
    %c0_117 = arith.constant 0 : index
    %76 = vector.load %arg9[%c2_115, %c0_116, %c0_117] : memref<18x18x8xf32, #tpu.memory_space<vmem>>, vector<16x16x8xf32>
    %77 = vector.shape_cast %76 : vector<16x16x8xf32> to vector<256x8xf32>
    %c0_118 = arith.constant 0 : index
    %c48 = arith.constant 48 : index
    %78 = vector.load %arg11[%c0_118, %c48] : memref<256x72xf32, #tpu.memory_space<vmem>>, vector<256x8xf32>
    tpu.vector_store %arg11[%c0_118, %c48], %77 {strides = array<i32>} : memref<256x72xf32, #tpu.memory_space<vmem>>, vector<256x8xf32>,
    %c2_119 = arith.constant 2 : index
    %c1_120 = arith.constant 1 : index
    %c0_121 = arith.constant 0 : index
    %79 = vector.load %arg9[%c2_119, %c1_120, %c0_121] : memref<18x18x8xf32, #tpu.memory_space<vmem>>, vector<16x16x8xf32>
    %80 = vector.shape_cast %79 : vector<16x16x8xf32> to vector<256x8xf32>
    %c0_122 = arith.constant 0 : index
    %c56 = arith.constant 56 : index
    %81 = vector.load %arg11[%c0_122, %c56] : memref<256x72xf32, #tpu.memory_space<vmem>>, vector<256x8xf32>
    tpu.vector_store %arg11[%c0_122, %c56], %80 {strides = array<i32>} : memref<256x72xf32, #tpu.memory_space<vmem>>, vector<256x8xf32>,
    %c2_123 = arith.constant 2 : index
    %c2_124 = arith.constant 2 : index
    %c0_125 = arith.constant 0 : index
    %82 = vector.load %arg9[%c2_123, %c2_124, %c0_125] : memref<18x18x8xf32, #tpu.memory_space<vmem>>, vector<16x16x8xf32>
    %83 = vector.shape_cast %82 : vector<16x16x8xf32> to vector<256x8xf32>
    %c0_126 = arith.constant 0 : index
    %c64 = arith.constant 64 : index
    %84 = vector.load %arg11[%c0_126, %c64] : memref<256x72xf32, #tpu.memory_space<vmem>>, vector<256x8xf32>
    tpu.vector_store %arg11[%c0_126, %c64], %83 {strides = array<i32>} : memref<256x72xf32, #tpu.memory_space<vmem>>, vector<256x8xf32>,
    %c0_127 = arith.constant 0 : index
    %c0_128 = arith.constant 0 : index
    %85 = vector.load %arg11[%c0_127, %c0_128] : memref<256x72xf32, #tpu.memory_space<vmem>>, vector<256x72xf32>
    %cst_129 = arith.constant dense<0.000000e+00> : vector<256x8xf32>
    %86 = tpu.matmul %85, %56, %cst_129 {dimension_numbers = #tpu.dot_dimension_numbers<[1], [0], [0], [1], [0, 0, 1, 1], [], []>} : vector<256x72xf32>, vector<72x8xf32>, vector<256x8xf32> -> vector<256x8xf32>
    %87 = vector.broadcast %57 : vector<1x8xf32> to vector<256x8xf32>
    %88 = arith.addf %86, %87 : vector<256x8xf32>
    %cst_130 = arith.constant 0.000000e+00 : f32
    %89 = vector.broadcast %cst_130 : f32 to vector<256x8xf32>
    %90 = arith.maximumf %88, %89 : vector<256x8xf32>
    %91 = vector.shape_cast %90 : vector<256x8xf32> to vector<1x16x16x8xf32>
    %c0_131 = arith.constant 0 : index
    %c0_132 = arith.constant 0 : index
    %c0_133 = arith.constant 0 : index
    %c0_134 = arith.constant 0 : index
    %92 = vector.load %arg6[%c0_131, %c0_132, %c0_133, %c0_134] : memref<1x16x16x8xf32, #tpu.memory_space<vmem>>, vector<1x16x16x8xf32>
    tpu.vector_store %arg6[%c0_131, %c0_132, %c0_133, %c0_134], %91 {strides = array<i32>} : memref<1x16x16x8xf32, #tpu.memory_space<vmem>>, vector<1x16x16x8xf32>,
    %93 = vector.shape_cast %90 : vector<256x8xf32> to vector<16x16x8xf32>
    %94 = vector.shape_cast %93 : vector<16x16x8xf32> to vector<8x2x16x8xf32>
    %cst_135 = arith.constant dense<0xFF800000> : vector<8x16x8xf32>
    %95 = vector.multi_reduction <maximumf>, %94, %cst_135 [1] : vector<8x2x16x8xf32> to vector<8x16x8xf32>
    %96 = vector.shape_cast %95 : vector<8x16x8xf32> to vector<8x8x2x8xf32>
    %cst_136 = arith.constant dense<0xFF800000> : vector<8x8x8xf32>
    %97 = vector.multi_reduction <maximumf>, %96, %cst_136 [2] : vector<8x8x2x8xf32> to vector<8x8x8xf32>
    %98 = vector.shape_cast %97 : vector<8x8x8xf32> to vector<1x8x8x8xf32>
    %c0_137 = arith.constant 0 : index
    %c0_138 = arith.constant 0 : index
    %c0_139 = arith.constant 0 : index
    %c0_140 = arith.constant 0 : index
    %99 = vector.load %arg7[%c0_137, %c0_138, %c0_139, %c0_140] : memref<1x8x8x8xf32, #tpu.memory_space<vmem>>, vector<1x8x8x8xf32>
    tpu.vector_store %arg7[%c0_137, %c0_138, %c0_139, %c0_140], %98 {strides = array<i32>} : memref<1x8x8x8xf32, #tpu.memory_space<vmem>>, vector<1x8x8x8xf32>,
    return
  }
  func.func @transform_0(%arg0: i32) -> (i32, i32, i32, i32) {
    %c0_i32 = arith.constant 0 : i32
    %c0_i32_0 = arith.constant 0 : i32
    %c0_i32_1 = arith.constant 0 : i32
    %c0_i32_2 = arith.constant 0 : i32
    return %arg0, %c0_i32, %c0_i32_0, %c0_i32_1 : i32, i32, i32, i32
  }
  func.func @transform_1(%arg0: i32) -> (i32, i32) {
    %c0_i32 = arith.constant 0 : i32
    %c0_i32_0 = arith.constant 0 : i32
    %c0_i32_1 = arith.constant 0 : i32
    return %c0_i32, %c0_i32_0 : i32, i32
  }
  func.func @transform_2(%arg0: i32) -> (i32, i32) {
    %c0_i32 = arith.constant 0 : i32
    %c0_i32_0 = arith.constant 0 : i32
    %c0_i32_1 = arith.constant 0 : i32
    return %c0_i32, %c0_i32_0 : i32, i32
  }
  func.func @transform_3(%arg0: i32) -> (i32, i32) {
    %c0_i32 = arith.constant 0 : i32
    %c0_i32_0 = arith.constant 0 : i32
    %c0_i32_1 = arith.constant 0 : i32
    return %c0_i32, %c0_i32_0 : i32, i32
  }
  func.func @transform_4(%arg0: i32) -> (i32, i32) {
    %c0_i32 = arith.constant 0 : i32
    %c0_i32_0 = arith.constant 0 : i32
    %c0_i32_1 = arith.constant 0 : i32
    return %c0_i32, %c0_i32_0 : i32, i32
  }
  func.func @transform_5(%arg0: i32) -> (i32, i32, i32, i32) {
    %c0_i32 = arith.constant 0 : i32
    %c0_i32_0 = arith.constant 0 : i32
    %c0_i32_1 = arith.constant 0 : i32
    %c0_i32_2 = arith.constant 0 : i32
    return %arg0, %c0_i32, %c0_i32_0, %c0_i32_1 : i32, i32, i32, i32
  }
  func.func @transform_6(%arg0: i32) -> (i32, i32, i32, i32) {
    %c0_i32 = arith.constant 0 : i32
    %c0_i32_0 = arith.constant 0 : i32
    %c0_i32_1 = arith.constant 0 : i32
    %c0_i32_2 = arith.constant 0 : i32
    return %arg0, %c0_i32, %c0_i32_0, %c0_i32_1 : i32, i32, i32, i32
  }
}

</mosaic_0001>

<llo_original>
// kernel: tpu_custom_call.1
$region0: #{tpu_custom_call.1}
  #allocation0 [shape = 'u32[]', space=smem, size = 0x4, offset = 0x4, fixed_abs, tag = 'smem constant byte address 0x4 - core index']
  #allocation1 [shape = 'u32[72,128]{1,0:T(1,128)}', space=vmem, size = 0x9000, scoped, tag = 'internal scratch']
  #allocation2 [shape = 'f32[18,18,4]{2,1,0:T(8,128)}', space=vmem, size = 0x36000, scoped, tag = 'scratch operand']
  #allocation3 [shape = 'f32[18,18,8]{2,1,0:T(8,128)}', space=vmem, size = 0x36000, scoped, tag = 'scratch operand']
  #allocation4 [shape = 'f32[256,36]{1,0:T(8,128)}', space=vmem, size = 0x20000, scoped, tag = 'scratch operand']
  #allocation5 [shape = 'f32[256,72]{1,0:T(8,128)}', space=vmem, size = 0x20000, scoped, tag = 'scratch operand']
  %s0 = inlined_call_operand.vmem [shape: f32[2,16,16,4], index: 0, kind: input, shape index: {}]
  %s1 = inlined_call_operand.vmem [shape: f32[36,8], index: 1, kind: input, shape index: {}]
  %s2 = inlined_call_operand.vmem [shape: f32[1,8], index: 2, kind: input, shape index: {}]
  %s3 = inlined_call_operand.vmem [shape: f32[72,8], index: 3, kind: input, shape index: {}]
  %s4 = inlined_call_operand.vmem [shape: f32[1,8], index: 4, kind: input, shape index: {}]
  %s5 = inlined_call_operand.vmem [shape: f32[2,16,16,8], index: 5, kind: output, shape index: {0}]
  %s6 = inlined_call_operand.hbm [shape: f32[2,8,8,8], index: 6, kind: output, shape index: {1}]
  %7 = xla_tuple %s5, %s6
  %s8 = sld [smem:[#allocation0]]
  $region61: #{tpu_custom_call.1} parent=0
    _
  %s10 = ssub.s32 1, %s8
  %s11 = scalar_select 0, %s10, %s8
  $region1: #{tpu_custom_call.1} parent=0
    #allocation6 [shape = 'u8[65536]{0}', space=vmem, size = 0x10000, scoped, tag = 'output window, operand 1']
    #allocation7 [shape = 's32[2]{0}', space=sflag, size = 0x8, scoped, tag = 'scoped memory for tpu_custom_call.1']
    %12 = vsyncpa [#allocation7], 0
    %s13 = scalar_lea.sflag [#allocation7], 1
    %14 = vsyncpa %s13, 0
    loop: start=0, step=1, limit=4
    $region2: #{tpu_custom_call.1} parent=1 // loop_pre_header
      _
    $region3: #{tpu_custom_call.1} parent=1 // loop_header
      %s16 = sphi 0, %s20
      %p17 = scmp.ge.s32.totalorder %s16, 4
      %s26 = sphi 0, %s28
      %s29 = sphi 0, %s26
      %s30 = sphi 0, %s29
      %s46 = sphi 0, %s30
      %s50 = sphi 0, %s50
      %s52 = sphi 0, %s50
      %s53 = sphi 0, %s52
      %s67 = sphi 0, %s53
      %s71 = sphi 0, %s71
      %s73 = sphi 0, %s71
      %s74 = sphi 0, %s73
      %s88 = sphi 0, %s74
      %s92 = sphi 0, %s92
      %s94 = sphi 0, %s92
      %s95 = sphi 0, %s94
      %s109 = sphi 0, %s95
      %s113 = sphi 0, %s113
      %s115 = sphi 0, %s113
      %s116 = sphi 0, %s115
      %s130 = sphi 0, %s116
      %s136 = sphi 0, %s138
      %s139 = sphi 0, %s136
      %s140 = sphi 0, %s139
      %s156 = sphi 0, %s140
      %s162 = sphi 0, %s164
      %s165 = sphi 0, %s162
      %s166 = sphi 0, %s165
      %s182 = sphi 0, %s166
    $region4: #{tpu_custom_call.1} parent=1 // loop_header_branch
      %19 = sbr.rel (%p17) target = $region8
    $region5: #{tpu_custom_call.1} parent=1 // loop_body
      %s21 = ssub.s32 %s16, 1
      %s22 = ssub.s32 %s16, 2
      %s23 = sadd.s32 %s16, 1
      %s24 = ssub.s32 %s16, %s23
      %p25 = scmp.eq.s32.totalorder %s24, 0
      %s27 = sadd.s32 %s26, 1
      %s28 = scalar_select %p25, %s26, %s27
      %p31 = pneg %p25
      %p32 = scmp.eq.s32.totalorder %s16, 1
      %p33 = por %p31, %p32
      %p34 = scmp.ne.s32.totalorder %s26, %s29
      %p35 = scmp.eq.s32.totalorder %s16, 0
      %p36 = por %p34, %p35
      %p37 = scmp.ne.s32.totalorder %s26, %s29
      %p38 = scmp.eq.s32.totalorder %s21, 1
      %p39 = por %p37, %p38
      %p40 = scmp.ne.s32.totalorder %s29, %s30
      %p41 = scmp.eq.s32.totalorder %s21, 0
      %p42 = por %p40, %p41
      %p43 = scmp.ne.s32.totalorder %s29, %s30
      %p44 = scmp.eq.s32.totalorder %s22, 1
      %p45 = por %p43, %p44
      %p47 = scmp.ne.s32.totalorder %s30, %s46
      %p48 = scmp.eq.s32.totalorder %s22, 0
      %p49 = por %p47, %p48
      %s51 = sadd.s32 %s50, 1
      %p54 = scmp.eq.s32.totalorder %s16, 1
      %p55 = scmp.ne.s32.totalorder %s50, %s52
      %p56 = scmp.eq.s32.totalorder %s16, 0
      %p57 = por %p55, %p56
      %p58 = scmp.ne.s32.totalorder %s50, %s52
      %p59 = scmp.eq.s32.totalorder %s21, 1
      %p60 = por %p58, %p59
      %p61 = scmp.ne.s32.totalorder %s52, %s53
      %p62 = scmp.eq.s32.totalorder %s21, 0
      %p63 = por %p61, %p62
      %p64 = scmp.ne.s32.totalorder %s52, %s53
      %p65 = scmp.eq.s32.totalorder %s22, 1
      %p66 = por %p64, %p65
      %p68 = scmp.ne.s32.totalorder %s53, %s67
      %p69 = scmp.eq.s32.totalorder %s22, 0
      %p70 = por %p68, %p69
      %s72 = sadd.s32 %s71, 1
      %p75 = scmp.eq.s32.totalorder %s16, 1
      %p76 = scmp.ne.s32.totalorder %s71, %s73
      %p77 = scmp.eq.s32.totalorder %s16, 0
      %p78 = por %p76, %p77
      %p79 = scmp.ne.s32.totalorder %s71, %s73
      %p80 = scmp.eq.s32.totalorder %s21, 1
      %p81 = por %p79, %p80
      %p82 = scmp.ne.s32.totalorder %s73, %s74
      %p83 = scmp.eq.s32.totalorder %s21, 0
      %p84 = por %p82, %p83
      %p85 = scmp.ne.s32.totalorder %s73, %s74
      %p86 = scmp.eq.s32.totalorder %s22, 1
      %p87 = por %p85, %p86
      %p89 = scmp.ne.s32.totalorder %s74, %s88
      %p90 = scmp.eq.s32.totalorder %s22, 0
      %p91 = por %p89, %p90
      %s93 = sadd.s32 %s92, 1
      %p96 = scmp.eq.s32.totalorder %s16, 1
      %p97 = scmp.ne.s32.totalorder %s92, %s94
      %p98 = scmp.eq.s32.totalorder %s16, 0
      %p99 = por %p97, %p98
      %p100 = scmp.ne.s32.totalorder %s92, %s94
      %p101 = scmp.eq.s32.totalorder %s21, 1
      %p102 = por %p100, %p101
      %p103 = scmp.ne.s32.totalorder %s94, %s95
      %p104 = scmp.eq.s32.totalorder %s21, 0
      %p105 = por %p103, %p104
      %p106 = scmp.ne.s32.totalorder %s94, %s95
      %p107 = scmp.eq.s32.totalorder %s22, 1
      %p108 = por %p106, %p107
      %p110 = scmp.ne.s32.totalorder %s95, %s109
      %p111 = scmp.eq.s32.totalorder %s22, 0
      %p112 = por %p110, %p111
      %s114 = sadd.s32 %s113, 1
      %p117 = scmp.eq.s32.totalorder %s16, 1
      %p118 = scmp.ne.s32.totalorder %s113, %s115
      %p119 = scmp.eq.s32.totalorder %s16, 0
      %p120 = por %p118, %p119
      %p121 = scmp.ne.s32.totalorder %s113, %s115
      %p122 = scmp.eq.s32.totalorder %s21, 1
      %p123 = por %p121, %p122
      %p124 = scmp.ne.s32.totalorder %s115, %s116
      %p125 = scmp.eq.s32.totalorder %s21, 0
      %p126 = por %p124, %p125
      %p127 = scmp.ne.s32.totalorder %s115, %s116
      %p128 = scmp.eq.s32.totalorder %s22, 1
      %p129 = por %p127, %p128
      %p131 = scmp.ne.s32.totalorder %s116, %s130
      %p132 = scmp.eq.s32.totalorder %s22, 0
      %p133 = por %p131, %p132
      %s134 = ssub.s32 %s16, %s23
      %p135 = scmp.eq.s32.totalorder %s134, 0
      %s137 = sadd.s32 %s136, 1
      %s138 = scalar_select %p135, %s136, %s137
      %p141 = pneg %p135
      %p142 = scmp.eq.s32.totalorder %s16, 1
      %p143 = por %p141, %p142
      %p144 = scmp.ne.s32.totalorder %s136, %s139
      %p145 = scmp.eq.s32.totalorder %s16, 0
      %p146 = por %p144, %p145
      %p147 = scmp.ne.s32.totalorder %s136, %s139
      %p148 = scmp.eq.s32.totalorder %s21, 1
      %p149 = por %p147, %p148
      %p150 = scmp.ne.s32.totalorder %s139, %s140
      %p151 = scmp.eq.s32.totalorder %s21, 0
      %p152 = por %p150, %p151
      %p153 = scmp.ne.s32.totalorder %s139, %s140
      %p154 = scmp.eq.s32.totalorder %s22, 1
      %p155 = por %p153, %p154
      %p157 = scmp.ne.s32.totalorder %s140, %s156
      %p158 = scmp.eq.s32.totalorder %s22, 0
      %p159 = por %p157, %p158
      %s160 = ssub.s32 %s16, %s23
      %p161 = scmp.eq.s32.totalorder %s160, 0
      %s163 = sadd.s32 %s162, 1
      %s164 = scalar_select %p161, %s162, %s163
      %p167 = pneg %p161
      %p168 = scmp.eq.s32.totalorder %s16, 1
      %p169 = por %p167, %p168
      %p170 = scmp.ne.s32.totalorder %s162, %s165
      %p171 = scmp.eq.s32.totalorder %s16, 0
      %p172 = por %p170, %p171
      %p173 = scmp.ne.s32.totalorder %s162, %s165
      %p174 = scmp.eq.s32.totalorder %s21, 1
      %p175 = por %p173, %p174
      %p176 = scmp.ne.s32.totalorder %s165, %s166
      %p177 = scmp.eq.s32.totalorder %s21, 0
      %p178 = por %p176, %p177
      %p179 = scmp.ne.s32.totalorder %s165, %s166
      %p180 = scmp.eq.s32.totalorder %s22, 1
      %p181 = por %p179, %p180
      %p183 = scmp.ne.s32.totalorder %s166, %s182
      %p184 = scmp.eq.s32.totalorder %s22, 0
      %p185 = por %p183, %p184
      %p186 = scmp.le.s32.totalorder 1, %s16
      %p187 = scmp.lt.s32.totalorder %s16, 3
      %p188 = pnand %p186, %p187
      %p189 = pneg %p188
      // Predicated region
      $region9: #{tpu_custom_call.1} parent=5 // pred_check
        _
      $region10: #{tpu_custom_call.1} parent=5 // pred_check_branch
        %191 = sbr.rel (%p188) target = $region12
      $region11: #{tpu_custom_call.1} parent=5 // pred_region
        %s192 = ssub.s32 %s16, 1
        // Predicated region
        $region13: #{tpu_custom_call.1} parent=11 // pred_check
          %p193 = pneg %p63
        $region14: #{tpu_custom_call.1} parent=11 // pred_check_branch
          %195 = sbr.rel (%p193) target = $region16
        $region15: #{tpu_custom_call.1} parent=11 // pred_region
          _
        $region16: #{tpu_custom_call.1} parent=11 // pred_fallthru
          _
        // Predicated region
        $region17: #{tpu_custom_call.1} parent=11 // pred_check
          %p196 = pneg %p84
        $region18: #{tpu_custom_call.1} parent=11 // pred_check_branch
          %198 = sbr.rel (%p196) target = $region20
        $region19: #{tpu_custom_call.1} parent=11 // pred_region
          _
        $region20: #{tpu_custom_call.1} parent=11 // pred_fallthru
          _
        // Predicated region
        $region21: #{tpu_custom_call.1} parent=11 // pred_check
          %p199 = pneg %p105
        $region22: #{tpu_custom_call.1} parent=11 // pred_check_branch
          %201 = sbr.rel (%p199) target = $region24
        $region23: #{tpu_custom_call.1} parent=11 // pred_region
          _
        $region24: #{tpu_custom_call.1} parent=11 // pred_fallthru
          _
        // Predicated region
        $region25: #{tpu_custom_call.1} parent=11 // pred_check
          %p202 = pneg %p126
        $region26: #{tpu_custom_call.1} parent=11 // pred_check_branch
          %204 = sbr.rel (%p202) target = $region28
        $region27: #{tpu_custom_call.1} parent=11 // pred_region
          _
        $region28: #{tpu_custom_call.1} parent=11 // pred_fallthru
          _
      $region12: #{tpu_custom_call.1} parent=5 // pred_fallthru
        _
      %p205 = scmp.lt.s32.totalorder %s16, 2
      // Predicated region
      $region29: #{tpu_custom_call.1} parent=5 // pred_check
        %p206 = pneg %p205
      $region30: #{tpu_custom_call.1} parent=5 // pred_check_branch
        %208 = sbr.rel (%p206) target = $region32
      $region31: #{tpu_custom_call.1} parent=5 // pred_region
        // Predicated region
        $region33: #{tpu_custom_call.1} parent=31 // pred_check
          %p209 = pneg %p36
        $region34: #{tpu_custom_call.1} parent=31 // pred_check_branch
          %211 = sbr.rel (%p209) target = $region36
        $region35: #{tpu_custom_call.1} parent=31 // pred_region
          %p212 = scmp.lt.s32.totalorder %s16, 1
          %s213 = scalar_select %p212, %s16, 1
          %s214 = smul.addr %s213, 32
          %s215 = smul.addr %s214, 8
          %s216 = scalar_lea.vmem %s0, %s215
        $region36: #{tpu_custom_call.1} parent=31 // pred_fallthru
          _
      $region32: #{tpu_custom_call.1} parent=5 // pred_fallthru
        _
      %p217 = scmp.le.s32.totalorder 1, %s16
      %p218 = scmp.lt.s32.totalorder %s16, 3
      %p219 = pnand %p217, %p218
      %p220 = pneg %p219
      // Predicated region
      $region37: #{tpu_custom_call.1} parent=5 // pred_check
        _
      $region38: #{tpu_custom_call.1} parent=5 // pred_check_branch
        %222 = sbr.rel (%p219) target = $region40
      $region39: #{tpu_custom_call.1} parent=5 // pred_region
        %s223 = ssub.s32 %s16, 1
        %p224 = scmp.lt.s32.totalorder %s21, 1
        %s225 = scalar_select %p224, %s21, 1
        %s226 = smul.addr %s225, 32
        %s227 = smul.addr %s226, 8
        %s228 = scalar_lea.vmem %s0, %s227
        %p229 = pneg %p42
        %p230 = pneg %p39
        %p231 = pneg %p63
        %p232 = pneg %p60
        %p233 = pneg %p84
        %p234 = pneg %p81
        %p235 = pneg %p105
        %p236 = pneg %p102
        %p237 = pneg %p126
        %p238 = pneg %p123
        %p239 = pneg %p152
        %p240 = pneg %p149
        %p241 = scmp.lt.s32.totalorder %s21, 1
        %s242 = scalar_select %p241, %s21, 1
        %s243 = smul.addr %s242, 32
        %s244 = smul.addr %s243, 8
        %s245 = scalar_lea.vmem %s5, %s244
        %p246 = pneg %p178
        %p247 = pneg %p175
        %s248 = sand.u32 %s165, 1
        %s249 = scalar_lea.sflag [#allocation7], %s248
        %s250 = sand.u32 %s165, 1
        %s251 = smul.addr %s250, 64
        %s252 = scalar_lea.vmem [#allocation6], %s251
        %p253 = scmp.lt.s32.totalorder %s21, 1
        %s254 = scalar_select %p253, %s21, 1
        %s255 = smul.addr %s254, 32
        %s256 = smul.addr %s255, 8
        %s257 = scalar_lea.vmem %s0, %s256
        %p258 = scmp.lt.s32.totalorder %s21, 1
        %s259 = scalar_select %p258, %s21, 1
        %s260 = smul.addr %s259, 32
        %s261 = smul.addr %s260, 8
        %s262 = scalar_lea.vmem %s5, %s261
        %vm263 = vcmask 31744
        %264 = vst.msk [vmem:[#allocation2] sm:$0xff] %vm263, 0.0
        %265 = vst.msk [vmem:[#allocation2 + $0x8] sm:$0xff] %vm263, 0.0
        %vm266 = vcmask 25600
        %267 = vst.msk [vmem:[#allocation2 + $0x10] sm:$0x3] %vm266, 0.0
        %s268 = scalar_lea.vmem [#allocation2], 408
        %269 = vst.msk [vmem:[%s268] sm:$0xff] %vm263, 0.0
        %270 = vst.msk [vmem:[%s268 + $0x8] sm:$0xff] %vm263, 0.0
        %271 = vst.msk [vmem:[%s268 + $0x10] sm:$0x3] %vm266, 0.0
        %vm272 = vcmask 24576
        %273 = vst.msk [vmem:[#allocation2] sm:$0x1] %vm272, 0.0
        %274 = vst.msk [vmem:[#allocation2 + $0x18] sm:$0x1] %vm272, 0.0
        %275 = vst.msk [vmem:[#allocation2 + $0x30] sm:$0x1] %vm272, 0.0
        %276 = vst.msk [vmem:[#allocation2 + $0x48] sm:$0x1] %vm272, 0.0
        %277 = vst.msk [vmem:[#allocation2 + $0x60] sm:$0x1] %vm272, 0.0
        %278 = vst.msk [vmem:[#allocation2 + $0x78] sm:$0x1] %vm272, 0.0
        %279 = vst.msk [vmem:[#allocation2 + $0x90] sm:$0x1] %vm272, 0.0
        %280 = vst.msk [vmem:[#allocation2 + $0xa8] sm:$0x1] %vm272, 0.0
        %281 = vst.msk [vmem:[#allocation2 + $0xc0] sm:$0x1] %vm272, 0.0
        %282 = vst.msk [vmem:[#allocation2 + $0xd8] sm:$0x1] %vm272, 0.0
        %283 = vst.msk [vmem:[#allocation2 + $0xf0] sm:$0x1] %vm272, 0.0
        %284 = vst.msk [vmem:[#allocation2 + $0x108] sm:$0x1] %vm272, 0.0
        %285 = vst.msk [vmem:[#allocation2 + $0x120] sm:$0x1] %vm272, 0.0
        %286 = vst.msk [vmem:[#allocation2 + $0x138] sm:$0x1] %vm272, 0.0
        %287 = vst.msk [vmem:[#allocation2 + $0x150] sm:$0x1] %vm272, 0.0
        %288 = vst.msk [vmem:[#allocation2 + $0x168] sm:$0x1] %vm272, 0.0
        %289 = vst.msk [vmem:[#allocation2 + $0x180] sm:$0x1] %vm272, 0.0
        %290 = vst.msk [vmem:[#allocation2 + $0x198] sm:$0x1] %vm272, 0.0
        %291 = vst.msk [vmem:[#allocation2 + $0x11] sm:$0x1] %vm272, 0.0
        %292 = vst.msk [vmem:[#allocation2 + $0x29] sm:$0x1] %vm272, 0.0
        %293 = vst.msk [vmem:[#allocation2 + $0x41] sm:$0x1] %vm272, 0.0
        %294 = vst.msk [vmem:[#allocation2 + $0x59] sm:$0x1] %vm272, 0.0
        %295 = vst.msk [vmem:[#allocation2 + $0x71] sm:$0x1] %vm272, 0.0
        %296 = vst.msk [vmem:[#allocation2 + $0x89] sm:$0x1] %vm272, 0.0
        %297 = vst.msk [vmem:[#allocation2 + $0xa1] sm:$0x1] %vm272, 0.0
        %298 = vst.msk [vmem:[#allocation2 + $0xb9] sm:$0x1] %vm272, 0.0
        %299 = vst.msk [vmem:[#allocation2 + $0xd1] sm:$0x1] %vm272, 0.0
        %300 = vst.msk [vmem:[#allocation2 + $0xe9] sm:$0x1] %vm272, 0.0
        %301 = vst.msk [vmem:[#allocation2 + $0x101] sm:$0x1] %vm272, 0.0
        %302 = vst.msk [vmem:[#allocation2 + $0x119] sm:$0x1] %vm272, 0.0
        %303 = vst.msk [vmem:[#allocation2 + $0x131] sm:$0x1] %vm272, 0.0
        %304 = vst.msk [vmem:[#allocation2 + $0x149] sm:$0x1] %vm272, 0.0
        %305 = vst.msk [vmem:[#allocation2 + $0x161] sm:$0x1] %vm272, 0.0
        %306 = vst.msk [vmem:[#allocation2 + $0x179] sm:$0x1] %vm272, 0.0
        %307 = vst.msk [vmem:[#allocation2 + $0x191] sm:$0x1] %vm272, 0.0
        %308 = vst.msk [vmem:[#allocation2 + $0x1a9] sm:$0x1] %vm272, 0.0
        %v309 = vld [vmem:[%s257] sm:$0xff]
        %v310 = vld [vmem:[%s257 + $0x8] sm:$0xff]
        %v311 = vld [vmem:[%s257 + $0x10] sm:$0xff]
        %v312 = vld [vmem:[%s257 + $0x18] sm:$0xff]
        %v313 = vld [vmem:[%s257 + $0x20] sm:$0xff]
        %v314 = vld [vmem:[%s257 + $0x28] sm:$0xff]
        %v315 = vld [vmem:[%s257 + $0x30] sm:$0xff]
        %v316 = vld [vmem:[%s257 + $0x38] sm:$0xff]
        %v317 = vld [vmem:[%s257 + $0x40] sm:$0xff]
        %v318 = vld [vmem:[%s257 + $0x48] sm:$0xff]
        %v319 = vld [vmem:[%s257 + $0x50] sm:$0xff]
        %v320 = vld [vmem:[%s257 + $0x58] sm:$0xff]
        %v321 = vld [vmem:[%s257 + $0x60] sm:$0xff]
        %v322 = vld [vmem:[%s257 + $0x68] sm:$0xff]
        %v323 = vld [vmem:[%s257 + $0x70] sm:$0xff]
        %v324 = vld [vmem:[%s257 + $0x78] sm:$0xff]
        %v325 = vld [vmem:[%s257 + $0x80] sm:$0xff]
        %v326 = vld [vmem:[%s257 + $0x88] sm:$0xff]
        %v327 = vld [vmem:[%s257 + $0x90] sm:$0xff]
        %v328 = vld [vmem:[%s257 + $0x98] sm:$0xff]
        %v329 = vld [vmem:[%s257 + $0xa0] sm:$0xff]
        %v330 = vld [vmem:[%s257 + $0xa8] sm:$0xff]
        %v331 = vld [vmem:[%s257 + $0xb0] sm:$0xff]
        %v332 = vld [vmem:[%s257 + $0xb8] sm:$0xff]
        %v333 = vld [vmem:[%s257 + $0xc0] sm:$0xff]
        %v334 = vld [vmem:[%s257 + $0xc8] sm:$0xff]
        %v335 = vld [vmem:[%s257 + $0xd0] sm:$0xff]
        %v336 = vld [vmem:[%s257 + $0xd8] sm:$0xff]
        %v337 = vld [vmem:[%s257 + $0xe0] sm:$0xff]
        %v338 = vld [vmem:[%s257 + $0xe8] sm:$0xff]
        %v339 = vld [vmem:[%s257 + $0xf0] sm:$0xff]
        %v340 = vld [vmem:[%s257 + $0xf8] sm:$0xff]
        %s341 = scalar_lea.vmem [#allocation2], 24
        %342 = vst.msk [vmem:[%s341 + $0x1] sm:$0xff] %vm263, %v309
        %343 = vst.msk [vmem:[%s341 + $0x9] sm:$0xff] %vm263, %v310
        %344 = vst.msk [vmem:[%s341 + $0x19] sm:$0xff] %vm263, %v311
        %345 = vst.msk [vmem:[%s341 + $0x21] sm:$0xff] %vm263, %v312
        %346 = vst.msk [vmem:[%s341 + $0x31] sm:$0xff] %vm263, %v313
        %347 = vst.msk [vmem:[%s341 + $0x39] sm:$0xff] %vm263, %v314
        %348 = vst.msk [vmem:[%s341 + $0x49] sm:$0xff] %vm263, %v315
        %349 = vst.msk [vmem:[%s341 + $0x51] sm:$0xff] %vm263, %v316
        %350 = vst.msk [vmem:[%s341 + $0x61] sm:$0xff] %vm263, %v317
        %351 = vst.msk [vmem:[%s341 + $0x69] sm:$0xff] %vm263, %v318
        %352 = vst.msk [vmem:[%s341 + $0x79] sm:$0xff] %vm263, %v319
        %353 = vst.msk [vmem:[%s341 + $0x81] sm:$0xff] %vm263, %v320
        %354 = vst.msk [vmem:[%s341 + $0x91] sm:$0xff] %vm263, %v321
        %355 = vst.msk [vmem:[%s341 + $0x99] sm:$0xff] %vm263, %v322
        %356 = vst.msk [vmem:[%s341 + $0xa9] sm:$0xff] %vm263, %v323
        %357 = vst.msk [vmem:[%s341 + $0xb1] sm:$0xff] %vm263, %v324
        %358 = vst.msk [vmem:[%s341 + $0xc1] sm:$0xff] %vm263, %v325
        %359 = vst.msk [vmem:[%s341 + $0xc9] sm:$0xff] %vm263, %v326
        %360 = vst.msk [vmem:[%s341 + $0xd9] sm:$0xff] %vm263, %v327
        %361 = vst.msk [vmem:[%s341 + $0xe1] sm:$0xff] %vm263, %v328
        %362 = vst.msk [vmem:[%s341 + $0xf1] sm:$0xff] %vm263, %v329
        %363 = vst.msk [vmem:[%s341 + $0xf9] sm:$0xff] %vm263, %v330
        %364 = vst.msk [vmem:[%s341 + $0x109] sm:$0xff] %vm263, %v331
        %365 = vst.msk [vmem:[%s341 + $0x111] sm:$0xff] %vm263, %v332
        %366 = vst.msk [vmem:[%s341 + $0x121] sm:$0xff] %vm263, %v333
        %367 = vst.msk [vmem:[%s341 + $0x129] sm:$0xff] %vm263, %v334
        %368 = vst.msk [vmem:[%s341 + $0x139] sm:$0xff] %vm263, %v335
        %369 = vst.msk [vmem:[%s341 + $0x141] sm:$0xff] %vm263, %v336
        %370 = vst.msk [vmem:[%s341 + $0x151] sm:$0xff] %vm263, %v337
        %371 = vst.msk [vmem:[%s341 + $0x159] sm:$0xff] %vm263, %v338
        %372 = vst.msk [vmem:[%s341 + $0x169] sm:$0xff] %vm263, %v339
        %373 = vst.msk [vmem:[%s341 + $0x171] sm:$0xff] %vm263, %v340
        %v374 = vld [vmem:[%s1] sm:$0xff]
        %v375 = vld [vmem:[%s1 + $0x8] sm:$0xff]
        %v376 = vld [vmem:[%s1 + $0x10] sm:$0xff]
        %v377 = vld [vmem:[%s1 + $0x18] sm:$0xff]
        %v378 = vld [vmem:[%s1 + $0x20] sm:$0xf]
        %v379 = vld [vmem:[%s2] sm:$0x1]
        %v380 = vld [vmem:[#allocation2] sm:$0xff]
        %v381 = vld [vmem:[#allocation2 + $0x8] sm:$0xff]
        %v382 = vld [vmem:[#allocation2 + $0x18] sm:$0xff]
        %v383 = vld [vmem:[#allocation2 + $0x20] sm:$0xff]
        %v384 = vld [vmem:[#allocation2 + $0x30] sm:$0xff]
        %v385 = vld [vmem:[#allocation2 + $0x38] sm:$0xff]
        %v386 = vld [vmem:[#allocation2 + $0x48] sm:$0xff]
        %v387 = vld [vmem:[#allocation2 + $0x50] sm:$0xff]
        %v388 = vld [vmem:[#allocation2 + $0x60] sm:$0xff]
        %v389 = vld [vmem:[#allocation2 + $0x68] sm:$0xff]
        %v390 = vld [vmem:[#allocation2 + $0x78] sm:$0xff]
        %v391 = vld [vmem:[#allocation2 + $0x80] sm:$0xff]
        %v392 = vld [vmem:[#allocation2 + $0x90] sm:$0xff]
        %v393 = vld [vmem:[#allocation2 + $0x98] sm:$0xff]
        %v394 = vld [vmem:[#allocation2 + $0xa8] sm:$0xff]
        %v395 = vld [vmem:[#allocation2 + $0xb0] sm:$0xff]
        %v396 = vld [vmem:[#allocation2 + $0xc0] sm:$0xff]
        %v397 = vld [vmem:[#allocation2 + $0xc8] sm:$0xff]
        %v398 = vld [vmem:[#allocation2 + $0xd8] sm:$0xff]
        %v399 = vld [vmem:[#allocation2 + $0xe0] sm:$0xff]
        %v400 = vld [vmem:[#allocation2 + $0xf0] sm:$0xff]
        %v401 = vld [vmem:[#allocation2 + $0xf8] sm:$0xff]
        %v402 = vld [vmem:[#allocation2 + $0x108] sm:$0xff]
        %v403 = vld [vmem:[#allocation2 + $0x110] sm:$0xff]
        %v404 = vld [vmem:[#allocation2 + $0x120] sm:$0xff]
        %v405 = vld [vmem:[#allocation2 + $0x128] sm:$0xff]
        %v406 = vld [vmem:[#allocation2 + $0x138] sm:$0xff]
        %v407 = vld [vmem:[#allocation2 + $0x140] sm:$0xff]
        %v408 = vld [vmem:[#allocation2 + $0x150] sm:$0xff]
        %v409 = vld [vmem:[#allocation2 + $0x158] sm:$0xff]
        %v410 = vld [vmem:[#allocation2 + $0x168] sm:$0xff]
        %v411 = vld [vmem:[#allocation2 + $0x170] sm:$0xff]
        %412 = vst.msk [vmem:[#allocation4] sm:$0xff] %vm263, %v380
        %413 = vst.msk [vmem:[#allocation4 + $0x8] sm:$0xff] %vm263, %v381
        %414 = vst.msk [vmem:[#allocation4 + $0x10] sm:$0xff] %vm263, %v382
        %415 = vst.msk [vmem:[#allocation4 + $0x18] sm:$0xff] %vm263, %v383
        %416 = vst.msk [vmem:[#allocation4 + $0x20] sm:$0xff] %vm263, %v384
        %417 = vst.msk [vmem:[#allocation4 + $0x28] sm:$0xff] %vm263, %v385
        %418 = vst.msk [vmem:[#allocation4 + $0x30] sm:$0xff] %vm263, %v386
        %419 = vst.msk [vmem:[#allocation4 + $0x38] sm:$0xff] %vm263, %v387
        %420 = vst.msk [vmem:[#allocation4 + $0x40] sm:$0xff] %vm263, %v388
        %421 = vst.msk [vmem:[#allocation4 + $0x48] sm:$0xff] %vm263, %v389
        %422 = vst.msk [vmem:[#allocation4 + $0x50] sm:$0xff] %vm263, %v390
        %423 = vst.msk [vmem:[#allocation4 + $0x58] sm:$0xff] %vm263, %v391
        %424 = vst.msk [vmem:[#allocation4 + $0x60] sm:$0xff] %vm263, %v392
        %425 = vst.msk [vmem:[#allocation4 + $0x68] sm:$0xff] %vm263, %v393
        %426 = vst.msk [vmem:[#allocation4 + $0x70] sm:$0xff] %vm263, %v394
        %427 = vst.msk [vmem:[#allocation4 + $0x78] sm:$0xff] %vm263, %v395
        %428 = vst.msk [vmem:[#allocation4 + $0x80] sm:$0xff] %vm263, %v396
        %429 = vst.msk [vmem:[#allocation4 + $0x88] sm:$0xff] %vm263, %v397
        %430 = vst.msk [vmem:[#allocation4 + $0x90] sm:$0xff] %vm263, %v398
        %431 = vst.msk [vmem:[#allocation4 + $0x98] sm:$0xff] %vm263, %v399
        %432 = vst.msk [vmem:[#allocation4 + $0xa0] sm:$0xff] %vm263, %v400
        %433 = vst.msk [vmem:[#allocation4 + $0xa8] sm:$0xff] %vm263, %v401
        %434 = vst.msk [vmem:[#allocation4 + $0xb0] sm:$0xff] %vm263, %v402
        %435 = vst.msk [vmem:[#allocation4 + $0xb8] sm:$0xff] %vm263, %v403
        %436 = vst.msk [vmem:[#allocation4 + $0xc0] sm:$0xff] %vm263, %v404
        %437 = vst.msk [vmem:[#allocation4 + $0xc8] sm:$0xff] %vm263, %v405
        %438 = vst.msk [vmem:[#allocation4 + $0xd0] sm:$0xff] %vm263, %v406
        %439 = vst.msk [vmem:[#allocation4 + $0xd8] sm:$0xff] %vm263, %v407
        %440 = vst.msk [vmem:[#allocation4 + $0xe0] sm:$0xff] %vm263, %v408
        %441 = vst.msk [vmem:[#allocation4 + $0xe8] sm:$0xff] %vm263, %v409
        %442 = vst.msk [vmem:[#allocation4 + $0xf0] sm:$0xff] %vm263, %v410
        %443 = vst.msk [vmem:[#allocation4 + $0xf8] sm:$0xff] %vm263, %v411
        %v444 = vld [vmem:[#allocation2 + $0x1] sm:$0xff]
        %v445 = vld [vmem:[#allocation2 + $0x9] sm:$0xff]
        %v446 = vld [vmem:[#allocation2 + $0x19] sm:$0xff]
        %v447 = vld [vmem:[#allocation2 + $0x21] sm:$0xff]
        %v448 = vld [vmem:[#allocation2 + $0x31] sm:$0xff]
        %v449 = vld [vmem:[#allocation2 + $0x39] sm:$0xff]
        %v450 = vld [vmem:[#allocation2 + $0x49] sm:$0xff]
        %v451 = vld [vmem:[#allocation2 + $0x51] sm:$0xff]
        %v452 = vld [vmem:[#allocation2 + $0x61] sm:$0xff]
        %v453 = vld [vmem:[#allocation2 + $0x69] sm:$0xff]
        %v454 = vld [vmem:[#allocation2 + $0x79] sm:$0xff]
        %v455 = vld [vmem:[#allocation2 + $0x81] sm:$0xff]
        %v456 = vld [vmem:[#allocation2 + $0x91] sm:$0xff]
        %v457 = vld [vmem:[#allocation2 + $0x99] sm:$0xff]
        %v458 = vld [vmem:[#allocation2 + $0xa9] sm:$0xff]
        %v459 = vld [vmem:[#allocation2 + $0xb1] sm:$0xff]
        %v460 = vld [vmem:[#allocation2 + $0xc1] sm:$0xff]
        %v461 = vld [vmem:[#allocation2 + $0xc9] sm:$0xff]
        %v462 = vld [vmem:[#allocation2 + $0xd9] sm:$0xff]
        %v463 = vld [vmem:[#allocation2 + $0xe1] sm:$0xff]
        %v464 = vld [vmem:[#allocation2 + $0xf1] sm:$0xff]
        %v465 = vld [vmem:[#allocation2 + $0xf9] sm:$0xff]
        %v466 = vld [vmem:[#allocation2 + $0x109] sm:$0xff]
        %v467 = vld [vmem:[#allocation2 + $0x111] sm:$0xff]
        %v468 = vld [vmem:[#allocation2 + $0x121] sm:$0xff]
        %v469 = vld [vmem:[#allocation2 + $0x129] sm:$0xff]
        %v470 = vld [vmem:[#allocation2 + $0x139] sm:$0xff]
        %v471 = vld [vmem:[#allocation2 + $0x141] sm:$0xff]
        %v472 = vld [vmem:[#allocation2 + $0x151] sm:$0xff]
        %v473 = vld [vmem:[#allocation2 + $0x159] sm:$0xff]
        %v474 = vld [vmem:[#allocation2 + $0x169] sm:$0xff]
        %v475 = vld [vmem:[#allocation2 + $0x171] sm:$0xff]
        %508 = vrot.lane.b32.xlu0 %v444, 4
        %v509 = vpop.permute.xlu0 %508
        %510 = vrot.lane.b32.xlu0 %v445, 4
        %v511 = vpop.permute.xlu0 %510
        %512 = vrot.lane.b32.xlu0 %v446, 4
        %v513 = vpop.permute.xlu0 %512
        %514 = vrot.lane.b32.xlu0 %v447, 4
        %v515 = vpop.permute.xlu0 %514
        %516 = vrot.lane.b32.xlu0 %v448, 4
        %v517 = vpop.permute.xlu0 %516
        %518 = vrot.lane.b32.xlu0 %v449, 4
        %v519 = vpop.permute.xlu0 %518
        %520 = vrot.lane.b32.xlu0 %v450, 4
        %v521 = vpop.permute.xlu0 %520
        %522 = vrot.lane.b32.xlu0 %v451, 4
        %v523 = vpop.permute.xlu0 %522
        %524 = vrot.lane.b32.xlu0 %v452, 4
        %v525 = vpop.permute.xlu0 %524
        %526 = vrot.lane.b32.xlu0 %v453, 4
        %v527 = vpop.permute.xlu0 %526
        %528 = vrot.lane.b32.xlu0 %v454, 4
        %v529 = vpop.permute.xlu0 %528
        %530 = vrot.lane.b32.xlu0 %v455, 4
        %v531 = vpop.permute.xlu0 %530
        %532 = vrot.lane.b32.xlu0 %v456, 4
        %v533 = vpop.permute.xlu0 %532
        %534 = vrot.lane.b32.xlu0 %v457, 4
        %v535 = vpop.permute.xlu0 %534
        %536 = vrot.lane.b32.xlu0 %v458, 4
        %v537 = vpop.permute.xlu0 %536
        %538 = vrot.lane.b32.xlu0 %v459, 4
        %v539 = vpop.permute.xlu0 %538
        %540 = vrot.lane.b32.xlu0 %v460, 4
        %v541 = vpop.permute.xlu0 %540
        %542 = vrot.lane.b32.xlu0 %v461, 4
        %v543 = vpop.permute.xlu0 %542
        %544 = vrot.lane.b32.xlu0 %v462, 4
        %v545 = vpop.permute.xlu0 %544
        %546 = vrot.lane.b32.xlu0 %v463, 4
        %v547 = vpop.permute.xlu0 %546
        %548 = vrot.lane.b32.xlu0 %v464, 4
        %v549 = vpop.permute.xlu0 %548
        %550 = vrot.lane.b32.xlu0 %v465, 4
        %v551 = vpop.permute.xlu0 %550
        %552 = vrot.lane.b32.xlu0 %v466, 4
        %v553 = vpop.permute.xlu0 %552
        %554 = vrot.lane.b32.xlu0 %v467, 4
        %v555 = vpop.permute.xlu0 %554
        %556 = vrot.lane.b32.xlu0 %v468, 4
        %v557 = vpop.permute.xlu0 %556
        %558 = vrot.lane.b32.xlu0 %v469, 4
        %v559 = vpop.permute.xlu0 %558
        %560 = vrot.lane.b32.xlu0 %v470, 4
        %v561 = vpop.permute.xlu0 %560
        %562 = vrot.lane.b32.xlu0 %v471, 4
        %v563 = vpop.permute.xlu0 %562
        %564 = vrot.lane.b32.xlu0 %v472, 4
        %v565 = vpop.permute.xlu0 %564
        %566 = vrot.lane.b32.xlu0 %v473, 4
        %v567 = vpop.permute.xlu0 %566
        %568 = vrot.lane.b32.xlu0 %v474, 4
        %v569 = vpop.permute.xlu0 %568
        %570 = vrot.lane.b32.xlu0 %v475, 4
        %v571 = vpop.permute.xlu0 %570
        %vm604 = vcmask 64544
        %605 = vst.msk [vmem:[#allocation4] sm:$0xff] %vm604, %v509
        %606 = vst.msk [vmem:[#allocation4 + $0x8] sm:$0xff] %vm604, %v511
        %607 = vst.msk [vmem:[#allocation4 + $0x10] sm:$0xff] %vm604, %v513
        %608 = vst.msk [vmem:[#allocation4 + $0x18] sm:$0xff] %vm604, %v515
        %609 = vst.msk [vmem:[#allocation4 + $0x20] sm:$0xff] %vm604, %v517
        %610 = vst.msk [vmem:[#allocation4 + $0x28] sm:$0xff] %vm604, %v519
        %611 = vst.msk [vmem:[#allocation4 + $0x30] sm:$0xff] %vm604, %v521
        %612 = vst.msk [vmem:[#allocation4 + $0x38] sm:$0xff] %vm604, %v523
        %613 = vst.msk [vmem:[#allocation4 + $0x40] sm:$0xff] %vm604, %v525
        %614 = vst.msk [vmem:[#allocation4 + $0x48] sm:$0xff] %vm604, %v527
        %615 = vst.msk [vmem:[#allocation4 + $0x50] sm:$0xff] %vm604, %v529
        %616 = vst.msk [vmem:[#allocation4 + $0x58] sm:$0xff] %vm604, %v531
        %617 = vst.msk [vmem:[#allocation4 + $0x60] sm:$0xff] %vm604, %v533
        %618 = vst.msk [vmem:[#allocation4 + $0x68] sm:$0xff] %vm604, %v535
        %619 = vst.msk [vmem:[#allocation4 + $0x70] sm:$0xff] %vm604, %v537
        %620 = vst.msk [vmem:[#allocation4 + $0x78] sm:$0xff] %vm604, %v539
        %621 = vst.msk [vmem:[#allocation4 + $0x80] sm:$0xff] %vm604, %v541
        %622 = vst.msk [vmem:[#allocation4 + $0x88] sm:$0xff] %vm604, %v543
        %623 = vst.msk [vmem:[#allocation4 + $0x90] sm:$0xff] %vm604, %v545
        %624 = vst.msk [vmem:[#allocation4 + $0x98] sm:$0xff] %vm604, %v547
        %625 = vst.msk [vmem:[#allocation4 + $0xa0] sm:$0xff] %vm604, %v549
        %626 = vst.msk [vmem:[#allocation4 + $0xa8] sm:$0xff] %vm604, %v551
        %627 = vst.msk [vmem:[#allocation4 + $0xb0] sm:$0xff] %vm604, %v553
        %628 = vst.msk [vmem:[#allocation4 + $0xb8] sm:$0xff] %vm604, %v555
        %629 = vst.msk [vmem:[#allocation4 + $0xc0] sm:$0xff] %vm604, %v557
        %630 = vst.msk [vmem:[#allocation4 + $0xc8] sm:$0xff] %vm604, %v559
        %631 = vst.msk [vmem:[#allocation4 + $0xd0] sm:$0xff] %vm604, %v561
        %632 = vst.msk [vmem:[#allocation4 + $0xd8] sm:$0xff] %vm604, %v563
        %633 = vst.msk [vmem:[#allocation4 + $0xe0] sm:$0xff] %vm604, %v565
        %634 = vst.msk [vmem:[#allocation4 + $0xe8] sm:$0xff] %vm604, %v567
        %635 = vst.msk [vmem:[#allocation4 + $0xf0] sm:$0xff] %vm604, %v569
        %636 = vst.msk [vmem:[#allocation4 + $0xf8] sm:$0xff] %vm604, %v571
        %v637 = vld [vmem:[#allocation2 + $0x2] sm:$0xff]
        %v638 = vld [vmem:[#allocation2 + $0xa] sm:$0xff]
        %v639 = vld [vmem:[#allocation2 + $0x1a] sm:$0xff]
        %v640 = vld [vmem:[#allocation2 + $0x22] sm:$0xff]
        %v641 = vld [vmem:[#allocation2 + $0x32] sm:$0xff]
        %v642 = vld [vmem:[#allocation2 + $0x3a] sm:$0xff]
        %v643 = vld [vmem:[#allocation2 + $0x4a] sm:$0xff]
        %v644 = vld [vmem:[#allocation2 + $0x52] sm:$0xff]
        %v645 = vld [vmem:[#allocation2 + $0x62] sm:$0xff]
        %v646 = vld [vmem:[#allocation2 + $0x6a] sm:$0xff]
        %v647 = vld [vmem:[#allocation2 + $0x7a] sm:$0xff]
        %v648 = vld [vmem:[#allocation2 + $0x82] sm:$0xff]
        %v649 = vld [vmem:[#allocation2 + $0x92] sm:$0xff]
        %v650 = vld [vmem:[#allocation2 + $0x9a] sm:$0xff]
        %v651 = vld [vmem:[#allocation2 + $0xaa] sm:$0xff]
        %v652 = vld [vmem:[#allocation2 + $0xb2] sm:$0xff]
        %v653 = vld [vmem:[#allocation2 + $0xc2] sm:$0xff]
        %v654 = vld [vmem:[#allocation2 + $0xca] sm:$0xff]
        %v655 = vld [vmem:[#allocation2 + $0xda] sm:$0xff]
        %v656 = vld [vmem:[#allocation2 + $0xe2] sm:$0xff]
        %v657 = vld [vmem:[#allocation2 + $0xf2] sm:$0xff]
        %v658 = vld [vmem:[#allocation2 + $0xfa] sm:$0xff]
        %v659 = vld [vmem:[#allocation2 + $0x10a] sm:$0xff]
        %v660 = vld [vmem:[#allocation2 + $0x112] sm:$0xff]
        %v661 = vld [vmem:[#allocation2 + $0x122] sm:$0xff]
        %v662 = vld [vmem:[#allocation2 + $0x12a] sm:$0xff]
        %v663 = vld [vmem:[#allocation2 + $0x13a] sm:$0xff]
        %v664 = vld [vmem:[#allocation2 + $0x142] sm:$0xff]
        %v665 = vld [vmem:[#allocation2 + $0x152] sm:$0xff]
        %v666 = vld [vmem:[#allocation2 + $0x15a] sm:$0xff]
        %v667 = vld [vmem:[#allocation2 + $0x16a] sm:$0xff]
        %v668 = vld [vmem:[#allocation2 + $0x172] sm:$0xff]
        %701 = vrot.lane.b32.xlu0 %v637, 8
        %v702 = vpop.permute.xlu0 %701
        %703 = vrot.lane.b32.xlu0 %v638, 8
        %v704 = vpop.permute.xlu0 %703
        %705 = vrot.lane.b32.xlu0 %v639, 8
        %v706 = vpop.permute.xlu0 %705
        %707 = vrot.lane.b32.xlu0 %v640, 8
        %v708 = vpop.permute.xlu0 %707
        %709 = vrot.lane.b32.xlu0 %v641, 8
        %v710 = vpop.permute.xlu0 %709
        %711 = vrot.lane.b32.xlu0 %v642, 8
        %v712 = vpop.permute.xlu0 %711
        %713 = vrot.lane.b32.xlu0 %v643, 8
        %v714 = vpop.permute.xlu0 %713
        %715 = vrot.lane.b32.xlu0 %v644, 8
        %v716 = vpop.permute.xlu0 %715
        %717 = vrot.lane.b32.xlu0 %v645, 8
        %v718 = vpop.permute.xlu0 %717
        %719 = vrot.lane.b32.xlu0 %v646, 8
        %v720 = vpop.permute.xlu0 %719
        %721 = vrot.lane.b32.xlu0 %v647, 8
        %v722 = vpop.permute.xlu0 %721
        %723 = vrot.lane.b32.xlu0 %v648, 8
        %v724 = vpop.permute.xlu0 %723
        %725 = vrot.lane.b32.xlu0 %v649, 8
        %v726 = vpop.permute.xlu0 %725
        %727 = vrot.lane.b32.xlu0 %v650, 8
        %v728 = vpop.permute.xlu0 %727
        %729 = vrot.lane.b32.xlu0 %v651, 8
        %v730 = vpop.permute.xlu0 %729
        %731 = vrot.lane.b32.xlu0 %v652, 8
        %v732 = vpop.permute.xlu0 %731
        %733 = vrot.lane.b32.xlu0 %v653, 8
        %v734 = vpop.permute.xlu0 %733
        %735 = vrot.lane.b32.xlu0 %v654, 8
        %v736 = vpop.permute.xlu0 %735
        %737 = vrot.lane.b32.xlu0 %v655, 8
        %v738 = vpop.permute.xlu0 %737
        %739 = vrot.lane.b32.xlu0 %v656, 8
        %v740 = vpop.permute.xlu0 %739
        %741 = vrot.lane.b32.xlu0 %v657, 8
        %v742 = vpop.permute.xlu0 %741
        %743 = vrot.lane.b32.xlu0 %v658, 8
        %v744 = vpop.permute.xlu0 %743
        %745 = vrot.lane.b32.xlu0 %v659, 8
        %v746 = vpop.permute.xlu0 %745
        %747 = vrot.lane.b32.xlu0 %v660, 8
        %v748 = vpop.permute.xlu0 %747
        %749 = vrot.lane.b32.xlu0 %v661, 8
        %v750 = vpop.permute.xlu0 %749
        %751 = vrot.lane.b32.xlu0 %v662, 8
        %v752 = vpop.permute.xlu0 %751
        %753 = vrot.lane.b32.xlu0 %v663, 8
        %v754 = vpop.permute.xlu0 %753
        %755 = vrot.lane.b32.xlu0 %v664, 8
        %v756 = vpop.permute.xlu0 %755
        %757 = vrot.lane.b32.xlu0 %v665, 8
        %v758 = vpop.permute.xlu0 %757
        %759 = vrot.lane.b32.xlu0 %v666, 8
        %v760 = vpop.permute.xlu0 %759
        %761 = vrot.lane.b32.xlu0 %v667, 8
        %v762 = vpop.permute.xlu0 %761
        %763 = vrot.lane.b32.xlu0 %v668, 8
        %v764 = vpop.permute.xlu0 %763
        %vm797 = vcmask 97344
        %798 = vst.msk [vmem:[#allocation4] sm:$0xff] %vm797, %v702
        %799 = vst.msk [vmem:[#allocation4 + $0x8] sm:$0xff] %vm797, %v704
        %800 = vst.msk [vmem:[#allocation4 + $0x10] sm:$0xff] %vm797, %v706
        %801 = vst.msk [vmem:[#allocation4 + $0x18] sm:$0xff] %vm797, %v708
        %802 = vst.msk [vmem:[#allocation4 + $0x20] sm:$0xff] %vm797, %v710
        %803 = vst.msk [vmem:[#allocation4 + $0x28] sm:$0xff] %vm797, %v712
        %804 = vst.msk [vmem:[#allocation4 + $0x30] sm:$0xff] %vm797, %v714
        %805 = vst.msk [vmem:[#allocation4 + $0x38] sm:$0xff] %vm797, %v716
        %806 = vst.msk [vmem:[#allocation4 + $0x40] sm:$0xff] %vm797, %v718
        %807 = vst.msk [vmem:[#allocation4 + $0x48] sm:$0xff] %vm797, %v720
        %808 = vst.msk [vmem:[#allocation4 + $0x50] sm:$0xff] %vm797, %v722
        %809 = vst.msk [vmem:[#allocation4 + $0x58] sm:$0xff] %vm797, %v724
        %810 = vst.msk [vmem:[#allocation4 + $0x60] sm:$0xff] %vm797, %v726
        %811 = vst.msk [vmem:[#allocation4 + $0x68] sm:$0xff] %vm797, %v728
        %812 = vst.msk [vmem:[#allocation4 + $0x70] sm:$0xff] %vm797, %v730
        %813 = vst.msk [vmem:[#allocation4 + $0x78] sm:$0xff] %vm797, %v732
        %814 = vst.msk [vmem:[#allocation4 + $0x80] sm:$0xff] %vm797, %v734
        %815 = vst.msk [vmem:[#allocation4 + $0x88] sm:$0xff] %vm797, %v736
        %816 = vst.msk [vmem:[#allocation4 + $0x90] sm:$0xff] %vm797, %v738
        %817 = vst.msk [vmem:[#allocation4 + $0x98] sm:$0xff] %vm797, %v740
        %818 = vst.msk [vmem:[#allocation4 + $0xa0] sm:$0xff] %vm797, %v742
        %819 = vst.msk [vmem:[#allocation4 + $0xa8] sm:$0xff] %vm797, %v744
        %820 = vst.msk [vmem:[#allocation4 + $0xb0] sm:$0xff] %vm797, %v746
        %821 = vst.msk [vmem:[#allocation4 + $0xb8] sm:$0xff] %vm797, %v748
        %822 = vst.msk [vmem:[#allocation4 + $0xc0] sm:$0xff] %vm797, %v750
        %823 = vst.msk [vmem:[#allocation4 + $0xc8] sm:$0xff] %vm797, %v752
        %824 = vst.msk [vmem:[#allocation4 + $0xd0] sm:$0xff] %vm797, %v754
        %825 = vst.msk [vmem:[#allocation4 + $0xd8] sm:$0xff] %vm797, %v756
        %826 = vst.msk [vmem:[#allocation4 + $0xe0] sm:$0xff] %vm797, %v758
        %827 = vst.msk [vmem:[#allocation4 + $0xe8] sm:$0xff] %vm797, %v760
        %828 = vst.msk [vmem:[#allocation4 + $0xf0] sm:$0xff] %vm797, %v762
        %829 = vst.msk [vmem:[#allocation4 + $0xf8] sm:$0xff] %vm797, %v764
        %v830 = vld [vmem:[%s341] sm:$0xff]
        %v831 = vld [vmem:[%s341 + $0x8] sm:$0xff]
        %v832 = vld [vmem:[%s341 + $0x18] sm:$0xff]
        %v833 = vld [vmem:[%s341 + $0x20] sm:$0xff]
        %v834 = vld [vmem:[%s341 + $0x30] sm:$0xff]
        %v835 = vld [vmem:[%s341 + $0x38] sm:$0xff]
        %v836 = vld [vmem:[%s341 + $0x48] sm:$0xff]
        %v837 = vld [vmem:[%s341 + $0x50] sm:$0xff]
        %v838 = vld [vmem:[%s341 + $0x60] sm:$0xff]
        %v839 = vld [vmem:[%s341 + $0x68] sm:$0xff]
        %v840 = vld [vmem:[%s341 + $0x78] sm:$0xff]
        %v841 = vld [vmem:[%s341 + $0x80] sm:$0xff]
        %v842 = vld [vmem:[%s341 + $0x90] sm:$0xff]
        %v843 = vld [vmem:[%s341 + $0x98] sm:$0xff]
        %v844 = vld [vmem:[%s341 + $0xa8] sm:$0xff]
        %v845 = vld [vmem:[%s341 + $0xb0] sm:$0xff]
        %v846 = vld [vmem:[%s341 + $0xc0] sm:$0xff]
        %v847 = vld [vmem:[%s341 + $0xc8] sm:$0xff]
        %v848 = vld [vmem:[%s341 + $0xd8] sm:$0xff]
        %v849 = vld [vmem:[%s341 + $0xe0] sm:$0xff]
        %v850 = vld [vmem:[%s341 + $0xf0] sm:$0xff]
        %v851 = vld [vmem:[%s341 + $0xf8] sm:$0xff]
        %v852 = vld [vmem:[%s341 + $0x108] sm:$0xff]
        %v853 = vld [vmem:[%s341 + $0x110] sm:$0xff]
        %v854 = vld [vmem:[%s341 + $0x120] sm:$0xff]
        %v855 = vld [vmem:[%s341 + $0x128] sm:$0xff]
        %v856 = vld [vmem:[%s341 + $0x138] sm:$0xff]
        %v857 = vld [vmem:[%s341 + $0x140] sm:$0xff]
        %v858 = vld [vmem:[%s341 + $0x150] sm:$0xff]
        %v859 = vld [vmem:[%s341 + $0x158] sm:$0xff]
        %v860 = vld [vmem:[%s341 + $0x168] sm:$0xff]
        %v861 = vld [vmem:[%s341 + $0x170] sm:$0xff]
        %894 = vrot.lane.b32.xlu0 %v830, 12
        %v895 = vpop.permute.xlu0 %894
        %896 = vrot.lane.b32.xlu0 %v831, 12
        %v897 = vpop.permute.xlu0 %896
        %898 = vrot.lane.b32.xlu0 %v832, 12
        %v899 = vpop.permute.xlu0 %898
        %900 = vrot.lane.b32.xlu0 %v833, 12
        %v901 = vpop.permute.xlu0 %900
        %902 = vrot.lane.b32.xlu0 %v834, 12
        %v903 = vpop.permute.xlu0 %902
        %904 = vrot.lane.b32.xlu0 %v835, 12
        %v905 = vpop.permute.xlu0 %904
        %906 = vrot.lane.b32.xlu0 %v836, 12
        %v907 = vpop.permute.xlu0 %906
        %908 = vrot.lane.b32.xlu0 %v837, 12
        %v909 = vpop.permute.xlu0 %908
        %910 = vrot.lane.b32.xlu0 %v838, 12
        %v911 = vpop.permute.xlu0 %910
        %912 = vrot.lane.b32.xlu0 %v839, 12
        %v913 = vpop.permute.xlu0 %912
        %914 = vrot.lane.b32.xlu0 %v840, 12
        %v915 = vpop.permute.xlu0 %914
        %916 = vrot.lane.b32.xlu0 %v841, 12
        %v917 = vpop.permute.xlu0 %916
        %918 = vrot.lane.b32.xlu0 %v842, 12
        %v919 = vpop.permute.xlu0 %918
        %920 = vrot.lane.b32.xlu0 %v843, 12
        %v921 = vpop.permute.xlu0 %920
        %922 = vrot.lane.b32.xlu0 %v844, 12
        %v923 = vpop.permute.xlu0 %922
        %924 = vrot.lane.b32.xlu0 %v845, 12
        %v925 = vpop.permute.xlu0 %924
        %926 = vrot.lane.b32.xlu0 %v846, 12
        %v927 = vpop.permute.xlu0 %926
        %928 = vrot.lane.b32.xlu0 %v847, 12
        %v929 = vpop.permute.xlu0 %928
        %930 = vrot.lane.b32.xlu0 %v848, 12
        %v931 = vpop.permute.xlu0 %930
        %932 = vrot.lane.b32.xlu0 %v849, 12
        %v933 = vpop.permute.xlu0 %932
        %934 = vrot.lane.b32.xlu0 %v850, 12
        %v935 = vpop.permute.xlu0 %934
        %936 = vrot.lane.b32.xlu0 %v851, 12
        %v937 = vpop.permute.xlu0 %936
        %938 = vrot.lane.b32.xlu0 %v852, 12
        %v939 = vpop.permute.xlu0 %938
        %940 = vrot.lane.b32.xlu0 %v853, 12
        %v941 = vpop.permute.xlu0 %940
        %942 = vrot.lane.b32.xlu0 %v854, 12
        %v943 = vpop.permute.xlu0 %942
        %944 = vrot.lane.b32.xlu0 %v855, 12
        %v945 = vpop.permute.xlu0 %944
        %946 = vrot.lane.b32.xlu0 %v856, 12
        %v947 = vpop.permute.xlu0 %946
        %948 = vrot.lane.b32.xlu0 %v857, 12
        %v949 = vpop.permute.xlu0 %948
        %950 = vrot.lane.b32.xlu0 %v858, 12
        %v951 = vpop.permute.xlu0 %950
        %952 = vrot.lane.b32.xlu0 %v859, 12
        %v953 = vpop.permute.xlu0 %952
        %954 = vrot.lane.b32.xlu0 %v860, 12
        %v955 = vpop.permute.xlu0 %954
        %956 = vrot.lane.b32.xlu0 %v861, 12
        %v957 = vpop.permute.xlu0 %956
        %vm990 = vcmask 130144
        %991 = vst.msk [vmem:[#allocation4] sm:$0xff] %vm990, %v895
        %992 = vst.msk [vmem:[#allocation4 + $0x8] sm:$0xff] %vm990, %v897
        %993 = vst.msk [vmem:[#allocation4 + $0x10] sm:$0xff] %vm990, %v899
        %994 = vst.msk [vmem:[#allocation4 + $0x18] sm:$0xff] %vm990, %v901
        %995 = vst.msk [vmem:[#allocation4 + $0x20] sm:$0xff] %vm990, %v903
        %996 = vst.msk [vmem:[#allocation4 + $0x28] sm:$0xff] %vm990, %v905
        %997 = vst.msk [vmem:[#allocation4 + $0x30] sm:$0xff] %vm990, %v907
        %998 = vst.msk [vmem:[#allocation4 + $0x38] sm:$0xff] %vm990, %v909
        %999 = vst.msk [vmem:[#allocation4 + $0x40] sm:$0xff] %vm990, %v911
        %1000 = vst.msk [vmem:[#allocation4 + $0x48] sm:$0xff] %vm990, %v913
        %1001 = vst.msk [vmem:[#allocation4 + $0x50] sm:$0xff] %vm990, %v915
        %1002 = vst.msk [vmem:[#allocation4 + $0x58] sm:$0xff] %vm990, %v917
        %1003 = vst.msk [vmem:[#allocation4 + $0x60] sm:$0xff] %vm990, %v919
        %1004 = vst.msk [vmem:[#allocation4 + $0x68] sm:$0xff] %vm990, %v921
        %1005 = vst.msk [vmem:[#allocation4 + $0x70] sm:$0xff] %vm990, %v923
        %1006 = vst.msk [vmem:[#allocation4 + $0x78] sm:$0xff] %vm990, %v925
        %1007 = vst.msk [vmem:[#allocation4 + $0x80] sm:$0xff] %vm990, %v927
        %1008 = vst.msk [vmem:[#allocation4 + $0x88] sm:$0xff] %vm990, %v929
        %1009 = vst.msk [vmem:[#allocation4 + $0x90] sm:$0xff] %vm990, %v931
        %1010 = vst.msk [vmem:[#allocation4 + $0x98] sm:$0xff] %vm990, %v933
        %1011 = vst.msk [vmem:[#allocation4 + $0xa0] sm:$0xff] %vm990, %v935
        %1012 = vst.msk [vmem:[#allocation4 + $0xa8] sm:$0xff] %vm990, %v937
        %1013 = vst.msk [vmem:[#allocation4 + $0xb0] sm:$0xff] %vm990, %v939
        %1014 = vst.msk [vmem:[#allocation4 + $0xb8] sm:$0xff] %vm990, %v941
        %1015 = vst.msk [vmem:[#allocation4 + $0xc0] sm:$0xff] %vm990, %v943
        %1016 = vst.msk [vmem:[#allocation4 + $0xc8] sm:$0xff] %vm990, %v945
        %1017 = vst.msk [vmem:[#allocation4 + $0xd0] sm:$0xff] %vm990, %v947
        %1018 = vst.msk [vmem:[#allocation4 + $0xd8] sm:$0xff] %vm990, %v949
        %1019 = vst.msk [vmem:[#allocation4 + $0xe0] sm:$0xff] %vm990, %v951
        %1020 = vst.msk [vmem:[#allocation4 + $0xe8] sm:$0xff] %vm990, %v953
        %1021 = vst.msk [vmem:[#allocation4 + $0xf0] sm:$0xff] %vm990, %v955
        %1022 = vst.msk [vmem:[#allocation4 + $0xf8] sm:$0xff] %vm990, %v957
        %v1023 = vld [vmem:[%s341 + $0x1] sm:$0xff]
        %v1024 = vld [vmem:[%s341 + $0x9] sm:$0xff]
        %v1025 = vld [vmem:[%s341 + $0x19] sm:$0xff]
        %v1026 = vld [vmem:[%s341 + $0x21] sm:$0xff]
        %v1027 = vld [vmem:[%s341 + $0x31] sm:$0xff]
        %v1028 = vld [vmem:[%s341 + $0x39] sm:$0xff]
        %v1029 = vld [vmem:[%s341 + $0x49] sm:$0xff]
        %v1030 = vld [vmem:[%s341 + $0x51] sm:$0xff]
        %v1031 = vld [vmem:[%s341 + $0x61] sm:$0xff]
        %v1032 = vld [vmem:[%s341 + $0x69] sm:$0xff]
        %v1033 = vld [vmem:[%s341 + $0x79] sm:$0xff]
        %v1034 = vld [vmem:[%s341 + $0x81] sm:$0xff]
        %v1035 = vld [vmem:[%s341 + $0x91] sm:$0xff]
        %v1036 = vld [vmem:[%s341 + $0x99] sm:$0xff]
        %v1037 = vld [vmem:[%s341 + $0xa9] sm:$0xff]
        %v1038 = vld [vmem:[%s341 + $0xb1] sm:$0xff]
        %v1039 = vld [vmem:[%s341 + $0xc1] sm:$0xff]
        %v1040 = vld [vmem:[%s341 + $0xc9] sm:$0xff]
        %v1041 = vld [vmem:[%s341 + $0xd9] sm:$0xff]
        %v1042 = vld [vmem:[%s341 + $0xe1] sm:$0xff]
        %v1043 = vld [vmem:[%s341 + $0xf1] sm:$0xff]
        %v1044 = vld [vmem:[%s341 + $0xf9] sm:$0xff]
        %v1045 = vld [vmem:[%s341 + $0x109] sm:$0xff]
        %v1046 = vld [vmem:[%s341 + $0x111] sm:$0xff]
        %v1047 = vld [vmem:[%s341 + $0x121] sm:$0xff]
        %v1048 = vld [vmem:[%s341 + $0x129] sm:$0xff]
        %v1049 = vld [vmem:[%s341 + $0x139] sm:$0xff]
        %v1050 = vld [vmem:[%s341 + $0x141] sm:$0xff]
        %v1051 = vld [vmem:[%s341 + $0x151] sm:$0xff]
        %v1052 = vld [vmem:[%s341 + $0x159] sm:$0xff]
        %v1053 = vld [vmem:[%s341 + $0x169] sm:$0xff]
        %v1054 = vld [vmem:[%s341 + $0x171] sm:$0xff]
        %1087 = vrot.lane.b32.xlu0 %v1023, 16
        %v1088 = vpop.permute.xlu0 %1087
        %1089 = vrot.lane.b32.xlu0 %v1024, 16
        %v1090 = vpop.permute.xlu0 %1089
        %1091 = vrot.lane.b32.xlu0 %v1025, 16
        %v1092 = vpop.permute.xlu0 %1091
        %1093 = vrot.lane.b32.xlu0 %v1026, 16
        %v1094 = vpop.permute.xlu0 %1093
        %1095 = vrot.lane.b32.xlu0 %v1027, 16
        %v1096 = vpop.permute.xlu0 %1095
        %1097 = vrot.lane.b32.xlu0 %v1028, 16
        %v1098 = vpop.permute.xlu0 %1097
        %1099 = vrot.lane.b32.xlu0 %v1029, 16
        %v1100 = vpop.permute.xlu0 %1099
        %1101 = vrot.lane.b32.xlu0 %v1030, 16
        %v1102 = vpop.permute.xlu0 %1101
        %1103 = vrot.lane.b32.xlu0 %v1031, 16
        %v1104 = vpop.permute.xlu0 %1103
        %1105 = vrot.lane.b32.xlu0 %v1032, 16
        %v1106 = vpop.permute.xlu0 %1105
        %1107 = vrot.lane.b32.xlu0 %v1033, 16
        %v1108 = vpop.permute.xlu0 %1107
        %1109 = vrot.lane.b32.xlu0 %v1034, 16
        %v1110 = vpop.permute.xlu0 %1109
        %1111 = vrot.lane.b32.xlu0 %v1035, 16
        %v1112 = vpop.permute.xlu0 %1111
        %1113 = vrot.lane.b32.xlu0 %v1036, 16
        %v1114 = vpop.permute.xlu0 %1113
        %1115 = vrot.lane.b32.xlu0 %v1037, 16
        %v1116 = vpop.permute.xlu0 %1115
        %1117 = vrot.lane.b32.xlu0 %v1038, 16
        %v1118 = vpop.permute.xlu0 %1117
        %1119 = vrot.lane.b32.xlu0 %v1039, 16
        %v1120 = vpop.permute.xlu0 %1119
        %1121 = vrot.lane.b32.xlu0 %v1040, 16
        %v1122 = vpop.permute.xlu0 %1121
        %1123 = vrot.lane.b32.xlu0 %v1041, 16
        %v1124 = vpop.permute.xlu0 %1123
        %1125 = vrot.lane.b32.xlu0 %v1042, 16
        %v1126 = vpop.permute.xlu0 %1125
        %1127 = vrot.lane.b32.xlu0 %v1043, 16
        %v1128 = vpop.permute.xlu0 %1127
        %1129 = vrot.lane.b32.xlu0 %v1044, 16
        %v1130 = vpop.permute.xlu0 %1129
        %1131 = vrot.lane.b32.xlu0 %v1045, 16
        %v1132 = vpop.permute.xlu0 %1131
        %1133 = vrot.lane.b32.xlu0 %v1046, 16
        %v1134 = vpop.permute.xlu0 %1133
        %1135 = vrot.lane.b32.xlu0 %v1047, 16
        %v1136 = vpop.permute.xlu0 %1135
        %1137 = vrot.lane.b32.xlu0 %v1048, 16
        %v1138 = vpop.permute.xlu0 %1137
        %1139 = vrot.lane.b32.xlu0 %v1049, 16
        %v1140 = vpop.permute.xlu0 %1139
        %1141 = vrot.lane.b32.xlu0 %v1050, 16
        %v1142 = vpop.permute.xlu0 %1141
        %1143 = vrot.lane.b32.xlu0 %v1051, 16
        %v1144 = vpop.permute.xlu0 %1143
        %1145 = vrot.lane.b32.xlu0 %v1052, 16
        %v1146 = vpop.permute.xlu0 %1145
        %1147 = vrot.lane.b32.xlu0 %v1053, 16
        %v1148 = vpop.permute.xlu0 %1147
        %1149 = vrot.lane.b32.xlu0 %v1054, 16
        %v1150 = vpop.permute.xlu0 %1149
        %vm1183 = vcmask 162944
        %1184 = vst.msk [vmem:[#allocation4] sm:$0xff] %vm1183, %v1088
        %1185 = vst.msk [vmem:[#allocation4 + $0x8] sm:$0xff] %vm1183, %v1090
        %1186 = vst.msk [vmem:[#allocation4 + $0x10] sm:$0xff] %vm1183, %v1092
        %1187 = vst.msk [vmem:[#allocation4 + $0x18] sm:$0xff] %vm1183, %v1094
        %1188 = vst.msk [vmem:[#allocation4 + $0x20] sm:$0xff] %vm1183, %v1096
        %1189 = vst.msk [vmem:[#allocation4 + $0x28] sm:$0xff] %vm1183, %v1098
        %1190 = vst.msk [vmem:[#allocation4 + $0x30] sm:$0xff] %vm1183, %v1100
        %1191 = vst.msk [vmem:[#allocation4 + $0x38] sm:$0xff] %vm1183, %v1102
        %1192 = vst.msk [vmem:[#allocation4 + $0x40] sm:$0xff] %vm1183, %v1104
        %1193 = vst.msk [vmem:[#allocation4 + $0x48] sm:$0xff] %vm1183, %v1106
        %1194 = vst.msk [vmem:[#allocation4 + $0x50] sm:$0xff] %vm1183, %v1108
        %1195 = vst.msk [vmem:[#allocation4 + $0x58] sm:$0xff] %vm1183, %v1110
        %1196 = vst.msk [vmem:[#allocation4 + $0x60] sm:$0xff] %vm1183, %v1112
        %1197 = vst.msk [vmem:[#allocation4 + $0x68] sm:$0xff] %vm1183, %v1114
        %1198 = vst.msk [vmem:[#allocation4 + $0x70] sm:$0xff] %vm1183, %v1116
        %1199 = vst.msk [vmem:[#allocation4 + $0x78] sm:$0xff] %vm1183, %v1118
        %1200 = vst.msk [vmem:[#allocation4 + $0x80] sm:$0xff] %vm1183, %v1120
        %1201 = vst.msk [vmem:[#allocation4 + $0x88] sm:$0xff] %vm1183, %v1122
        %1202 = vst.msk [vmem:[#allocation4 + $0x90] sm:$0xff] %vm1183, %v1124
        %1203 = vst.msk [vmem:[#allocation4 + $0x98] sm:$0xff] %vm1183, %v1126
        %1204 = vst.msk [vmem:[#allocation4 + $0xa0] sm:$0xff] %vm1183, %v1128
        %1205 = vst.msk [vmem:[#allocation4 + $0xa8] sm:$0xff] %vm1183, %v1130
        %1206 = vst.msk [vmem:[#allocation4 + $0xb0] sm:$0xff] %vm1183, %v1132
        %1207 = vst.msk [vmem:[#allocation4 + $0xb8] sm:$0xff] %vm1183, %v1134
        %1208 = vst.msk [vmem:[#allocation4 + $0xc0] sm:$0xff] %vm1183, %v1136
        %1209 = vst.msk [vmem:[#allocation4 + $0xc8] sm:$0xff] %vm1183, %v1138
        %1210 = vst.msk [vmem:[#allocation4 + $0xd0] sm:$0xff] %vm1183, %v1140
        %1211 = vst.msk [vmem:[#allocation4 + $0xd8] sm:$0xff] %vm1183, %v1142
        %1212 = vst.msk [vmem:[#allocation4 + $0xe0] sm:$0xff] %vm1183, %v1144
        %1213 = vst.msk [vmem:[#allocation4 + $0xe8] sm:$0xff] %vm1183, %v1146
        %1214 = vst.msk [vmem:[#allocation4 + $0xf0] sm:$0xff] %vm1183, %v1148
        %1215 = vst.msk [vmem:[#allocation4 + $0xf8] sm:$0xff] %vm1183, %v1150
        %v1216 = vld [vmem:[%s341 + $0x2] sm:$0xff]
        %v1217 = vld [vmem:[%s341 + $0xa] sm:$0xff]
        %v1218 = vld [vmem:[%s341 + $0x1a] sm:$0xff]
        %v1219 = vld [vmem:[%s341 + $0x22] sm:$0xff]
        %v1220 = vld [vmem:[%s341 + $0x32] sm:$0xff]
        %v1221 = vld [vmem:[%s341 + $0x3a] sm:$0xff]
        %v1222 = vld [vmem:[%s341 + $0x4a] sm:$0xff]
        %v1223 = vld [vmem:[%s341 + $0x52] sm:$0xff]
        %v1224 = vld [vmem:[%s341 + $0x62] sm:$0xff]
        %v1225 = vld [vmem:[%s341 + $0x6a] sm:$0xff]
        %v1226 = vld [vmem:[%s341 + $0x7a] sm:$0xff]
        %v1227 = vld [vmem:[%s341 + $0x82] sm:$0xff]
        %v1228 = vld [vmem:[%s341 + $0x92] sm:$0xff]
        %v1229 = vld [vmem:[%s341 + $0x9a] sm:$0xff]
        %v1230 = vld [vmem:[%s341 + $0xaa] sm:$0xff]
        %v1231 = vld [vmem:[%s341 + $0xb2] sm:$0xff]
        %v1232 = vld [vmem:[%s341 + $0xc2] sm:$0xff]
        %v1233 = vld [vmem:[%s341 + $0xca] sm:$0xff]
        %v1234 = vld [vmem:[%s341 + $0xda] sm:$0xff]
        %v1235 = vld [vmem:[%s341 + $0xe2] sm:$0xff]
        %v1236 = vld [vmem:[%s341 + $0xf2] sm:$0xff]
        %v1237 = vld [vmem:[%s341 + $0xfa] sm:$0xff]
        %v1238 = vld [vmem:[%s341 + $0x10a] sm:$0xff]
        %v1239 = vld [vmem:[%s341 + $0x112] sm:$0xff]
        %v1240 = vld [vmem:[%s341 + $0x122] sm:$0xff]
        %v1241 = vld [vmem:[%s341 + $0x12a] sm:$0xff]
        %v1242 = vld [vmem:[%s341 + $0x13a] sm:$0xff]
        %v1243 = vld [vmem:[%s341 + $0x142] sm:$0xff]
        %v1244 = vld [vmem:[%s341 + $0x152] sm:$0xff]
        %v1245 = vld [vmem:[%s341 + $0x15a] sm:$0xff]
        %v1246 = vld [vmem:[%s341 + $0x16a] sm:$0xff]
        %v1247 = vld [vmem:[%s341 + $0x172] sm:$0xff]
        %1280 = vrot.lane.b32.xlu0 %v1216, 20
        %v1281 = vpop.permute.xlu0 %1280
        %1282 = vrot.lane.b32.xlu0 %v1217, 20
        %v1283 = vpop.permute.xlu0 %1282
        %1284 = vrot.lane.b32.xlu0 %v1218, 20
        %v1285 = vpop.permute.xlu0 %1284
        %1286 = vrot.lane.b32.xlu0 %v1219, 20
        %v1287 = vpop.permute.xlu0 %1286
        %1288 = vrot.lane.b32.xlu0 %v1220, 20
        %v1289 = vpop.permute.xlu0 %1288
        %1290 = vrot.lane.b32.xlu0 %v1221, 20
        %v1291 = vpop.permute.xlu0 %1290
        %1292 = vrot.lane.b32.xlu0 %v1222, 20
        %v1293 = vpop.permute.xlu0 %1292
        %1294 = vrot.lane.b32.xlu0 %v1223, 20
        %v1295 = vpop.permute.xlu0 %1294
        %1296 = vrot.lane.b32.xlu0 %v1224, 20
        %v1297 = vpop.permute.xlu0 %1296
        %1298 = vrot.lane.b32.xlu0 %v1225, 20
        %v1299 = vpop.permute.xlu0 %1298
        %1300 = vrot.lane.b32.xlu0 %v1226, 20
        %v1301 = vpop.permute.xlu0 %1300
        %1302 = vrot.lane.b32.xlu0 %v1227, 20
        %v1303 = vpop.permute.xlu0 %1302
        %1304 = vrot.lane.b32.xlu0 %v1228, 20
        %v1305 = vpop.permute.xlu0 %1304
        %1306 = vrot.lane.b32.xlu0 %v1229, 20
        %v1307 = vpop.permute.xlu0 %1306
        %1308 = vrot.lane.b32.xlu0 %v1230, 20
        %v1309 = vpop.permute.xlu0 %1308
        %1310 = vrot.lane.b32.xlu0 %v1231, 20
        %v1311 = vpop.permute.xlu0 %1310
        %1312 = vrot.lane.b32.xlu0 %v1232, 20
        %v1313 = vpop.permute.xlu0 %1312
        %1314 = vrot.lane.b32.xlu0 %v1233, 20
        %v1315 = vpop.permute.xlu0 %1314
        %1316 = vrot.lane.b32.xlu0 %v1234, 20
        %v1317 = vpop.permute.xlu0 %1316
        %1318 = vrot.lane.b32.xlu0 %v1235, 20
        %v1319 = vpop.permute.xlu0 %1318
        %1320 = vrot.lane.b32.xlu0 %v1236, 20
        %v1321 = vpop.permute.xlu0 %1320
        %1322 = vrot.lane.b32.xlu0 %v1237, 20
        %v1323 = vpop.permute.xlu0 %1322
        %1324 = vrot.lane.b32.xlu0 %v1238, 20
        %v1325 = vpop.permute.xlu0 %1324
        %1326 = vrot.lane.b32.xlu0 %v1239, 20
        %v1327 = vpop.permute.xlu0 %1326
        %1328 = vrot.lane.b32.xlu0 %v1240, 20
        %v1329 = vpop.permute.xlu0 %1328
        %1330 = vrot.lane.b32.xlu0 %v1241, 20
        %v1331 = vpop.permute.xlu0 %1330
        %1332 = vrot.lane.b32.xlu0 %v1242, 20
        %v1333 = vpop.permute.xlu0 %1332
        %1334 = vrot.lane.b32.xlu0 %v1243, 20
        %v1335 = vpop.permute.xlu0 %1334
        %1336 = vrot.lane.b32.xlu0 %v1244, 20
        %v1337 = vpop.permute.xlu0 %1336
        %1338 = vrot.lane.b32.xlu0 %v1245, 20
        %v1339 = vpop.permute.xlu0 %1338
        %1340 = vrot.lane.b32.xlu0 %v1246, 20
        %v1341 = vpop.permute.xlu0 %1340
        %1342 = vrot.lane.b32.xlu0 %v1247, 20
        %v1343 = vpop.permute.xlu0 %1342
        %vm1376 = vcmask 195744
        %1377 = vst.msk [vmem:[#allocation4] sm:$0xff] %vm1376, %v1281
        %1378 = vst.msk [vmem:[#allocation4 + $0x8] sm:$0xff] %vm1376, %v1283
        %1379 = vst.msk [vmem:[#allocation4 + $0x10] sm:$0xff] %vm1376, %v1285
        %1380 = vst.msk [vmem:[#allocation4 + $0x18] sm:$0xff] %vm1376, %v1287
        %1381 = vst.msk [vmem:[#allocation4 + $0x20] sm:$0xff] %vm1376, %v1289
        %1382 = vst.msk [vmem:[#allocation4 + $0x28] sm:$0xff] %vm1376, %v1291
        %1383 = vst.msk [vmem:[#allocation4 + $0x30] sm:$0xff] %vm1376, %v1293
        %1384 = vst.msk [vmem:[#allocation4 + $0x38] sm:$0xff] %vm1376, %v1295
        %1385 = vst.msk [vmem:[#allocation4 + $0x40] sm:$0xff] %vm1376, %v1297
        %1386 = vst.msk [vmem:[#allocation4 + $0x48] sm:$0xff] %vm1376, %v1299
        %1387 = vst.msk [vmem:[#allocation4 + $0x50] sm:$0xff] %vm1376, %v1301
        %1388 = vst.msk [vmem:[#allocation4 + $0x58] sm:$0xff] %vm1376, %v1303
        %1389 = vst.msk [vmem:[#allocation4 + $0x60] sm:$0xff] %vm1376, %v1305
        %1390 = vst.msk [vmem:[#allocation4 + $0x68] sm:$0xff] %vm1376, %v1307
        %1391 = vst.msk [vmem:[#allocation4 + $0x70] sm:$0xff] %vm1376, %v1309
        %1392 = vst.msk [vmem:[#allocation4 + $0x78] sm:$0xff] %vm1376, %v1311
        %1393 = vst.msk [vmem:[#allocation4 + $0x80] sm:$0xff] %vm1376, %v1313
        %1394 = vst.msk [vmem:[#allocation4 + $0x88] sm:$0xff] %vm1376, %v1315
        %1395 = vst.msk [vmem:[#allocation4 + $0x90] sm:$0xff] %vm1376, %v1317
        %1396 = vst.msk [vmem:[#allocation4 + $0x98] sm:$0xff] %vm1376, %v1319
        %1397 = vst.msk [vmem:[#allocation4 + $0xa0] sm:$0xff] %vm1376, %v1321
        %1398 = vst.msk [vmem:[#allocation4 + $0xa8] sm:$0xff] %vm1376, %v1323
        %1399 = vst.msk [vmem:[#allocation4 + $0xb0] sm:$0xff] %vm1376, %v1325
        %1400 = vst.msk [vmem:[#allocation4 + $0xb8] sm:$0xff] %vm1376, %v1327
        %1401 = vst.msk [vmem:[#allocation4 + $0xc0] sm:$0xff] %vm1376, %v1329
        %1402 = vst.msk [vmem:[#allocation4 + $0xc8] sm:$0xff] %vm1376, %v1331
        %1403 = vst.msk [vmem:[#allocation4 + $0xd0] sm:$0xff] %vm1376, %v1333
        %1404 = vst.msk [vmem:[#allocation4 + $0xd8] sm:$0xff] %vm1376, %v1335
        %1405 = vst.msk [vmem:[#allocation4 + $0xe0] sm:$0xff] %vm1376, %v1337
        %1406 = vst.msk [vmem:[#allocation4 + $0xe8] sm:$0xff] %vm1376, %v1339
        %1407 = vst.msk [vmem:[#allocation4 + $0xf0] sm:$0xff] %vm1376, %v1341
        %1408 = vst.msk [vmem:[#allocation4 + $0xf8] sm:$0xff] %vm1376, %v1343
        %s1409 = scalar_lea.vmem [#allocation2], 48
        %v1410 = vld [vmem:[%s1409] sm:$0xff]
        %v1411 = vld [vmem:[%s1409 + $0x8] sm:$0xff]
        %v1412 = vld [vmem:[%s1409 + $0x18] sm:$0xff]
        %v1413 = vld [vmem:[%s1409 + $0x20] sm:$0xff]
        %v1414 = vld [vmem:[%s1409 + $0x30] sm:$0xff]
        %v1415 = vld [vmem:[%s1409 + $0x38] sm:$0xff]
        %v1416 = vld [vmem:[%s1409 + $0x48] sm:$0xff]
        %v1417 = vld [vmem:[%s1409 + $0x50] sm:$0xff]
        %v1418 = vld [vmem:[%s1409 + $0x60] sm:$0xff]
        %v1419 = vld [vmem:[%s1409 + $0x68] sm:$0xff]
        %v1420 = vld [vmem:[%s1409 + $0x78] sm:$0xff]
        %v1421 = vld [vmem:[%s1409 + $0x80] sm:$0xff]
        %v1422 = vld [vmem:[%s1409 + $0x90] sm:$0xff]
        %v1423 = vld [vmem:[%s1409 + $0x98] sm:$0xff]
        %v1424 = vld [vmem:[%s1409 + $0xa8] sm:$0xff]
        %v1425 = vld [vmem:[%s1409 + $0xb0] sm:$0xff]
        %v1426 = vld [vmem:[%s1409 + $0xc0] sm:$0xff]
        %v1427 = vld [vmem:[%s1409 + $0xc8] sm:$0xff]
        %v1428 = vld [vmem:[%s1409 + $0xd8] sm:$0xff]
        %v1429 = vld [vmem:[%s1409 + $0xe0] sm:$0xff]
        %v1430 = vld [vmem:[%s1409 + $0xf0] sm:$0xff]
        %v1431 = vld [vmem:[%s1409 + $0xf8] sm:$0xff]
        %v1432 = vld [vmem:[%s1409 + $0x108] sm:$0xff]
        %v1433 = vld [vmem:[%s1409 + $0x110] sm:$0xff]
        %v1434 = vld [vmem:[%s1409 + $0x120] sm:$0xff]
        %v1435 = vld [vmem:[%s1409 + $0x128] sm:$0xff]
        %v1436 = vld [vmem:[%s1409 + $0x138] sm:$0xff]
        %v1437 = vld [vmem:[%s1409 + $0x140] sm:$0xff]
        %v1438 = vld [vmem:[%s1409 + $0x150] sm:$0xff]
        %v1439 = vld [vmem:[%s1409 + $0x158] sm:$0xff]
        %v1440 = vld [vmem:[%s1409 + $0x168] sm:$0xff]
        %v1441 = vld [vmem:[%s1409 + $0x170] sm:$0xff]
        %1474 = vrot.lane.b32.xlu0 %v1410, 24
        %v1475 = vpop.permute.xlu0 %1474
        %1476 = vrot.lane.b32.xlu0 %v1411, 24
        %v1477 = vpop.permute.xlu0 %1476
        %1478 = vrot.lane.b32.xlu0 %v1412, 24
        %v1479 = vpop.permute.xlu0 %1478
        %1480 = vrot.lane.b32.xlu0 %v1413, 24
        %v1481 = vpop.permute.xlu0 %1480
        %1482 = vrot.lane.b32.xlu0 %v1414, 24
        %v1483 = vpop.permute.xlu0 %1482
        %1484 = vrot.lane.b32.xlu0 %v1415, 24
        %v1485 = vpop.permute.xlu0 %1484
        %1486 = vrot.lane.b32.xlu0 %v1416, 24
        %v1487 = vpop.permute.xlu0 %1486
        %1488 = vrot.lane.b32.xlu0 %v1417, 24
        %v1489 = vpop.permute.xlu0 %1488
        %1490 = vrot.lane.b32.xlu0 %v1418, 24
        %v1491 = vpop.permute.xlu0 %1490
        %1492 = vrot.lane.b32.xlu0 %v1419, 24
        %v1493 = vpop.permute.xlu0 %1492
        %1494 = vrot.lane.b32.xlu0 %v1420, 24
        %v1495 = vpop.permute.xlu0 %1494
        %1496 = vrot.lane.b32.xlu0 %v1421, 24
        %v1497 = vpop.permute.xlu0 %1496
        %1498 = vrot.lane.b32.xlu0 %v1422, 24
        %v1499 = vpop.permute.xlu0 %1498
        %1500 = vrot.lane.b32.xlu0 %v1423, 24
        %v1501 = vpop.permute.xlu0 %1500
        %1502 = vrot.lane.b32.xlu0 %v1424, 24
        %v1503 = vpop.permute.xlu0 %1502
        %1504 = vrot.lane.b32.xlu0 %v1425, 24
        %v1505 = vpop.permute.xlu0 %1504
        %1506 = vrot.lane.b32.xlu0 %v1426, 24
        %v1507 = vpop.permute.xlu0 %1506
        %1508 = vrot.lane.b32.xlu0 %v1427, 24
        %v1509 = vpop.permute.xlu0 %1508
        %1510 = vrot.lane.b32.xlu0 %v1428, 24
        %v1511 = vpop.permute.xlu0 %1510
        %1512 = vrot.lane.b32.xlu0 %v1429, 24
        %v1513 = vpop.permute.xlu0 %1512
        %1514 = vrot.lane.b32.xlu0 %v1430, 24
        %v1515 = vpop.permute.xlu0 %1514
        %1516 = vrot.lane.b32.xlu0 %v1431, 24
        %v1517 = vpop.permute.xlu0 %1516
        %1518 = vrot.lane.b32.xlu0 %v1432, 24
        %v1519 = vpop.permute.xlu0 %1518
        %1520 = vrot.lane.b32.xlu0 %v1433, 24
        %v1521 = vpop.permute.xlu0 %1520
        %1522 = vrot.lane.b32.xlu0 %v1434, 24
        %v1523 = vpop.permute.xlu0 %1522
        %1524 = vrot.lane.b32.xlu0 %v1435, 24
        %v1525 = vpop.permute.xlu0 %1524
        %1526 = vrot.lane.b32.xlu0 %v1436, 24
        %v1527 = vpop.permute.xlu0 %1526
        %1528 = vrot.lane.b32.xlu0 %v1437, 24
        %v1529 = vpop.permute.xlu0 %1528
        %1530 = vrot.lane.b32.xlu0 %v1438, 24
        %v1531 = vpop.permute.xlu0 %1530
        %1532 = vrot.lane.b32.xlu0 %v1439, 24
        %v1533 = vpop.permute.xlu0 %1532
        %1534 = vrot.lane.b32.xlu0 %v1440, 24
        %v1535 = vpop.permute.xlu0 %1534
        %1536 = vrot.lane.b32.xlu0 %v1441, 24
        %v1537 = vpop.permute.xlu0 %1536
        %vm1570 = vcmask 228544
        %1571 = vst.msk [vmem:[#allocation4] sm:$0xff] %vm1570, %v1475
        %1572 = vst.msk [vmem:[#allocation4 + $0x8] sm:$0xff] %vm1570, %v1477
        %1573 = vst.msk [vmem:[#allocation4 + $0x10] sm:$0xff] %vm1570, %v1479
        %1574 = vst.msk [vmem:[#allocation4 + $0x18] sm:$0xff] %vm1570, %v1481
        %1575 = vst.msk [vmem:[#allocation4 + $0x20] sm:$0xff] %vm1570, %v1483
        %1576 = vst.msk [vmem:[#allocation4 + $0x28] sm:$0xff] %vm1570, %v1485
        %1577 = vst.msk [vmem:[#allocation4 + $0x30] sm:$0xff] %vm1570, %v1487
        %1578 = vst.msk [vmem:[#allocation4 + $0x38] sm:$0xff] %vm1570, %v1489
        %1579 = vst.msk [vmem:[#allocation4 + $0x40] sm:$0xff] %vm1570, %v1491
        %1580 = vst.msk [vmem:[#allocation4 + $0x48] sm:$0xff] %vm1570, %v1493
        %1581 = vst.msk [vmem:[#allocation4 + $0x50] sm:$0xff] %vm1570, %v1495
        %1582 = vst.msk [vmem:[#allocation4 + $0x58] sm:$0xff] %vm1570, %v1497
        %1583 = vst.msk [vmem:[#allocation4 + $0x60] sm:$0xff] %vm1570, %v1499
        %1584 = vst.msk [vmem:[#allocation4 + $0x68] sm:$0xff] %vm1570, %v1501
        %1585 = vst.msk [vmem:[#allocation4 + $0x70] sm:$0xff] %vm1570, %v1503
        %1586 = vst.msk [vmem:[#allocation4 + $0x78] sm:$0xff] %vm1570, %v1505
        %1587 = vst.msk [vmem:[#allocation4 + $0x80] sm:$0xff] %vm1570, %v1507
        %1588 = vst.msk [vmem:[#allocation4 + $0x88] sm:$0xff] %vm1570, %v1509
        %1589 = vst.msk [vmem:[#allocation4 + $0x90] sm:$0xff] %vm1570, %v1511
        %1590 = vst.msk [vmem:[#allocation4 + $0x98] sm:$0xff] %vm1570, %v1513
        %1591 = vst.msk [vmem:[#allocation4 + $0xa0] sm:$0xff] %vm1570, %v1515
        %1592 = vst.msk [vmem:[#allocation4 + $0xa8] sm:$0xff] %vm1570, %v1517
        %1593 = vst.msk [vmem:[#allocation4 + $0xb0] sm:$0xff] %vm1570, %v1519
        %1594 = vst.msk [vmem:[#allocation4 + $0xb8] sm:$0xff] %vm1570, %v1521
        %1595 = vst.msk [vmem:[#allocation4 + $0xc0] sm:$0xff] %vm1570, %v1523
        %1596 = vst.msk [vmem:[#allocation4 + $0xc8] sm:$0xff] %vm1570, %v1525
        %1597 = vst.msk [vmem:[#allocation4 + $0xd0] sm:$0xff] %vm1570, %v1527
        %1598 = vst.msk [vmem:[#allocation4 + $0xd8] sm:$0xff] %vm1570, %v1529
        %1599 = vst.msk [vmem:[#allocation4 + $0xe0] sm:$0xff] %vm1570, %v1531
        %1600 = vst.msk [vmem:[#allocation4 + $0xe8] sm:$0xff] %vm1570, %v1533
        %1601 = vst.msk [vmem:[#allocation4 + $0xf0] sm:$0xff] %vm1570, %v1535
        %1602 = vst.msk [vmem:[#allocation4 + $0xf8] sm:$0xff] %vm1570, %v1537
        %v1603 = vld [vmem:[%s1409 + $0x1] sm:$0xff]
        %v1604 = vld [vmem:[%s1409 + $0x9] sm:$0xff]
        %v1605 = vld [vmem:[%s1409 + $0x19] sm:$0xff]
        %v1606 = vld [vmem:[%s1409 + $0x21] sm:$0xff]
        %v1607 = vld [vmem:[%s1409 + $0x31] sm:$0xff]
        %v1608 = vld [vmem:[%s1409 + $0x39] sm:$0xff]
        %v1609 = vld [vmem:[%s1409 + $0x49] sm:$0xff]
        %v1610 = vld [vmem:[%s1409 + $0x51] sm:$0xff]
        %v1611 = vld [vmem:[%s1409 + $0x61] sm:$0xff]
        %v1612 = vld [vmem:[%s1409 + $0x69] sm:$0xff]
        %v1613 = vld [vmem:[%s1409 + $0x79] sm:$0xff]
        %v1614 = vld [vmem:[%s1409 + $0x81] sm:$0xff]
        %v1615 = vld [vmem:[%s1409 + $0x91] sm:$0xff]
        %v1616 = vld [vmem:[%s1409 + $0x99] sm:$0xff]
        %v1617 = vld [vmem:[%s1409 + $0xa9] sm:$0xff]
        %v1618 = vld [vmem:[%s1409 + $0xb1] sm:$0xff]
        %v1619 = vld [vmem:[%s1409 + $0xc1] sm:$0xff]
        %v1620 = vld [vmem:[%s1409 + $0xc9] sm:$0xff]
        %v1621 = vld [vmem:[%s1409 + $0xd9] sm:$0xff]
        %v1622 = vld [vmem:[%s1409 + $0xe1] sm:$0xff]
        %v1623 = vld [vmem:[%s1409 + $0xf1] sm:$0xff]
        %v1624 = vld [vmem:[%s1409 + $0xf9] sm:$0xff]
        %v1625 = vld [vmem:[%s1409 + $0x109] sm:$0xff]
        %v1626 = vld [vmem:[%s1409 + $0x111] sm:$0xff]
        %v1627 = vld [vmem:[%s1409 + $0x121] sm:$0xff]
        %v1628 = vld [vmem:[%s1409 + $0x129] sm:$0xff]
        %v1629 = vld [vmem:[%s1409 + $0x139] sm:$0xff]
        %v1630 = vld [vmem:[%s1409 + $0x141] sm:$0xff]
        %v1631 = vld [vmem:[%s1409 + $0x151] sm:$0xff]
        %v1632 = vld [vmem:[%s1409 + $0x159] sm:$0xff]
        %v1633 = vld [vmem:[%s1409 + $0x169] sm:$0xff]
        %v1634 = vld [vmem:[%s1409 + $0x171] sm:$0xff]
        %1667 = vrot.lane.b32.xlu0 %v1603, 28
        %v1668 = vpop.permute.xlu0 %1667
        %1669 = vrot.lane.b32.xlu0 %v1604, 28
        %v1670 = vpop.permute.xlu0 %1669
        %1671 = vrot.lane.b32.xlu0 %v1605, 28
        %v1672 = vpop.permute.xlu0 %1671
        %1673 = vrot.lane.b32.xlu0 %v1606, 28
        %v1674 = vpop.permute.xlu0 %1673
        %1675 = vrot.lane.b32.xlu0 %v1607, 28
        %v1676 = vpop.permute.xlu0 %1675
        %1677 = vrot.lane.b32.xlu0 %v1608, 28
        %v1678 = vpop.permute.xlu0 %1677
        %1679 = vrot.lane.b32.xlu0 %v1609, 28
        %v1680 = vpop.permute.xlu0 %1679
        %1681 = vrot.lane.b32.xlu0 %v1610, 28
        %v1682 = vpop.permute.xlu0 %1681
        %1683 = vrot.lane.b32.xlu0 %v1611, 28
        %v1684 = vpop.permute.xlu0 %1683
        %1685 = vrot.lane.b32.xlu0 %v1612, 28
        %v1686 = vpop.permute.xlu0 %1685
        %1687 = vrot.lane.b32.xlu0 %v1613, 28
        %v1688 = vpop.permute.xlu0 %1687
        %1689 = vrot.lane.b32.xlu0 %v1614, 28
        %v1690 = vpop.permute.xlu0 %1689
        %1691 = vrot.lane.b32.xlu0 %v1615, 28
        %v1692 = vpop.permute.xlu0 %1691
        %1693 = vrot.lane.b32.xlu0 %v1616, 28
        %v1694 = vpop.permute.xlu0 %1693
        %1695 = vrot.lane.b32.xlu0 %v1617, 28
        %v1696 = vpop.permute.xlu0 %1695
        %1697 = vrot.lane.b32.xlu0 %v1618, 28
        %v1698 = vpop.permute.xlu0 %1697
        %1699 = vrot.lane.b32.xlu0 %v1619, 28
        %v1700 = vpop.permute.xlu0 %1699
        %1701 = vrot.lane.b32.xlu0 %v1620, 28
        %v1702 = vpop.permute.xlu0 %1701
        %1703 = vrot.lane.b32.xlu0 %v1621, 28
        %v1704 = vpop.permute.xlu0 %1703
        %1705 = vrot.lane.b32.xlu0 %v1622, 28
        %v1706 = vpop.permute.xlu0 %1705
        %1707 = vrot.lane.b32.xlu0 %v1623, 28
        %v1708 = vpop.permute.xlu0 %1707
        %1709 = vrot.lane.b32.xlu0 %v1624, 28
        %v1710 = vpop.permute.xlu0 %1709
        %1711 = vrot.lane.b32.xlu0 %v1625, 28
        %v1712 = vpop.permute.xlu0 %1711
        %1713 = vrot.lane.b32.xlu0 %v1626, 28
        %v1714 = vpop.permute.xlu0 %1713
        %1715 = vrot.lane.b32.xlu0 %v1627, 28
        %v1716 = vpop.permute.xlu0 %1715
        %1717 = vrot.lane.b32.xlu0 %v1628, 28
        %v1718 = vpop.permute.xlu0 %1717
        %1719 = vrot.lane.b32.xlu0 %v1629, 28
        %v1720 = vpop.permute.xlu0 %1719
        %1721 = vrot.lane.b32.xlu0 %v1630, 28
        %v1722 = vpop.permute.xlu0 %1721
        %1723 = vrot.lane.b32.xlu0 %v1631, 28
        %v1724 = vpop.permute.xlu0 %1723
        %1725 = vrot.lane.b32.xlu0 %v1632, 28
        %v1726 = vpop.permute.xlu0 %1725
        %1727 = vrot.lane.b32.xlu0 %v1633, 28
        %v1728 = vpop.permute.xlu0 %1727
        %1729 = vrot.lane.b32.xlu0 %v1634, 28
        %v1730 = vpop.permute.xlu0 %1729
        %vm1763 = vcmask 261344
        %1764 = vst.msk [vmem:[#allocation4] sm:$0xff] %vm1763, %v1668
        %1765 = vst.msk [vmem:[#allocation4 + $0x8] sm:$0xff] %vm1763, %v1670
        %1766 = vst.msk [vmem:[#allocation4 + $0x10] sm:$0xff] %vm1763, %v1672
        %1767 = vst.msk [vmem:[#allocation4 + $0x18] sm:$0xff] %vm1763, %v1674
        %1768 = vst.msk [vmem:[#allocation4 + $0x20] sm:$0xff] %vm1763, %v1676
        %1769 = vst.msk [vmem:[#allocation4 + $0x28] sm:$0xff] %vm1763, %v1678
        %1770 = vst.msk [vmem:[#allocation4 + $0x30] sm:$0xff] %vm1763, %v1680
        %1771 = vst.msk [vmem:[#allocation4 + $0x38] sm:$0xff] %vm1763, %v1682
        %1772 = vst.msk [vmem:[#allocation4 + $0x40] sm:$0xff] %vm1763, %v1684
        %1773 = vst.msk [vmem:[#allocation4 + $0x48] sm:$0xff] %vm1763, %v1686
        %1774 = vst.msk [vmem:[#allocation4 + $0x50] sm:$0xff] %vm1763, %v1688
        %1775 = vst.msk [vmem:[#allocation4 + $0x58] sm:$0xff] %vm1763, %v1690
        %1776 = vst.msk [vmem:[#allocation4 + $0x60] sm:$0xff] %vm1763, %v1692
        %1777 = vst.msk [vmem:[#allocation4 + $0x68] sm:$0xff] %vm1763, %v1694
        %1778 = vst.msk [vmem:[#allocation4 + $0x70] sm:$0xff] %vm1763, %v1696
        %1779 = vst.msk [vmem:[#allocation4 + $0x78] sm:$0xff] %vm1763, %v1698
        %1780 = vst.msk [vmem:[#allocation4 + $0x80] sm:$0xff] %vm1763, %v1700
        %1781 = vst.msk [vmem:[#allocation4 + $0x88] sm:$0xff] %vm1763, %v1702
        %1782 = vst.msk [vmem:[#allocation4 + $0x90] sm:$0xff] %vm1763, %v1704
        %1783 = vst.msk [vmem:[#allocation4 + $0x98] sm:$0xff] %vm1763, %v1706
        %1784 = vst.msk [vmem:[#allocation4 + $0xa0] sm:$0xff] %vm1763, %v1708
        %1785 = vst.msk [vmem:[#allocation4 + $0xa8] sm:$0xff] %vm1763, %v1710
        %1786 = vst.msk [vmem:[#allocation4 + $0xb0] sm:$0xff] %vm1763, %v1712
        %1787 = vst.msk [vmem:[#allocation4 + $0xb8] sm:$0xff] %vm1763, %v1714
        %1788 = vst.msk [vmem:[#allocation4 + $0xc0] sm:$0xff] %vm1763, %v1716
        %1789 = vst.msk [vmem:[#allocation4 + $0xc8] sm:$0xff] %vm1763, %v1718
        %1790 = vst.msk [vmem:[#allocation4 + $0xd0] sm:$0xff] %vm1763, %v1720
        %1791 = vst.msk [vmem:[#allocation4 + $0xd8] sm:$0xff] %vm1763, %v1722
        %1792 = vst.msk [vmem:[#allocation4 + $0xe0] sm:$0xff] %vm1763, %v1724
        %1793 = vst.msk [vmem:[#allocation4 + $0xe8] sm:$0xff] %vm1763, %v1726
        %1794 = vst.msk [vmem:[#allocation4 + $0xf0] sm:$0xff] %vm1763, %v1728
        %1795 = vst.msk [vmem:[#allocation4 + $0xf8] sm:$0xff] %vm1763, %v1730
        %v1796 = vld [vmem:[%s1409 + $0x2] sm:$0xff]
        %v1797 = vld [vmem:[%s1409 + $0xa] sm:$0xff]
        %v1798 = vld [vmem:[%s1409 + $0x1a] sm:$0xff]
        %v1799 = vld [vmem:[%s1409 + $0x22] sm:$0xff]
        %v1800 = vld [vmem:[%s1409 + $0x32] sm:$0xff]
        %v1801 = vld [vmem:[%s1409 + $0x3a] sm:$0xff]
        %v1802 = vld [vmem:[%s1409 + $0x4a] sm:$0xff]
        %v1803 = vld [vmem:[%s1409 + $0x52] sm:$0xff]
        %v1804 = vld [vmem:[%s1409 + $0x62] sm:$0xff]
        %v1805 = vld [vmem:[%s1409 + $0x6a] sm:$0xff]
        %v1806 = vld [vmem:[%s1409 + $0x7a] sm:$0xff]
        %v1807 = vld [vmem:[%s1409 + $0x82] sm:$0xff]
        %v1808 = vld [vmem:[%s1409 + $0x92] sm:$0xff]
        %v1809 = vld [vmem:[%s1409 + $0x9a] sm:$0xff]
        %v1810 = vld [vmem:[%s1409 + $0xaa] sm:$0xff]
        %v1811 = vld [vmem:[%s1409 + $0xb2] sm:$0xff]
        %v1812 = vld [vmem:[%s1409 + $0xc2] sm:$0xff]
        %v1813 = vld [vmem:[%s1409 + $0xca] sm:$0xff]
        %v1814 = vld [vmem:[%s1409 + $0xda] sm:$0xff]
        %v1815 = vld [vmem:[%s1409 + $0xe2] sm:$0xff]
        %v1816 = vld [vmem:[%s1409 + $0xf2] sm:$0xff]
        %v1817 = vld [vmem:[%s1409 + $0xfa] sm:$0xff]
        %v1818 = vld [vmem:[%s1409 + $0x10a] sm:$0xff]
        %v1819 = vld [vmem:[%s1409 + $0x112] sm:$0xff]
        %v1820 = vld [vmem:[%s1409 + $0x122] sm:$0xff]
        %v1821 = vld [vmem:[%s1409 + $0x12a] sm:$0xff]
        %v1822 = vld [vmem:[%s1409 + $0x13a] sm:$0xff]
        %v1823 = vld [vmem:[%s1409 + $0x142] sm:$0xff]
        %v1824 = vld [vmem:[%s1409 + $0x152] sm:$0xff]
        %v1825 = vld [vmem:[%s1409 + $0x15a] sm:$0xff]
        %v1826 = vld [vmem:[%s1409 + $0x16a] sm:$0xff]
        %v1827 = vld [vmem:[%s1409 + $0x172] sm:$0xff]
        %1860 = vrot.lane.b32.xlu0 %v1796, 32
        %v1861 = vpop.permute.xlu0 %1860
        %1862 = vrot.lane.b32.xlu0 %v1797, 32
        %v1863 = vpop.permute.xlu0 %1862
        %1864 = vrot.lane.b32.xlu0 %v1798, 32
        %v1865 = vpop.permute.xlu0 %1864
        %1866 = vrot.lane.b32.xlu0 %v1799, 32
        %v1867 = vpop.permute.xlu0 %1866
        %1868 = vrot.lane.b32.xlu0 %v1800, 32
        %v1869 = vpop.permute.xlu0 %1868
        %1870 = vrot.lane.b32.xlu0 %v1801, 32
        %v1871 = vpop.permute.xlu0 %1870
        %1872 = vrot.lane.b32.xlu0 %v1802, 32
        %v1873 = vpop.permute.xlu0 %1872
        %1874 = vrot.lane.b32.xlu0 %v1803, 32
        %v1875 = vpop.permute.xlu0 %1874
        %1876 = vrot.lane.b32.xlu0 %v1804, 32
        %v1877 = vpop.permute.xlu0 %1876
        %1878 = vrot.lane.b32.xlu0 %v1805, 32
        %v1879 = vpop.permute.xlu0 %1878
        %1880 = vrot.lane.b32.xlu0 %v1806, 32
        %v1881 = vpop.permute.xlu0 %1880
        %1882 = vrot.lane.b32.xlu0 %v1807, 32
        %v1883 = vpop.permute.xlu0 %1882
        %1884 = vrot.lane.b32.xlu0 %v1808, 32
        %v1885 = vpop.permute.xlu0 %1884
        %1886 = vrot.lane.b32.xlu0 %v1809, 32
        %v1887 = vpop.permute.xlu0 %1886
        %1888 = vrot.lane.b32.xlu0 %v1810, 32
        %v1889 = vpop.permute.xlu0 %1888
        %1890 = vrot.lane.b32.xlu0 %v1811, 32
        %v1891 = vpop.permute.xlu0 %1890
        %1892 = vrot.lane.b32.xlu0 %v1812, 32
        %v1893 = vpop.permute.xlu0 %1892
        %1894 = vrot.lane.b32.xlu0 %v1813, 32
        %v1895 = vpop.permute.xlu0 %1894
        %1896 = vrot.lane.b32.xlu0 %v1814, 32
        %v1897 = vpop.permute.xlu0 %1896
        %1898 = vrot.lane.b32.xlu0 %v1815, 32
        %v1899 = vpop.permute.xlu0 %1898
        %1900 = vrot.lane.b32.xlu0 %v1816, 32
        %v1901 = vpop.permute.xlu0 %1900
        %1902 = vrot.lane.b32.xlu0 %v1817, 32
        %v1903 = vpop.permute.xlu0 %1902
        %1904 = vrot.lane.b32.xlu0 %v1818, 32
        %v1905 = vpop.permute.xlu0 %1904
        %1906 = vrot.lane.b32.xlu0 %v1819, 32
        %v1907 = vpop.permute.xlu0 %1906
        %1908 = vrot.lane.b32.xlu0 %v1820, 32
        %v1909 = vpop.permute.xlu0 %1908
        %1910 = vrot.lane.b32.xlu0 %v1821, 32
        %v1911 = vpop.permute.xlu0 %1910
        %1912 = vrot.lane.b32.xlu0 %v1822, 32
        %v1913 = vpop.permute.xlu0 %1912
        %1914 = vrot.lane.b32.xlu0 %v1823, 32
        %v1915 = vpop.permute.xlu0 %1914
        %1916 = vrot.lane.b32.xlu0 %v1824, 32
        %v1917 = vpop.permute.xlu0 %1916
        %1918 = vrot.lane.b32.xlu0 %v1825, 32
        %v1919 = vpop.permute.xlu0 %1918
        %1920 = vrot.lane.b32.xlu0 %v1826, 32
        %v1921 = vpop.permute.xlu0 %1920
        %1922 = vrot.lane.b32.xlu0 %v1827, 32
        %v1923 = vpop.permute.xlu0 %1922
        %vm1956 = vcmask 294144
        %1957 = vst.msk [vmem:[#allocation4] sm:$0xff] %vm1956, %v1861
        %1958 = vst.msk [vmem:[#allocation4 + $0x8] sm:$0xff] %vm1956, %v1863
        %1959 = vst.msk [vmem:[#allocation4 + $0x10] sm:$0xff] %vm1956, %v1865
        %1960 = vst.msk [vmem:[#allocation4 + $0x18] sm:$0xff] %vm1956, %v1867
        %1961 = vst.msk [vmem:[#allocation4 + $0x20] sm:$0xff] %vm1956, %v1869
        %1962 = vst.msk [vmem:[#allocation4 + $0x28] sm:$0xff] %vm1956, %v1871
        %1963 = vst.msk [vmem:[#allocation4 + $0x30] sm:$0xff] %vm1956, %v1873
        %1964 = vst.msk [vmem:[#allocation4 + $0x38] sm:$0xff] %vm1956, %v1875
        %1965 = vst.msk [vmem:[#allocation4 + $0x40] sm:$0xff] %vm1956, %v1877
        %1966 = vst.msk [vmem:[#allocation4 + $0x48] sm:$0xff] %vm1956, %v1879
        %1967 = vst.msk [vmem:[#allocation4 + $0x50] sm:$0xff] %vm1956, %v1881
        %1968 = vst.msk [vmem:[#allocation4 + $0x58] sm:$0xff] %vm1956, %v1883
        %1969 = vst.msk [vmem:[#allocation4 + $0x60] sm:$0xff] %vm1956, %v1885
        %1970 = vst.msk [vmem:[#allocation4 + $0x68] sm:$0xff] %vm1956, %v1887
        %1971 = vst.msk [vmem:[#allocation4 + $0x70] sm:$0xff] %vm1956, %v1889
        %1972 = vst.msk [vmem:[#allocation4 + $0x78] sm:$0xff] %vm1956, %v1891
        %1973 = vst.msk [vmem:[#allocation4 + $0x80] sm:$0xff] %vm1956, %v1893
        %1974 = vst.msk [vmem:[#allocation4 + $0x88] sm:$0xff] %vm1956, %v1895
        %1975 = vst.msk [vmem:[#allocation4 + $0x90] sm:$0xff] %vm1956, %v1897
        %1976 = vst.msk [vmem:[#allocation4 + $0x98] sm:$0xff] %vm1956, %v1899
        %1977 = vst.msk [vmem:[#allocation4 + $0xa0] sm:$0xff] %vm1956, %v1901
        %1978 = vst.msk [vmem:[#allocation4 + $0xa8] sm:$0xff] %vm1956, %v1903
        %1979 = vst.msk [vmem:[#allocation4 + $0xb0] sm:$0xff] %vm1956, %v1905
        %1980 = vst.msk [vmem:[#allocation4 + $0xb8] sm:$0xff] %vm1956, %v1907
        %1981 = vst.msk [vmem:[#allocation4 + $0xc0] sm:$0xff] %vm1956, %v1909
        %1982 = vst.msk [vmem:[#allocation4 + $0xc8] sm:$0xff] %vm1956, %v1911
        %1983 = vst.msk [vmem:[#allocation4 + $0xd0] sm:$0xff] %vm1956, %v1913
        %1984 = vst.msk [vmem:[#allocation4 + $0xd8] sm:$0xff] %vm1956, %v1915
        %1985 = vst.msk [vmem:[#allocation4 + $0xe0] sm:$0xff] %vm1956, %v1917
        %1986 = vst.msk [vmem:[#allocation4 + $0xe8] sm:$0xff] %vm1956, %v1919
        %1987 = vst.msk [vmem:[#allocation4 + $0xf0] sm:$0xff] %vm1956, %v1921
        %1988 = vst.msk [vmem:[#allocation4 + $0xf8] sm:$0xff] %vm1956, %v1923
        %v1989 = vld [vmem:[#allocation4] sm:$0xff]
        %v1990 = vld [vmem:[#allocation4 + $0x8] sm:$0xff]
        %v1991 = vld [vmem:[#allocation4 + $0x10] sm:$0xff]
        %v1992 = vld [vmem:[#allocation4 + $0x18] sm:$0xff]
        %v1993 = vld [vmem:[#allocation4 + $0x20] sm:$0xff]
        %v1994 = vld [vmem:[#allocation4 + $0x28] sm:$0xff]
        %v1995 = vld [vmem:[#allocation4 + $0x30] sm:$0xff]
        %v1996 = vld [vmem:[#allocation4 + $0x38] sm:$0xff]
        %v1997 = vld [vmem:[#allocation4 + $0x40] sm:$0xff]
        %v1998 = vld [vmem:[#allocation4 + $0x48] sm:$0xff]
        %v1999 = vld [vmem:[#allocation4 + $0x50] sm:$0xff]
        %v2000 = vld [vmem:[#allocation4 + $0x58] sm:$0xff]
        %v2001 = vld [vmem:[#allocation4 + $0x60] sm:$0xff]
        %v2002 = vld [vmem:[#allocation4 + $0x68] sm:$0xff]
        %v2003 = vld [vmem:[#allocation4 + $0x70] sm:$0xff]
        %v2004 = vld [vmem:[#allocation4 + $0x78] sm:$0xff]
        %v2005 = vld [vmem:[#allocation4 + $0x80] sm:$0xff]
        %v2006 = vld [vmem:[#allocation4 + $0x88] sm:$0xff]
        %v2007 = vld [vmem:[#allocation4 + $0x90] sm:$0xff]
        %v2008 = vld [vmem:[#allocation4 + $0x98] sm:$0xff]
        %v2009 = vld [vmem:[#allocation4 + $0xa0] sm:$0xff]
        %v2010 = vld [vmem:[#allocation4 + $0xa8] sm:$0xff]
        %v2011 = vld [vmem:[#allocation4 + $0xb0] sm:$0xff]
        %v2012 = vld [vmem:[#allocation4 + $0xb8] sm:$0xff]
        %v2013 = vld [vmem:[#allocation4 + $0xc0] sm:$0xff]
        %v2014 = vld [vmem:[#allocation4 + $0xc8] sm:$0xff]
        %v2015 = vld [vmem:[#allocation4 + $0xd0] sm:$0xff]
        %v2016 = vld [vmem:[#allocation4 + $0xd8] sm:$0xff]
        %v2017 = vld [vmem:[#allocation4 + $0xe0] sm:$0xff]
        %v2018 = vld [vmem:[#allocation4 + $0xe8] sm:$0xff]
        %v2019 = vld [vmem:[#allocation4 + $0xf0] sm:$0xff]
        %v2020 = vld [vmem:[#allocation4 + $0xf8] sm:$0xff]
        %v2022 = vperm.slane %v379, 0
        %vm2024 = vcmask 293888
        %v2026 = vsel %vm2024, %v1989, 0
        %v2029 = vsel %vm2024, %v1990, 0
        %v2032 = vsel %vm2024, %v1991, 0
        %v2035 = vsel %vm2024, %v1992, 0
        %v2038 = vsel %vm2024, %v1993, 0
        %v2041 = vsel %vm2024, %v1994, 0
        %v2044 = vsel %vm2024, %v1995, 0
        %v2047 = vsel %vm2024, %v1996, 0
        %v2050 = vsel %vm2024, %v1997, 0
        %v2053 = vsel %vm2024, %v1998, 0
        %v2056 = vsel %vm2024, %v1999, 0
        %v2059 = vsel %vm2024, %v2000, 0
        %v2062 = vsel %vm2024, %v2001, 0
        %v2065 = vsel %vm2024, %v2002, 0
        %v2068 = vsel %vm2024, %v2003, 0
        %v2071 = vsel %vm2024, %v2004, 0
        %v2074 = vsel %vm2024, %v2005, 0
        %v2077 = vsel %vm2024, %v2006, 0
        %v2080 = vsel %vm2024, %v2007, 0
        %v2083 = vsel %vm2024, %v2008, 0
        %v2086 = vsel %vm2024, %v2009, 0
        %v2089 = vsel %vm2024, %v2010, 0
        %v2092 = vsel %vm2024, %v2011, 0
        %v2095 = vsel %vm2024, %v2012, 0
        %v2098 = vsel %vm2024, %v2013, 0
        %v2101 = vsel %vm2024, %v2014, 0
        %v2104 = vsel %vm2024, %v2015, 0
        %v2107 = vsel %vm2024, %v2016, 0
        %v2110 = vsel %vm2024, %v2017, 0
        %v2113 = vsel %vm2024, %v2018, 0
        %v2116 = vsel %vm2024, %v2019, 0
        %v2119 = vsel %vm2024, %v2020, 0
        %vm2121 = vcmask 1043456
        %v2123 = vsel %vm2121, %v378, 0
        %2125 = vmatpush.msra.mxu0 0.0
        %2126 = vmatpush.msra.mxu0 0.0
        %2127 = vmatpush.msra.mxu0 0.0
        %2128 = vmatpush.msra.mxu0 0.0
        %2129 = vmatpush.msra.mxu0 0.0
        %2130 = vmatpush.msra.mxu0 0.0
        %2131 = vmatpush.msra.mxu0 0.0
        %2132 = vmatpush.msra.mxu0 0.0
        %2133 = vmatpush.msra.mxu0 0.0
        %2134 = vmatpush.msra.mxu0 0.0
        %2135 = vmatpush.msra.mxu0 0.0
        %2136 = vmatpush.msra.mxu0 %v2123
        %2137 = vmatpush.msra.mxu0 %v377
        %2138 = vmatpush.msra.mxu0 %v376
        %2139 = vmatpush.msra.mxu0 %v375
        %2140 = vmatpush.msra.mxu0 %v374
        %2141 = vmatmul.f32.gmra.mxu0 %v2026
        %v2142 = vpop.f32.mrf.mxu0
        %v2143 = vadd.f32 %v2022, %v2142
        %2144 = vmatmul.f32.gmra.mxu0 %v2029
        %v2145 = vpop.f32.mrf.mxu0
        %v2146 = vadd.f32 %v2022, %v2145
        %2147 = vmatmul.f32.gmra.mxu0 %v2032
        %v2148 = vpop.f32.mrf.mxu0
        %v2149 = vadd.f32 %v2022, %v2148
        %2150 = vmatmul.f32.gmra.mxu0 %v2035
        %v2151 = vpop.f32.mrf.mxu0
        %v2152 = vadd.f32 %v2022, %v2151
        %2153 = vmatmul.f32.gmra.mxu0 %v2038
        %v2154 = vpop.f32.mrf.mxu0
        %v2155 = vadd.f32 %v2022, %v2154
        %2156 = vmatmul.f32.gmra.mxu0 %v2041
        %v2157 = vpop.f32.mrf.mxu0
        %v2158 = vadd.f32 %v2022, %v2157
        %2159 = vmatmul.f32.gmra.mxu0 %v2044
        %v2160 = vpop.f32.mrf.mxu0
        %v2161 = vadd.f32 %v2022, %v2160
        %2162 = vmatmul.f32.gmra.mxu0 %v2047
        %v2163 = vpop.f32.mrf.mxu0
        %v2164 = vadd.f32 %v2022, %v2163
        %2165 = vmatmul.f32.gmra.mxu0 %v2050
        %v2166 = vpop.f32.mrf.mxu0
        %v2167 = vadd.f32 %v2022, %v2166
        %2168 = vmatmul.f32.gmra.mxu0 %v2053
        %v2169 = vpop.f32.mrf.mxu0
        %v2170 = vadd.f32 %v2022, %v2169
        %2171 = vmatmul.f32.gmra.mxu0 %v2056
        %v2172 = vpop.f32.mrf.mxu0
        %v2173 = vadd.f32 %v2022, %v2172
        %2174 = vmatmul.f32.gmra.mxu0 %v2059
        %v2175 = vpop.f32.mrf.mxu0
        %v2176 = vadd.f32 %v2022, %v2175
        %2177 = vmatmul.f32.gmra.mxu0 %v2062
        %v2178 = vpop.f32.mrf.mxu0
        %v2179 = vadd.f32 %v2022, %v2178
        %2180 = vmatmul.f32.gmra.mxu0 %v2065
        %v2181 = vpop.f32.mrf.mxu0
        %v2182 = vadd.f32 %v2022, %v2181
        %2183 = vmatmul.f32.gmra.mxu0 %v2068
        %v2184 = vpop.f32.mrf.mxu0
        %v2185 = vadd.f32 %v2022, %v2184
        %2186 = vmatmul.f32.gmra.mxu0 %v2071
        %v2187 = vpop.f32.mrf.mxu0
        %v2188 = vadd.f32 %v2022, %v2187
        %2189 = vmatmul.f32.gmra.mxu0 %v2074
        %v2190 = vpop.f32.mrf.mxu0
        %v2191 = vadd.f32 %v2022, %v2190
        %2192 = vmatmul.f32.gmra.mxu0 %v2077
        %v2193 = vpop.f32.mrf.mxu0
        %v2194 = vadd.f32 %v2022, %v2193
        %2195 = vmatmul.f32.gmra.mxu0 %v2080
        %v2196 = vpop.f32.mrf.mxu0
        %v2197 = vadd.f32 %v2022, %v2196
        %2198 = vmatmul.f32.gmra.mxu0 %v2083
        %v2199 = vpop.f32.mrf.mxu0
        %v2200 = vadd.f32 %v2022, %v2199
        %2201 = vmatmul.f32.gmra.mxu0 %v2086
        %v2202 = vpop.f32.mrf.mxu0
        %v2203 = vadd.f32 %v2022, %v2202
        %2204 = vmatmul.f32.gmra.mxu0 %v2089
        %v2205 = vpop.f32.mrf.mxu0
        %v2206 = vadd.f32 %v2022, %v2205
        %2207 = vmatmul.f32.gmra.mxu0 %v2092
        %v2208 = vpop.f32.mrf.mxu0
        %v2209 = vadd.f32 %v2022, %v2208
        %2210 = vmatmul.f32.gmra.mxu0 %v2095
        %v2211 = vpop.f32.mrf.mxu0
        %v2212 = vadd.f32 %v2022, %v2211
        %2213 = vmatmul.f32.gmra.mxu0 %v2098
        %v2214 = vpop.f32.mrf.mxu0
        %v2215 = vadd.f32 %v2022, %v2214
        %2216 = vmatmul.f32.gmra.mxu0 %v2101
        %v2217 = vpop.f32.mrf.mxu0
        %v2218 = vadd.f32 %v2022, %v2217
        %2219 = vmatmul.f32.gmra.mxu0 %v2104
        %v2220 = vpop.f32.mrf.mxu0
        %v2221 = vadd.f32 %v2022, %v2220
        %2222 = vmatmul.f32.gmra.mxu0 %v2107
        %v2223 = vpop.f32.mrf.mxu0
        %v2224 = vadd.f32 %v2022, %v2223
        %2225 = vmatmul.f32.gmra.mxu0 %v2110
        %v2226 = vpop.f32.mrf.mxu0
        %v2227 = vadd.f32 %v2022, %v2226
        %2228 = vmatmul.f32.gmra.mxu0 %v2113
        %v2229 = vpop.f32.mrf.mxu0
        %v2230 = vadd.f32 %v2022, %v2229
        %2231 = vmatmul.f32.gmra.mxu0 %v2116
        %v2232 = vpop.f32.mrf.mxu0
        %v2233 = vadd.f32 %v2022, %v2232
        %2234 = vmatmul.f32.gmra.mxu0 %v2119
        %v2235 = vpop.f32.mrf.mxu0
        %v2236 = vadd.f32 %v2022, %v2235
        %2237 = vdwg.mxu0
        %v2238 = vmax.f32 %v2143, 0.0
        %v2239 = vmax.f32 %v2146, 0.0
        %v2240 = vmax.f32 %v2149, 0.0
        %v2241 = vmax.f32 %v2152, 0.0
        %v2242 = vmax.f32 %v2155, 0.0
        %v2243 = vmax.f32 %v2158, 0.0
        %v2244 = vmax.f32 %v2161, 0.0
        %v2245 = vmax.f32 %v2164, 0.0
        %v2246 = vmax.f32 %v2167, 0.0
        %v2247 = vmax.f32 %v2170, 0.0
        %v2248 = vmax.f32 %v2173, 0.0
        %v2249 = vmax.f32 %v2176, 0.0
        %v2250 = vmax.f32 %v2179, 0.0
        %v2251 = vmax.f32 %v2182, 0.0
        %v2252 = vmax.f32 %v2185, 0.0
        %v2253 = vmax.f32 %v2188, 0.0
        %v2254 = vmax.f32 %v2191, 0.0
        %v2255 = vmax.f32 %v2194, 0.0
        %v2256 = vmax.f32 %v2197, 0.0
        %v2257 = vmax.f32 %v2200, 0.0
        %v2258 = vmax.f32 %v2203, 0.0
        %v2259 = vmax.f32 %v2206, 0.0
        %v2260 = vmax.f32 %v2209, 0.0
        %v2261 = vmax.f32 %v2212, 0.0
        %v2262 = vmax.f32 %v2215, 0.0
        %v2263 = vmax.f32 %v2218, 0.0
        %v2264 = vmax.f32 %v2221, 0.0
        %v2265 = vmax.f32 %v2224, 0.0
        %v2266 = vmax.f32 %v2227, 0.0
        %v2267 = vmax.f32 %v2230, 0.0
        %v2268 = vmax.f32 %v2233, 0.0
        %v2269 = vmax.f32 %v2236, 0.0
        %vm2270 = vcmask 64512
        %2271 = vst.msk [vmem:[#allocation3] sm:$0xff] %vm2270, 0.0
        %2272 = vst.msk [vmem:[#allocation3 + $0x8] sm:$0xff] %vm2270, 0.0
        %vm2273 = vcmask 58368
        %2274 = vst.msk [vmem:[#allocation3 + $0x10] sm:$0x3] %vm2273, 0.0
        %s2275 = scalar_lea.vmem [#allocation3], 408
        %2276 = vst.msk [vmem:[%s2275] sm:$0xff] %vm2270, 0.0
        %2277 = vst.msk [vmem:[%s2275 + $0x8] sm:$0xff] %vm2270, 0.0
        %2278 = vst.msk [vmem:[%s2275 + $0x10] sm:$0x3] %vm2273, 0.0
        %vm2279 = vcmask 57344
        %2280 = vst.msk [vmem:[#allocation3] sm:$0x1] %vm2279, 0.0
        %2281 = vst.msk [vmem:[#allocation3 + $0x18] sm:$0x1] %vm2279, 0.0
        %2282 = vst.msk [vmem:[#allocation3 + $0x30] sm:$0x1] %vm2279, 0.0
        %2283 = vst.msk [vmem:[#allocation3 + $0x48] sm:$0x1] %vm2279, 0.0
        %2284 = vst.msk [vmem:[#allocation3 + $0x60] sm:$0x1] %vm2279, 0.0
        %2285 = vst.msk [vmem:[#allocation3 + $0x78] sm:$0x1] %vm2279, 0.0
        %2286 = vst.msk [vmem:[#allocation3 + $0x90] sm:$0x1] %vm2279, 0.0
        %2287 = vst.msk [vmem:[#allocation3 + $0xa8] sm:$0x1] %vm2279, 0.0
        %2288 = vst.msk [vmem:[#allocation3 + $0xc0] sm:$0x1] %vm2279, 0.0
        %2289 = vst.msk [vmem:[#allocation3 + $0xd8] sm:$0x1] %vm2279, 0.0
        %2290 = vst.msk [vmem:[#allocation3 + $0xf0] sm:$0x1] %vm2279, 0.0
        %2291 = vst.msk [vmem:[#allocation3 + $0x108] sm:$0x1] %vm2279, 0.0
        %2292 = vst.msk [vmem:[#allocation3 + $0x120] sm:$0x1] %vm2279, 0.0
        %2293 = vst.msk [vmem:[#allocation3 + $0x138] sm:$0x1] %vm2279, 0.0
        %2294 = vst.msk [vmem:[#allocation3 + $0x150] sm:$0x1] %vm2279, 0.0
        %2295 = vst.msk [vmem:[#allocation3 + $0x168] sm:$0x1] %vm2279, 0.0
        %2296 = vst.msk [vmem:[#allocation3 + $0x180] sm:$0x1] %vm2279, 0.0
        %2297 = vst.msk [vmem:[#allocation3 + $0x198] sm:$0x1] %vm2279, 0.0
        %2298 = vst.msk [vmem:[#allocation3 + $0x11] sm:$0x1] %vm2279, 0.0
        %2299 = vst.msk [vmem:[#allocation3 + $0x29] sm:$0x1] %vm2279, 0.0
        %2300 = vst.msk [vmem:[#allocation3 + $0x41] sm:$0x1] %vm2279, 0.0
        %2301 = vst.msk [vmem:[#allocation3 + $0x59] sm:$0x1] %vm2279, 0.0
        %2302 = vst.msk [vmem:[#allocation3 + $0x71] sm:$0x1] %vm2279, 0.0
        %2303 = vst.msk [vmem:[#allocation3 + $0x89] sm:$0x1] %vm2279, 0.0
        %2304 = vst.msk [vmem:[#allocation3 + $0xa1] sm:$0x1] %vm2279, 0.0
        %2305 = vst.msk [vmem:[#allocation3 + $0xb9] sm:$0x1] %vm2279, 0.0
        %2306 = vst.msk [vmem:[#allocation3 + $0xd1] sm:$0x1] %vm2279, 0.0
        %2307 = vst.msk [vmem:[#allocation3 + $0xe9] sm:$0x1] %vm2279, 0.0
        %2308 = vst.msk [vmem:[#allocation3 + $0x101] sm:$0x1] %vm2279, 0.0
        %2309 = vst.msk [vmem:[#allocation3 + $0x119] sm:$0x1] %vm2279, 0.0
        %2310 = vst.msk [vmem:[#allocation3 + $0x131] sm:$0x1] %vm2279, 0.0
        %2311 = vst.msk [vmem:[#allocation3 + $0x149] sm:$0x1] %vm2279, 0.0
        %2312 = vst.msk [vmem:[#allocation3 + $0x161] sm:$0x1] %vm2279, 0.0
        %2313 = vst.msk [vmem:[#allocation3 + $0x179] sm:$0x1] %vm2279, 0.0
        %2314 = vst.msk [vmem:[#allocation3 + $0x191] sm:$0x1] %vm2279, 0.0
        %2315 = vst.msk [vmem:[#allocation3 + $0x1a9] sm:$0x1] %vm2279, 0.0
        %s2316 = scalar_lea.vmem [#allocation3], 24
        %2317 = vst.msk [vmem:[%s2316 + $0x1] sm:$0xff] %vm2270, %v2238
        %2318 = vst.msk [vmem:[%s2316 + $0x9] sm:$0xff] %vm2270, %v2239
        %2319 = vst.msk [vmem:[%s2316 + $0x19] sm:$0xff] %vm2270, %v2240
        %2320 = vst.msk [vmem:[%s2316 + $0x21] sm:$0xff] %vm2270, %v2241
        %2321 = vst.msk [vmem:[%s2316 + $0x31] sm:$0xff] %vm2270, %v2242
        %2322 = vst.msk [vmem:[%s2316 + $0x39] sm:$0xff] %vm2270, %v2243
        %2323 = vst.msk [vmem:[%s2316 + $0x49] sm:$0xff] %vm2270, %v2244
        %2324 = vst.msk [vmem:[%s2316 + $0x51] sm:$0xff] %vm2270, %v2245
        %2325 = vst.msk [vmem:[%s2316 + $0x61] sm:$0xff] %vm2270, %v2246
        %2326 = vst.msk [vmem:[%s2316 + $0x69] sm:$0xff] %vm2270, %v2247
        %2327 = vst.msk [vmem:[%s2316 + $0x79] sm:$0xff] %vm2270, %v2248
        %2328 = vst.msk [vmem:[%s2316 + $0x81] sm:$0xff] %vm2270, %v2249
        %2329 = vst.msk [vmem:[%s2316 + $0x91] sm:$0xff] %vm2270, %v2250
        %2330 = vst.msk [vmem:[%s2316 + $0x99] sm:$0xff] %vm2270, %v2251
        %2331 = vst.msk [vmem:[%s2316 + $0xa9] sm:$0xff] %vm2270, %v2252
        %2332 = vst.msk [vmem:[%s2316 + $0xb1] sm:$0xff] %vm2270, %v2253
        %2333 = vst.msk [vmem:[%s2316 + $0xc1] sm:$0xff] %vm2270, %v2254
        %2334 = vst.msk [vmem:[%s2316 + $0xc9] sm:$0xff] %vm2270, %v2255
        %2335 = vst.msk [vmem:[%s2316 + $0xd9] sm:$0xff] %vm2270, %v2256
        %2336 = vst.msk [vmem:[%s2316 + $0xe1] sm:$0xff] %vm2270, %v2257
        %2337 = vst.msk [vmem:[%s2316 + $0xf1] sm:$0xff] %vm2270, %v2258
        %2338 = vst.msk [vmem:[%s2316 + $0xf9] sm:$0xff] %vm2270, %v2259
        %2339 = vst.msk [vmem:[%s2316 + $0x109] sm:$0xff] %vm2270, %v2260
        %2340 = vst.msk [vmem:[%s2316 + $0x111] sm:$0xff] %vm2270, %v2261
        %2341 = vst.msk [vmem:[%s2316 + $0x121] sm:$0xff] %vm2270, %v2262
        %2342 = vst.msk [vmem:[%s2316 + $0x129] sm:$0xff] %vm2270, %v2263
        %2343 = vst.msk [vmem:[%s2316 + $0x139] sm:$0xff] %vm2270, %v2264
        %2344 = vst.msk [vmem:[%s2316 + $0x141] sm:$0xff] %vm2270, %v2265
        %2345 = vst.msk [vmem:[%s2316 + $0x151] sm:$0xff] %vm2270, %v2266
        %2346 = vst.msk [vmem:[%s2316 + $0x159] sm:$0xff] %vm2270, %v2267
        %2347 = vst.msk [vmem:[%s2316 + $0x169] sm:$0xff] %vm2270, %v2268
        %2348 = vst.msk [vmem:[%s2316 + $0x171] sm:$0xff] %vm2270, %v2269
        %v2349 = vld [vmem:[%s3] sm:$0xff]
        %v2350 = vld [vmem:[%s3 + $0x8] sm:$0xff]
        %v2351 = vld [vmem:[%s3 + $0x10] sm:$0xff]
        %v2352 = vld [vmem:[%s3 + $0x18] sm:$0xff]
        %v2353 = vld [vmem:[%s3 + $0x20] sm:$0xff]
        %v2354 = vld [vmem:[%s3 + $0x28] sm:$0xff]
        %v2355 = vld [vmem:[%s3 + $0x30] sm:$0xff]
        %v2356 = vld [vmem:[%s3 + $0x38] sm:$0xff]
        %v2357 = vld [vmem:[%s3 + $0x40] sm:$0xff]
        %v2358 = vld [vmem:[%s4] sm:$0x1]
        %v2359 = vld [vmem:[#allocation3] sm:$0xff]
        %v2360 = vld [vmem:[#allocation3 + $0x8] sm:$0xff]
        %v2361 = vld [vmem:[#allocation3 + $0x18] sm:$0xff]
        %v2362 = vld [vmem:[#allocation3 + $0x20] sm:$0xff]
        %v2363 = vld [vmem:[#allocation3 + $0x30] sm:$0xff]
        %v2364 = vld [vmem:[#allocation3 + $0x38] sm:$0xff]
        %v2365 = vld [vmem:[#allocation3 + $0x48] sm:$0xff]
        %v2366 = vld [vmem:[#allocation3 + $0x50] sm:$0xff]
        %v2367 = vld [vmem:[#allocation3 + $0x60] sm:$0xff]
        %v2368 = vld [vmem:[#allocation3 + $0x68] sm:$0xff]
        %v2369 = vld [vmem:[#allocation3 + $0x78] sm:$0xff]
        %v2370 = vld [vmem:[#allocation3 + $0x80] sm:$0xff]
        %v2371 = vld [vmem:[#allocation3 + $0x90] sm:$0xff]
        %v2372 = vld [vmem:[#allocation3 + $0x98] sm:$0xff]
        %v2373 = vld [vmem:[#allocation3 + $0xa8] sm:$0xff]
        %v2374 = vld [vmem:[#allocation3 + $0xb0] sm:$0xff]
        %v2375 = vld [vmem:[#allocation3 + $0xc0] sm:$0xff]
        %v2376 = vld [vmem:[#allocation3 + $0xc8] sm:$0xff]
        %v2377 = vld [vmem:[#allocation3 + $0xd8] sm:$0xff]
        %v2378 = vld [vmem:[#allocation3 + $0xe0] sm:$0xff]
        %v2379 = vld [vmem:[#allocation3 + $0xf0] sm:$0xff]
        %v2380 = vld [vmem:[#allocation3 + $0xf8] sm:$0xff]
        %v2381 = vld [vmem:[#allocation3 + $0x108] sm:$0xff]
        %v2382 = vld [vmem:[#allocation3 + $0x110] sm:$0xff]
        %v2383 = vld [vmem:[#allocation3 + $0x120] sm:$0xff]
        %v2384 = vld [vmem:[#allocation3 + $0x128] sm:$0xff]
        %v2385 = vld [vmem:[#allocation3 + $0x138] sm:$0xff]
        %v2386 = vld [vmem:[#allocation3 + $0x140] sm:$0xff]
        %v2387 = vld [vmem:[#allocation3 + $0x150] sm:$0xff]
        %v2388 = vld [vmem:[#allocation3 + $0x158] sm:$0xff]
        %v2389 = vld [vmem:[#allocation3 + $0x168] sm:$0xff]
        %v2390 = vld [vmem:[#allocation3 + $0x170] sm:$0xff]
        %2391 = vst.msk [vmem:[#allocation5] sm:$0xff] %vm2270, %v2359
        %2392 = vst.msk [vmem:[#allocation5 + $0x8] sm:$0xff] %vm2270, %v2360
        %2393 = vst.msk [vmem:[#allocation5 + $0x10] sm:$0xff] %vm2270, %v2361
        %2394 = vst.msk [vmem:[#allocation5 + $0x18] sm:$0xff] %vm2270, %v2362
        %2395 = vst.msk [vmem:[#allocation5 + $0x20] sm:$0xff] %vm2270, %v2363
        %2396 = vst.msk [vmem:[#allocation5 + $0x28] sm:$0xff] %vm2270, %v2364
        %2397 = vst.msk [vmem:[#allocation5 + $0x30] sm:$0xff] %vm2270, %v2365
        %2398 = vst.msk [vmem:[#allocation5 + $0x38] sm:$0xff] %vm2270, %v2366
        %2399 = vst.msk [vmem:[#allocation5 + $0x40] sm:$0xff] %vm2270, %v2367
        %2400 = vst.msk [vmem:[#allocation5 + $0x48] sm:$0xff] %vm2270, %v2368
        %2401 = vst.msk [vmem:[#allocation5 + $0x50] sm:$0xff] %vm2270, %v2369
        %2402 = vst.msk [vmem:[#allocation5 + $0x58] sm:$0xff] %vm2270, %v2370
        %2403 = vst.msk [vmem:[#allocation5 + $0x60] sm:$0xff] %vm2270, %v2371
        %2404 = vst.msk [vmem:[#allocation5 + $0x68] sm:$0xff] %vm2270, %v2372
        %2405 = vst.msk [vmem:[#allocation5 + $0x70] sm:$0xff] %vm2270, %v2373
        %2406 = vst.msk [vmem:[#allocation5 + $0x78] sm:$0xff] %vm2270, %v2374
        %2407 = vst.msk [vmem:[#allocation5 + $0x80] sm:$0xff] %vm2270, %v2375
        %2408 = vst.msk [vmem:[#allocation5 + $0x88] sm:$0xff] %vm2270, %v2376
        %2409 = vst.msk [vmem:[#allocation5 + $0x90] sm:$0xff] %vm2270, %v2377
        %2410 = vst.msk [vmem:[#allocation5 + $0x98] sm:$0xff] %vm2270, %v2378
        %2411 = vst.msk [vmem:[#allocation5 + $0xa0] sm:$0xff] %vm2270, %v2379
        %2412 = vst.msk [vmem:[#allocation5 + $0xa8] sm:$0xff] %vm2270, %v2380
        %2413 = vst.msk [vmem:[#allocation5 + $0xb0] sm:$0xff] %vm2270, %v2381
        %2414 = vst.msk [vmem:[#allocation5 + $0xb8] sm:$0xff] %vm2270, %v2382
        %2415 = vst.msk [vmem:[#allocation5 + $0xc0] sm:$0xff] %vm2270, %v2383
        %2416 = vst.msk [vmem:[#allocation5 + $0xc8] sm:$0xff] %vm2270, %v2384
        %2417 = vst.msk [vmem:[#allocation5 + $0xd0] sm:$0xff] %vm2270, %v2385
        %2418 = vst.msk [vmem:[#allocation5 + $0xd8] sm:$0xff] %vm2270, %v2386
        %2419 = vst.msk [vmem:[#allocation5 + $0xe0] sm:$0xff] %vm2270, %v2387
        %2420 = vst.msk [vmem:[#allocation5 + $0xe8] sm:$0xff] %vm2270, %v2388
        %2421 = vst.msk [vmem:[#allocation5 + $0xf0] sm:$0xff] %vm2270, %v2389
        %2422 = vst.msk [vmem:[#allocation5 + $0xf8] sm:$0xff] %vm2270, %v2390
        %v2423 = vld [vmem:[#allocation3 + $0x1] sm:$0xff]
        %v2424 = vld [vmem:[#allocation3 + $0x9] sm:$0xff]
        %v2425 = vld [vmem:[#allocation3 + $0x19] sm:$0xff]
        %v2426 = vld [vmem:[#allocation3 + $0x21] sm:$0xff]
        %v2427 = vld [vmem:[#allocation3 + $0x31] sm:$0xff]
        %v2428 = vld [vmem:[#allocation3 + $0x39] sm:$0xff]
        %v2429 = vld [vmem:[#allocation3 + $0x49] sm:$0xff]
        %v2430 = vld [vmem:[#allocation3 + $0x51] sm:$0xff]
        %v2431 = vld [vmem:[#allocation3 + $0x61] sm:$0xff]
        %v2432 = vld [vmem:[#allocation3 + $0x69] sm:$0xff]
        %v2433 = vld [vmem:[#allocation3 + $0x79] sm:$0xff]
        %v2434 = vld [vmem:[#allocation3 + $0x81] sm:$0xff]
        %v2435 = vld [vmem:[#allocation3 + $0x91] sm:$0xff]
        %v2436 = vld [vmem:[#allocation3 + $0x99] sm:$0xff]
        %v2437 = vld [vmem:[#allocation3 + $0xa9] sm:$0xff]
        %v2438 = vld [vmem:[#allocation3 + $0xb1] sm:$0xff]
        %v2439 = vld [vmem:[#allocation3 + $0xc1] sm:$0xff]
        %v2440 = vld [vmem:[#allocation3 + $0xc9] sm:$0xff]
        %v2441 = vld [vmem:[#allocation3 + $0xd9] sm:$0xff]
        %v2442 = vld [vmem:[#allocation3 + $0xe1] sm:$0xff]
        %v2443 = vld [vmem:[#allocation3 + $0xf1] sm:$0xff]
        %v2444 = vld [vmem:[#allocation3 + $0xf9] sm:$0xff]
        %v2445 = vld [vmem:[#allocation3 + $0x109] sm:$0xff]
        %v2446 = vld [vmem:[#allocation3 + $0x111] sm:$0xff]
        %v2447 = vld [vmem:[#allocation3 + $0x121] sm:$0xff]
        %v2448 = vld [vmem:[#allocation3 + $0x129] sm:$0xff]
        %v2449 = vld [vmem:[#allocation3 + $0x139] sm:$0xff]
        %v2450 = vld [vmem:[#allocation3 + $0x141] sm:$0xff]
        %v2451 = vld [vmem:[#allocation3 + $0x151] sm:$0xff]
        %v2452 = vld [vmem:[#allocation3 + $0x159] sm:$0xff]
        %v2453 = vld [vmem:[#allocation3 + $0x169] sm:$0xff]
        %v2454 = vld [vmem:[#allocation3 + $0x171] sm:$0xff]
        %2487 = vrot.lane.b32.xlu0 %v2423, 8
        %v2488 = vpop.permute.xlu0 %2487
        %2489 = vrot.lane.b32.xlu0 %v2424, 8
        %v2490 = vpop.permute.xlu0 %2489
        %2491 = vrot.lane.b32.xlu0 %v2425, 8
        %v2492 = vpop.permute.xlu0 %2491
        %2493 = vrot.lane.b32.xlu0 %v2426, 8
        %v2494 = vpop.permute.xlu0 %2493
        %2495 = vrot.lane.b32.xlu0 %v2427, 8
        %v2496 = vpop.permute.xlu0 %2495
        %2497 = vrot.lane.b32.xlu0 %v2428, 8
        %v2498 = vpop.permute.xlu0 %2497
        %2499 = vrot.lane.b32.xlu0 %v2429, 8
        %v2500 = vpop.permute.xlu0 %2499
        %2501 = vrot.lane.b32.xlu0 %v2430, 8
        %v2502 = vpop.permute.xlu0 %2501
        %2503 = vrot.lane.b32.xlu0 %v2431, 8
        %v2504 = vpop.permute.xlu0 %2503
        %2505 = vrot.lane.b32.xlu0 %v2432, 8
        %v2506 = vpop.permute.xlu0 %2505
        %2507 = vrot.lane.b32.xlu0 %v2433, 8
        %v2508 = vpop.permute.xlu0 %2507
        %2509 = vrot.lane.b32.xlu0 %v2434, 8
        %v2510 = vpop.permute.xlu0 %2509
        %2511 = vrot.lane.b32.xlu0 %v2435, 8
        %v2512 = vpop.permute.xlu0 %2511
        %2513 = vrot.lane.b32.xlu0 %v2436, 8
        %v2514 = vpop.permute.xlu0 %2513
        %2515 = vrot.lane.b32.xlu0 %v2437, 8
        %v2516 = vpop.permute.xlu0 %2515
        %2517 = vrot.lane.b32.xlu0 %v2438, 8
        %v2518 = vpop.permute.xlu0 %2517
        %2519 = vrot.lane.b32.xlu0 %v2439, 8
        %v2520 = vpop.permute.xlu0 %2519
        %2521 = vrot.lane.b32.xlu0 %v2440, 8
        %v2522 = vpop.permute.xlu0 %2521
        %2523 = vrot.lane.b32.xlu0 %v2441, 8
        %v2524 = vpop.permute.xlu0 %2523
        %2525 = vrot.lane.b32.xlu0 %v2442, 8
        %v2526 = vpop.permute.xlu0 %2525
        %2527 = vrot.lane.b32.xlu0 %v2443, 8
        %v2528 = vpop.permute.xlu0 %2527
        %2529 = vrot.lane.b32.xlu0 %v2444, 8
        %v2530 = vpop.permute.xlu0 %2529
        %2531 = vrot.lane.b32.xlu0 %v2445, 8
        %v2532 = vpop.permute.xlu0 %2531
        %2533 = vrot.lane.b32.xlu0 %v2446, 8
        %v2534 = vpop.permute.xlu0 %2533
        %2535 = vrot.lane.b32.xlu0 %v2447, 8
        %v2536 = vpop.permute.xlu0 %2535
        %2537 = vrot.lane.b32.xlu0 %v2448, 8
        %v2538 = vpop.permute.xlu0 %2537
        %2539 = vrot.lane.b32.xlu0 %v2449, 8
        %v2540 = vpop.permute.xlu0 %2539
        %2541 = vrot.lane.b32.xlu0 %v2450, 8
        %v2542 = vpop.permute.xlu0 %2541
        %2543 = vrot.lane.b32.xlu0 %v2451, 8
        %v2544 = vpop.permute.xlu0 %2543
        %2545 = vrot.lane.b32.xlu0 %v2452, 8
        %v2546 = vpop.permute.xlu0 %2545
        %2547 = vrot.lane.b32.xlu0 %v2453, 8
        %v2548 = vpop.permute.xlu0 %2547
        %2549 = vrot.lane.b32.xlu0 %v2454, 8
        %v2550 = vpop.permute.xlu0 %2549
        %vm2583 = vcmask 130112
        %2584 = vst.msk [vmem:[#allocation5] sm:$0xff] %vm2583, %v2488
        %2585 = vst.msk [vmem:[#allocation5 + $0x8] sm:$0xff] %vm2583, %v2490
        %2586 = vst.msk [vmem:[#allocation5 + $0x10] sm:$0xff] %vm2583, %v2492
        %2587 = vst.msk [vmem:[#allocation5 + $0x18] sm:$0xff] %vm2583, %v2494
        %2588 = vst.msk [vmem:[#allocation5 + $0x20] sm:$0xff] %vm2583, %v2496
        %2589 = vst.msk [vmem:[#allocation5 + $0x28] sm:$0xff] %vm2583, %v2498
        %2590 = vst.msk [vmem:[#allocation5 + $0x30] sm:$0xff] %vm2583, %v2500
        %2591 = vst.msk [vmem:[#allocation5 + $0x38] sm:$0xff] %vm2583, %v2502
        %2592 = vst.msk [vmem:[#allocation5 + $0x40] sm:$0xff] %vm2583, %v2504
        %2593 = vst.msk [vmem:[#allocation5 + $0x48] sm:$0xff] %vm2583, %v2506
        %2594 = vst.msk [vmem:[#allocation5 + $0x50] sm:$0xff] %vm2583, %v2508
        %2595 = vst.msk [vmem:[#allocation5 + $0x58] sm:$0xff] %vm2583, %v2510
        %2596 = vst.msk [vmem:[#allocation5 + $0x60] sm:$0xff] %vm2583, %v2512
        %2597 = vst.msk [vmem:[#allocation5 + $0x68] sm:$0xff] %vm2583, %v2514
        %2598 = vst.msk [vmem:[#allocation5 + $0x70] sm:$0xff] %vm2583, %v2516
        %2599 = vst.msk [vmem:[#allocation5 + $0x78] sm:$0xff] %vm2583, %v2518
        %2600 = vst.msk [vmem:[#allocation5 + $0x80] sm:$0xff] %vm2583, %v2520
        %2601 = vst.msk [vmem:[#allocation5 + $0x88] sm:$0xff] %vm2583, %v2522
        %2602 = vst.msk [vmem:[#allocation5 + $0x90] sm:$0xff] %vm2583, %v2524
        %2603 = vst.msk [vmem:[#allocation5 + $0x98] sm:$0xff] %vm2583, %v2526
        %2604 = vst.msk [vmem:[#allocation5 + $0xa0] sm:$0xff] %vm2583, %v2528
        %2605 = vst.msk [vmem:[#allocation5 + $0xa8] sm:$0xff] %vm2583, %v2530
        %2606 = vst.msk [vmem:[#allocation5 + $0xb0] sm:$0xff] %vm2583, %v2532
        %2607 = vst.msk [vmem:[#allocation5 + $0xb8] sm:$0xff] %vm2583, %v2534
        %2608 = vst.msk [vmem:[#allocation5 + $0xc0] sm:$0xff] %vm2583, %v2536
        %2609 = vst.msk [vmem:[#allocation5 + $0xc8] sm:$0xff] %vm2583, %v2538
        %2610 = vst.msk [vmem:[#allocation5 + $0xd0] sm:$0xff] %vm2583, %v2540
        %2611 = vst.msk [vmem:[#allocation5 + $0xd8] sm:$0xff] %vm2583, %v2542
        %2612 = vst.msk [vmem:[#allocation5 + $0xe0] sm:$0xff] %vm2583, %v2544
        %2613 = vst.msk [vmem:[#allocation5 + $0xe8] sm:$0xff] %vm2583, %v2546
        %2614 = vst.msk [vmem:[#allocation5 + $0xf0] sm:$0xff] %vm2583, %v2548
        %2615 = vst.msk [vmem:[#allocation5 + $0xf8] sm:$0xff] %vm2583, %v2550
        %v2616 = vld [vmem:[#allocation3 + $0x2] sm:$0xff]
        %v2617 = vld [vmem:[#allocation3 + $0xa] sm:$0xff]
        %v2618 = vld [vmem:[#allocation3 + $0x1a] sm:$0xff]
        %v2619 = vld [vmem:[#allocation3 + $0x22] sm:$0xff]
        %v2620 = vld [vmem:[#allocation3 + $0x32] sm:$0xff]
        %v2621 = vld [vmem:[#allocation3 + $0x3a] sm:$0xff]
        %v2622 = vld [vmem:[#allocation3 + $0x4a] sm:$0xff]
        %v2623 = vld [vmem:[#allocation3 + $0x52] sm:$0xff]
        %v2624 = vld [vmem:[#allocation3 + $0x62] sm:$0xff]
        %v2625 = vld [vmem:[#allocation3 + $0x6a] sm:$0xff]
        %v2626 = vld [vmem:[#allocation3 + $0x7a] sm:$0xff]
        %v2627 = vld [vmem:[#allocation3 + $0x82] sm:$0xff]
        %v2628 = vld [vmem:[#allocation3 + $0x92] sm:$0xff]
        %v2629 = vld [vmem:[#allocation3 + $0x9a] sm:$0xff]
        %v2630 = vld [vmem:[#allocation3 + $0xaa] sm:$0xff]
        %v2631 = vld [vmem:[#allocation3 + $0xb2] sm:$0xff]
        %v2632 = vld [vmem:[#allocation3 + $0xc2] sm:$0xff]
        %v2633 = vld [vmem:[#allocation3 + $0xca] sm:$0xff]
        %v2634 = vld [vmem:[#allocation3 + $0xda] sm:$0xff]
        %v2635 = vld [vmem:[#allocation3 + $0xe2] sm:$0xff]
        %v2636 = vld [vmem:[#allocation3 + $0xf2] sm:$0xff]
        %v2637 = vld [vmem:[#allocation3 + $0xfa] sm:$0xff]
        %v2638 = vld [vmem:[#allocation3 + $0x10a] sm:$0xff]
        %v2639 = vld [vmem:[#allocation3 + $0x112] sm:$0xff]
        %v2640 = vld [vmem:[#allocation3 + $0x122] sm:$0xff]
        %v2641 = vld [vmem:[#allocation3 + $0x12a] sm:$0xff]
        %v2642 = vld [vmem:[#allocation3 + $0x13a] sm:$0xff]
        %v2643 = vld [vmem:[#allocation3 + $0x142] sm:$0xff]
        %v2644 = vld [vmem:[#allocation3 + $0x152] sm:$0xff]
        %v2645 = vld [vmem:[#allocation3 + $0x15a] sm:$0xff]
        %v2646 = vld [vmem:[#allocation3 + $0x16a] sm:$0xff]
        %v2647 = vld [vmem:[#allocation3 + $0x172] sm:$0xff]
        %2680 = vrot.lane.b32.xlu0 %v2616, 16
        %v2681 = vpop.permute.xlu0 %2680
        %2682 = vrot.lane.b32.xlu0 %v2617, 16
        %v2683 = vpop.permute.xlu0 %2682
        %2684 = vrot.lane.b32.xlu0 %v2618, 16
        %v2685 = vpop.permute.xlu0 %2684
        %2686 = vrot.lane.b32.xlu0 %v2619, 16
        %v2687 = vpop.permute.xlu0 %2686
        %2688 = vrot.lane.b32.xlu0 %v2620, 16
        %v2689 = vpop.permute.xlu0 %2688
        %2690 = vrot.lane.b32.xlu0 %v2621, 16
        %v2691 = vpop.permute.xlu0 %2690
        %2692 = vrot.lane.b32.xlu0 %v2622, 16
        %v2693 = vpop.permute.xlu0 %2692
        %2694 = vrot.lane.b32.xlu0 %v2623, 16
        %v2695 = vpop.permute.xlu0 %2694
        %2696 = vrot.lane.b32.xlu0 %v2624, 16
        %v2697 = vpop.permute.xlu0 %2696
        %2698 = vrot.lane.b32.xlu0 %v2625, 16
        %v2699 = vpop.permute.xlu0 %2698
        %2700 = vrot.lane.b32.xlu0 %v2626, 16
        %v2701 = vpop.permute.xlu0 %2700
        %2702 = vrot.lane.b32.xlu0 %v2627, 16
        %v2703 = vpop.permute.xlu0 %2702
        %2704 = vrot.lane.b32.xlu0 %v2628, 16
        %v2705 = vpop.permute.xlu0 %2704
        %2706 = vrot.lane.b32.xlu0 %v2629, 16
        %v2707 = vpop.permute.xlu0 %2706
        %2708 = vrot.lane.b32.xlu0 %v2630, 16
        %v2709 = vpop.permute.xlu0 %2708
        %2710 = vrot.lane.b32.xlu0 %v2631, 16
        %v2711 = vpop.permute.xlu0 %2710
        %2712 = vrot.lane.b32.xlu0 %v2632, 16
        %v2713 = vpop.permute.xlu0 %2712
        %2714 = vrot.lane.b32.xlu0 %v2633, 16
        %v2715 = vpop.permute.xlu0 %2714
        %2716 = vrot.lane.b32.xlu0 %v2634, 16
        %v2717 = vpop.permute.xlu0 %2716
        %2718 = vrot.lane.b32.xlu0 %v2635, 16
        %v2719 = vpop.permute.xlu0 %2718
        %2720 = vrot.lane.b32.xlu0 %v2636, 16
        %v2721 = vpop.permute.xlu0 %2720
        %2722 = vrot.lane.b32.xlu0 %v2637, 16
        %v2723 = vpop.permute.xlu0 %2722
        %2724 = vrot.lane.b32.xlu0 %v2638, 16
        %v2725 = vpop.permute.xlu0 %2724
        %2726 = vrot.lane.b32.xlu0 %v2639, 16
        %v2727 = vpop.permute.xlu0 %2726
        %2728 = vrot.lane.b32.xlu0 %v2640, 16
        %v2729 = vpop.permute.xlu0 %2728
        %2730 = vrot.lane.b32.xlu0 %v2641, 16
        %v2731 = vpop.permute.xlu0 %2730
        %2732 = vrot.lane.b32.xlu0 %v2642, 16
        %v2733 = vpop.permute.xlu0 %2732
        %2734 = vrot.lane.b32.xlu0 %v2643, 16
        %v2735 = vpop.permute.xlu0 %2734
        %2736 = vrot.lane.b32.xlu0 %v2644, 16
        %v2737 = vpop.permute.xlu0 %2736
        %2738 = vrot.lane.b32.xlu0 %v2645, 16
        %v2739 = vpop.permute.xlu0 %2738
        %2740 = vrot.lane.b32.xlu0 %v2646, 16
        %v2741 = vpop.permute.xlu0 %2740
        %2742 = vrot.lane.b32.xlu0 %v2647, 16
        %v2743 = vpop.permute.xlu0 %2742
        %vm2776 = vcmask 195712
        %2777 = vst.msk [vmem:[#allocation5] sm:$0xff] %vm2776, %v2681
        %2778 = vst.msk [vmem:[#allocation5 + $0x8] sm:$0xff] %vm2776, %v2683
        %2779 = vst.msk [vmem:[#allocation5 + $0x10] sm:$0xff] %vm2776, %v2685
        %2780 = vst.msk [vmem:[#allocation5 + $0x18] sm:$0xff] %vm2776, %v2687
        %2781 = vst.msk [vmem:[#allocation5 + $0x20] sm:$0xff] %vm2776, %v2689
        %2782 = vst.msk [vmem:[#allocation5 + $0x28] sm:$0xff] %vm2776, %v2691
        %2783 = vst.msk [vmem:[#allocation5 + $0x30] sm:$0xff] %vm2776, %v2693
        %2784 = vst.msk [vmem:[#allocation5 + $0x38] sm:$0xff] %vm2776, %v2695
        %2785 = vst.msk [vmem:[#allocation5 + $0x40] sm:$0xff] %vm2776, %v2697
        %2786 = vst.msk [vmem:[#allocation5 + $0x48] sm:$0xff] %vm2776, %v2699
        %2787 = vst.msk [vmem:[#allocation5 + $0x50] sm:$0xff] %vm2776, %v2701
        %2788 = vst.msk [vmem:[#allocation5 + $0x58] sm:$0xff] %vm2776, %v2703
        %2789 = vst.msk [vmem:[#allocation5 + $0x60] sm:$0xff] %vm2776, %v2705
        %2790 = vst.msk [vmem:[#allocation5 + $0x68] sm:$0xff] %vm2776, %v2707
        %2791 = vst.msk [vmem:[#allocation5 + $0x70] sm:$0xff] %vm2776, %v2709
        %2792 = vst.msk [vmem:[#allocation5 + $0x78] sm:$0xff] %vm2776, %v2711
        %2793 = vst.msk [vmem:[#allocation5 + $0x80] sm:$0xff] %vm2776, %v2713
        %2794 = vst.msk [vmem:[#allocation5 + $0x88] sm:$0xff] %vm2776, %v2715
        %2795 = vst.msk [vmem:[#allocation5 + $0x90] sm:$0xff] %vm2776, %v2717
        %2796 = vst.msk [vmem:[#allocation5 + $0x98] sm:$0xff] %vm2776, %v2719
        %2797 = vst.msk [vmem:[#allocation5 + $0xa0] sm:$0xff] %vm2776, %v2721
        %2798 = vst.msk [vmem:[#allocation5 + $0xa8] sm:$0xff] %vm2776, %v2723
        %2799 = vst.msk [vmem:[#allocation5 + $0xb0] sm:$0xff] %vm2776, %v2725
        %2800 = vst.msk [vmem:[#allocation5 + $0xb8] sm:$0xff] %vm2776, %v2727
        %2801 = vst.msk [vmem:[#allocation5 + $0xc0] sm:$0xff] %vm2776, %v2729
        %2802 = vst.msk [vmem:[#allocation5 + $0xc8] sm:$0xff] %vm2776, %v2731
        %2803 = vst.msk [vmem:[#allocation5 + $0xd0] sm:$0xff] %vm2776, %v2733
        %2804 = vst.msk [vmem:[#allocation5 + $0xd8] sm:$0xff] %vm2776, %v2735
        %2805 = vst.msk [vmem:[#allocation5 + $0xe0] sm:$0xff] %vm2776, %v2737
        %2806 = vst.msk [vmem:[#allocation5 + $0xe8] sm:$0xff] %vm2776, %v2739
        %2807 = vst.msk [vmem:[#allocation5 + $0xf0] sm:$0xff] %vm2776, %v2741
        %2808 = vst.msk [vmem:[#allocation5 + $0xf8] sm:$0xff] %vm2776, %v2743
        %v2809 = vld [vmem:[%s2316] sm:$0xff]
        %v2810 = vld [vmem:[%s2316 + $0x8] sm:$0xff]
        %v2811 = vld [vmem:[%s2316 + $0x18] sm:$0xff]
        %v2812 = vld [vmem:[%s2316 + $0x20] sm:$0xff]
        %v2813 = vld [vmem:[%s2316 + $0x30] sm:$0xff]
        %v2814 = vld [vmem:[%s2316 + $0x38] sm:$0xff]
        %v2815 = vld [vmem:[%s2316 + $0x48] sm:$0xff]
        %v2816 = vld [vmem:[%s2316 + $0x50] sm:$0xff]
        %v2817 = vld [vmem:[%s2316 + $0x60] sm:$0xff]
        %v2818 = vld [vmem:[%s2316 + $0x68] sm:$0xff]
        %v2819 = vld [vmem:[%s2316 + $0x78] sm:$0xff]
        %v2820 = vld [vmem:[%s2316 + $0x80] sm:$0xff]
        %v2821 = vld [vmem:[%s2316 + $0x90] sm:$0xff]
        %v2822 = vld [vmem:[%s2316 + $0x98] sm:$0xff]
        %v2823 = vld [vmem:[%s2316 + $0xa8] sm:$0xff]
        %v2824 = vld [vmem:[%s2316 + $0xb0] sm:$0xff]
        %v2825 = vld [vmem:[%s2316 + $0xc0] sm:$0xff]
        %v2826 = vld [vmem:[%s2316 + $0xc8] sm:$0xff]
        %v2827 = vld [vmem:[%s2316 + $0xd8] sm:$0xff]
        %v2828 = vld [vmem:[%s2316 + $0xe0] sm:$0xff]
        %v2829 = vld [vmem:[%s2316 + $0xf0] sm:$0xff]
        %v2830 = vld [vmem:[%s2316 + $0xf8] sm:$0xff]
        %v2831 = vld [vmem:[%s2316 + $0x108] sm:$0xff]
        %v2832 = vld [vmem:[%s2316 + $0x110] sm:$0xff]
        %v2833 = vld [vmem:[%s2316 + $0x120] sm:$0xff]
        %v2834 = vld [vmem:[%s2316 + $0x128] sm:$0xff]
        %v2835 = vld [vmem:[%s2316 + $0x138] sm:$0xff]
        %v2836 = vld [vmem:[%s2316 + $0x140] sm:$0xff]
        %v2837 = vld [vmem:[%s2316 + $0x150] sm:$0xff]
        %v2838 = vld [vmem:[%s2316 + $0x158] sm:$0xff]
        %v2839 = vld [vmem:[%s2316 + $0x168] sm:$0xff]
        %v2840 = vld [vmem:[%s2316 + $0x170] sm:$0xff]
        %2873 = vrot.lane.b32.xlu0 %v2809, 24
        %v2874 = vpop.permute.xlu0 %2873
        %2875 = vrot.lane.b32.xlu0 %v2810, 24
        %v2876 = vpop.permute.xlu0 %2875
        %2877 = vrot.lane.b32.xlu0 %v2811, 24
        %v2878 = vpop.permute.xlu0 %2877
        %2879 = vrot.lane.b32.xlu0 %v2812, 24
        %v2880 = vpop.permute.xlu0 %2879
        %2881 = vrot.lane.b32.xlu0 %v2813, 24
        %v2882 = vpop.permute.xlu0 %2881
        %2883 = vrot.lane.b32.xlu0 %v2814, 24
        %v2884 = vpop.permute.xlu0 %2883
        %2885 = vrot.lane.b32.xlu0 %v2815, 24
        %v2886 = vpop.permute.xlu0 %2885
        %2887 = vrot.lane.b32.xlu0 %v2816, 24
        %v2888 = vpop.permute.xlu0 %2887
        %2889 = vrot.lane.b32.xlu0 %v2817, 24
        %v2890 = vpop.permute.xlu0 %2889
        %2891 = vrot.lane.b32.xlu0 %v2818, 24
        %v2892 = vpop.permute.xlu0 %2891
        %2893 = vrot.lane.b32.xlu0 %v2819, 24
        %v2894 = vpop.permute.xlu0 %2893
        %2895 = vrot.lane.b32.xlu0 %v2820, 24
        %v2896 = vpop.permute.xlu0 %2895
        %2897 = vrot.lane.b32.xlu0 %v2821, 24
        %v2898 = vpop.permute.xlu0 %2897
        %2899 = vrot.lane.b32.xlu0 %v2822, 24
        %v2900 = vpop.permute.xlu0 %2899
        %2901 = vrot.lane.b32.xlu0 %v2823, 24
        %v2902 = vpop.permute.xlu0 %2901
        %2903 = vrot.lane.b32.xlu0 %v2824, 24
        %v2904 = vpop.permute.xlu0 %2903
        %2905 = vrot.lane.b32.xlu0 %v2825, 24
        %v2906 = vpop.permute.xlu0 %2905
        %2907 = vrot.lane.b32.xlu0 %v2826, 24
        %v2908 = vpop.permute.xlu0 %2907
        %2909 = vrot.lane.b32.xlu0 %v2827, 24
        %v2910 = vpop.permute.xlu0 %2909
        %2911 = vrot.lane.b32.xlu0 %v2828, 24
        %v2912 = vpop.permute.xlu0 %2911
        %2913 = vrot.lane.b32.xlu0 %v2829, 24
        %v2914 = vpop.permute.xlu0 %2913
        %2915 = vrot.lane.b32.xlu0 %v2830, 24
        %v2916 = vpop.permute.xlu0 %2915
        %2917 = vrot.lane.b32.xlu0 %v2831, 24
        %v2918 = vpop.permute.xlu0 %2917
        %2919 = vrot.lane.b32.xlu0 %v2832, 24
        %v2920 = vpop.permute.xlu0 %2919
        %2921 = vrot.lane.b32.xlu0 %v2833, 24
        %v2922 = vpop.permute.xlu0 %2921
        %2923 = vrot.lane.b32.xlu0 %v2834, 24
        %v2924 = vpop.permute.xlu0 %2923
        %2925 = vrot.lane.b32.xlu0 %v2835, 24
        %v2926 = vpop.permute.xlu0 %2925
        %2927 = vrot.lane.b32.xlu0 %v2836, 24
        %v2928 = vpop.permute.xlu0 %2927
        %2929 = vrot.lane.b32.xlu0 %v2837, 24
        %v2930 = vpop.permute.xlu0 %2929
        %2931 = vrot.lane.b32.xlu0 %v2838, 24
        %v2932 = vpop.permute.xlu0 %2931
        %2933 = vrot.lane.b32.xlu0 %v2839, 24
        %v2934 = vpop.permute.xlu0 %2933
        %2935 = vrot.lane.b32.xlu0 %v2840, 24
        %v2936 = vpop.permute.xlu0 %2935
        %vm2969 = vcmask 261312
        %2970 = vst.msk [vmem:[#allocation5] sm:$0xff] %vm2969, %v2874
        %2971 = vst.msk [vmem:[#allocation5 + $0x8] sm:$0xff] %vm2969, %v2876
        %2972 = vst.msk [vmem:[#allocation5 + $0x10] sm:$0xff] %vm2969, %v2878
        %2973 = vst.msk [vmem:[#allocation5 + $0x18] sm:$0xff] %vm2969, %v2880
        %2974 = vst.msk [vmem:[#allocation5 + $0x20] sm:$0xff] %vm2969, %v2882
        %2975 = vst.msk [vmem:[#allocation5 + $0x28] sm:$0xff] %vm2969, %v2884
        %2976 = vst.msk [vmem:[#allocation5 + $0x30] sm:$0xff] %vm2969, %v2886
        %2977 = vst.msk [vmem:[#allocation5 + $0x38] sm:$0xff] %vm2969, %v2888
        %2978 = vst.msk [vmem:[#allocation5 + $0x40] sm:$0xff] %vm2969, %v2890
        %2979 = vst.msk [vmem:[#allocation5 + $0x48] sm:$0xff] %vm2969, %v2892
        %2980 = vst.msk [vmem:[#allocation5 + $0x50] sm:$0xff] %vm2969, %v2894
        %2981 = vst.msk [vmem:[#allocation5 + $0x58] sm:$0xff] %vm2969, %v2896
        %2982 = vst.msk [vmem:[#allocation5 + $0x60] sm:$0xff] %vm2969, %v2898
        %2983 = vst.msk [vmem:[#allocation5 + $0x68] sm:$0xff] %vm2969, %v2900
        %2984 = vst.msk [vmem:[#allocation5 + $0x70] sm:$0xff] %vm2969, %v2902
        %2985 = vst.msk [vmem:[#allocation5 + $0x78] sm:$0xff] %vm2969, %v2904
        %2986 = vst.msk [vmem:[#allocation5 + $0x80] sm:$0xff] %vm2969, %v2906
        %2987 = vst.msk [vmem:[#allocation5 + $0x88] sm:$0xff] %vm2969, %v2908
        %2988 = vst.msk [vmem:[#allocation5 + $0x90] sm:$0xff] %vm2969, %v2910
        %2989 = vst.msk [vmem:[#allocation5 + $0x98] sm:$0xff] %vm2969, %v2912
        %2990 = vst.msk [vmem:[#allocation5 + $0xa0] sm:$0xff] %vm2969, %v2914
        %2991 = vst.msk [vmem:[#allocation5 + $0xa8] sm:$0xff] %vm2969, %v2916
        %2992 = vst.msk [vmem:[#allocation5 + $0xb0] sm:$0xff] %vm2969, %v2918
        %2993 = vst.msk [vmem:[#allocation5 + $0xb8] sm:$0xff] %vm2969, %v2920
        %2994 = vst.msk [vmem:[#allocation5 + $0xc0] sm:$0xff] %vm2969, %v2922
        %2995 = vst.msk [vmem:[#allocation5 + $0xc8] sm:$0xff] %vm2969, %v2924
        %2996 = vst.msk [vmem:[#allocation5 + $0xd0] sm:$0xff] %vm2969, %v2926
        %2997 = vst.msk [vmem:[#allocation5 + $0xd8] sm:$0xff] %vm2969, %v2928
        %2998 = vst.msk [vmem:[#allocation5 + $0xe0] sm:$0xff] %vm2969, %v2930
        %2999 = vst.msk [vmem:[#allocation5 + $0xe8] sm:$0xff] %vm2969, %v2932
        %3000 = vst.msk [vmem:[#allocation5 + $0xf0] sm:$0xff] %vm2969, %v2934
        %3001 = vst.msk [vmem:[#allocation5 + $0xf8] sm:$0xff] %vm2969, %v2936
        %v3002 = vld [vmem:[%s2316 + $0x1] sm:$0xff]
        %v3003 = vld [vmem:[%s2316 + $0x9] sm:$0xff]
        %v3004 = vld [vmem:[%s2316 + $0x19] sm:$0xff]
        %v3005 = vld [vmem:[%s2316 + $0x21] sm:$0xff]
        %v3006 = vld [vmem:[%s2316 + $0x31] sm:$0xff]
        %v3007 = vld [vmem:[%s2316 + $0x39] sm:$0xff]
        %v3008 = vld [vmem:[%s2316 + $0x49] sm:$0xff]
        %v3009 = vld [vmem:[%s2316 + $0x51] sm:$0xff]
        %v3010 = vld [vmem:[%s2316 + $0x61] sm:$0xff]
        %v3011 = vld [vmem:[%s2316 + $0x69] sm:$0xff]
        %v3012 = vld [vmem:[%s2316 + $0x79] sm:$0xff]
        %v3013 = vld [vmem:[%s2316 + $0x81] sm:$0xff]
        %v3014 = vld [vmem:[%s2316 + $0x91] sm:$0xff]
        %v3015 = vld [vmem:[%s2316 + $0x99] sm:$0xff]
        %v3016 = vld [vmem:[%s2316 + $0xa9] sm:$0xff]
        %v3017 = vld [vmem:[%s2316 + $0xb1] sm:$0xff]
        %v3018 = vld [vmem:[%s2316 + $0xc1] sm:$0xff]
        %v3019 = vld [vmem:[%s2316 + $0xc9] sm:$0xff]
        %v3020 = vld [vmem:[%s2316 + $0xd9] sm:$0xff]
        %v3021 = vld [vmem:[%s2316 + $0xe1] sm:$0xff]
        %v3022 = vld [vmem:[%s2316 + $0xf1] sm:$0xff]
        %v3023 = vld [vmem:[%s2316 + $0xf9] sm:$0xff]
        %v3024 = vld [vmem:[%s2316 + $0x109] sm:$0xff]
        %v3025 = vld [vmem:[%s2316 + $0x111] sm:$0xff]
        %v3026 = vld [vmem:[%s2316 + $0x121] sm:$0xff]
        %v3027 = vld [vmem:[%s2316 + $0x129] sm:$0xff]
        %v3028 = vld [vmem:[%s2316 + $0x139] sm:$0xff]
        %v3029 = vld [vmem:[%s2316 + $0x141] sm:$0xff]
        %v3030 = vld [vmem:[%s2316 + $0x151] sm:$0xff]
        %v3031 = vld [vmem:[%s2316 + $0x159] sm:$0xff]
        %v3032 = vld [vmem:[%s2316 + $0x169] sm:$0xff]
        %v3033 = vld [vmem:[%s2316 + $0x171] sm:$0xff]
        %3066 = vrot.lane.b32.xlu0 %v3002, 32
        %v3067 = vpop.permute.xlu0 %3066
        %3068 = vrot.lane.b32.xlu0 %v3003, 32
        %v3069 = vpop.permute.xlu0 %3068
        %3070 = vrot.lane.b32.xlu0 %v3004, 32
        %v3071 = vpop.permute.xlu0 %3070
        %3072 = vrot.lane.b32.xlu0 %v3005, 32
        %v3073 = vpop.permute.xlu0 %3072
        %3074 = vrot.lane.b32.xlu0 %v3006, 32
        %v3075 = vpop.permute.xlu0 %3074
        %3076 = vrot.lane.b32.xlu0 %v3007, 32
        %v3077 = vpop.permute.xlu0 %3076
        %3078 = vrot.lane.b32.xlu0 %v3008, 32
        %v3079 = vpop.permute.xlu0 %3078
        %3080 = vrot.lane.b32.xlu0 %v3009, 32
        %v3081 = vpop.permute.xlu0 %3080
        %3082 = vrot.lane.b32.xlu0 %v3010, 32
        %v3083 = vpop.permute.xlu0 %3082
        %3084 = vrot.lane.b32.xlu0 %v3011, 32
        %v3085 = vpop.permute.xlu0 %3084
        %3086 = vrot.lane.b32.xlu0 %v3012, 32
        %v3087 = vpop.permute.xlu0 %3086
        %3088 = vrot.lane.b32.xlu0 %v3013, 32
        %v3089 = vpop.permute.xlu0 %3088
        %3090 = vrot.lane.b32.xlu0 %v3014, 32
        %v3091 = vpop.permute.xlu0 %3090
        %3092 = vrot.lane.b32.xlu0 %v3015, 32
        %v3093 = vpop.permute.xlu0 %3092
        %3094 = vrot.lane.b32.xlu0 %v3016, 32
        %v3095 = vpop.permute.xlu0 %3094
        %3096 = vrot.lane.b32.xlu0 %v3017, 32
        %v3097 = vpop.permute.xlu0 %3096
        %3098 = vrot.lane.b32.xlu0 %v3018, 32
        %v3099 = vpop.permute.xlu0 %3098
        %3100 = vrot.lane.b32.xlu0 %v3019, 32
        %v3101 = vpop.permute.xlu0 %3100
        %3102 = vrot.lane.b32.xlu0 %v3020, 32
        %v3103 = vpop.permute.xlu0 %3102
        %3104 = vrot.lane.b32.xlu0 %v3021, 32
        %v3105 = vpop.permute.xlu0 %3104
        %3106 = vrot.lane.b32.xlu0 %v3022, 32
        %v3107 = vpop.permute.xlu0 %3106
        %3108 = vrot.lane.b32.xlu0 %v3023, 32
        %v3109 = vpop.permute.xlu0 %3108
        %3110 = vrot.lane.b32.xlu0 %v3024, 32
        %v3111 = vpop.permute.xlu0 %3110
        %3112 = vrot.lane.b32.xlu0 %v3025, 32
        %v3113 = vpop.permute.xlu0 %3112
        %3114 = vrot.lane.b32.xlu0 %v3026, 32
        %v3115 = vpop.permute.xlu0 %3114
        %3116 = vrot.lane.b32.xlu0 %v3027, 32
        %v3117 = vpop.permute.xlu0 %3116
        %3118 = vrot.lane.b32.xlu0 %v3028, 32
        %v3119 = vpop.permute.xlu0 %3118
        %3120 = vrot.lane.b32.xlu0 %v3029, 32
        %v3121 = vpop.permute.xlu0 %3120
        %3122 = vrot.lane.b32.xlu0 %v3030, 32
        %v3123 = vpop.permute.xlu0 %3122
        %3124 = vrot.lane.b32.xlu0 %v3031, 32
        %v3125 = vpop.permute.xlu0 %3124
        %3126 = vrot.lane.b32.xlu0 %v3032, 32
        %v3127 = vpop.permute.xlu0 %3126
        %3128 = vrot.lane.b32.xlu0 %v3033, 32
        %v3129 = vpop.permute.xlu0 %3128
        %vm3162 = vcmask 326912
        %3163 = vst.msk [vmem:[#allocation5] sm:$0xff] %vm3162, %v3067
        %3164 = vst.msk [vmem:[#allocation5 + $0x8] sm:$0xff] %vm3162, %v3069
        %3165 = vst.msk [vmem:[#allocation5 + $0x10] sm:$0xff] %vm3162, %v3071
        %3166 = vst.msk [vmem:[#allocation5 + $0x18] sm:$0xff] %vm3162, %v3073
        %3167 = vst.msk [vmem:[#allocation5 + $0x20] sm:$0xff] %vm3162, %v3075
        %3168 = vst.msk [vmem:[#allocation5 + $0x28] sm:$0xff] %vm3162, %v3077
        %3169 = vst.msk [vmem:[#allocation5 + $0x30] sm:$0xff] %vm3162, %v3079
        %3170 = vst.msk [vmem:[#allocation5 + $0x38] sm:$0xff] %vm3162, %v3081
        %3171 = vst.msk [vmem:[#allocation5 + $0x40] sm:$0xff] %vm3162, %v3083
        %3172 = vst.msk [vmem:[#allocation5 + $0x48] sm:$0xff] %vm3162, %v3085
        %3173 = vst.msk [vmem:[#allocation5 + $0x50] sm:$0xff] %vm3162, %v3087
        %3174 = vst.msk [vmem:[#allocation5 + $0x58] sm:$0xff] %vm3162, %v3089
        %3175 = vst.msk [vmem:[#allocation5 + $0x60] sm:$0xff] %vm3162, %v3091
        %3176 = vst.msk [vmem:[#allocation5 + $0x68] sm:$0xff] %vm3162, %v3093
        %3177 = vst.msk [vmem:[#allocation5 + $0x70] sm:$0xff] %vm3162, %v3095
        %3178 = vst.msk [vmem:[#allocation5 + $0x78] sm:$0xff] %vm3162, %v3097
        %3179 = vst.msk [vmem:[#allocation5 + $0x80] sm:$0xff] %vm3162, %v3099
        %3180 = vst.msk [vmem:[#allocation5 + $0x88] sm:$0xff] %vm3162, %v3101
        %3181 = vst.msk [vmem:[#allocation5 + $0x90] sm:$0xff] %vm3162, %v3103
        %3182 = vst.msk [vmem:[#allocation5 + $0x98] sm:$0xff] %vm3162, %v3105
        %3183 = vst.msk [vmem:[#allocation5 + $0xa0] sm:$0xff] %vm3162, %v3107
        %3184 = vst.msk [vmem:[#allocation5 + $0xa8] sm:$0xff] %vm3162, %v3109
        %3185 = vst.msk [vmem:[#allocation5 + $0xb0] sm:$0xff] %vm3162, %v3111
        %3186 = vst.msk [vmem:[#allocation5 + $0xb8] sm:$0xff] %vm3162, %v3113
        %3187 = vst.msk [vmem:[#allocation5 + $0xc0] sm:$0xff] %vm3162, %v3115
        %3188 = vst.msk [vmem:[#allocation5 + $0xc8] sm:$0xff] %vm3162, %v3117
        %3189 = vst.msk [vmem:[#allocation5 + $0xd0] sm:$0xff] %vm3162, %v3119
        %3190 = vst.msk [vmem:[#allocation5 + $0xd8] sm:$0xff] %vm3162, %v3121
        %3191 = vst.msk [vmem:[#allocation5 + $0xe0] sm:$0xff] %vm3162, %v3123
        %3192 = vst.msk [vmem:[#allocation5 + $0xe8] sm:$0xff] %vm3162, %v3125
        %3193 = vst.msk [vmem:[#allocation5 + $0xf0] sm:$0xff] %vm3162, %v3127
        %3194 = vst.msk [vmem:[#allocation5 + $0xf8] sm:$0xff] %vm3162, %v3129
        %v3195 = vld [vmem:[%s2316 + $0x2] sm:$0xff]
        %v3196 = vld [vmem:[%s2316 + $0xa] sm:$0xff]
        %v3197 = vld [vmem:[%s2316 + $0x1a] sm:$0xff]
        %v3198 = vld [vmem:[%s2316 + $0x22] sm:$0xff]
        %v3199 = vld [vmem:[%s2316 + $0x32] sm:$0xff]
        %v3200 = vld [vmem:[%s2316 + $0x3a] sm:$0xff]
        %v3201 = vld [vmem:[%s2316 + $0x4a] sm:$0xff]
        %v3202 = vld [vmem:[%s2316 + $0x52] sm:$0xff]
        %v3203 = vld [vmem:[%s2316 + $0x62] sm:$0xff]
        %v3204 = vld [vmem:[%s2316 + $0x6a] sm:$0xff]
        %v3205 = vld [vmem:[%s2316 + $0x7a] sm:$0xff]
        %v3206 = vld [vmem:[%s2316 + $0x82] sm:$0xff]
        %v3207 = vld [vmem:[%s2316 + $0x92] sm:$0xff]
        %v3208 = vld [vmem:[%s2316 + $0x9a] sm:$0xff]
        %v3209 = vld [vmem:[%s2316 + $0xaa] sm:$0xff]
        %v3210 = vld [vmem:[%s2316 + $0xb2] sm:$0xff]
        %v3211 = vld [vmem:[%s2316 + $0xc2] sm:$0xff]
        %v3212 = vld [vmem:[%s2316 + $0xca] sm:$0xff]
        %v3213 = vld [vmem:[%s2316 + $0xda] sm:$0xff]
        %v3214 = vld [vmem:[%s2316 + $0xe2] sm:$0xff]
        %v3215 = vld [vmem:[%s2316 + $0xf2] sm:$0xff]
        %v3216 = vld [vmem:[%s2316 + $0xfa] sm:$0xff]
        %v3217 = vld [vmem:[%s2316 + $0x10a] sm:$0xff]
        %v3218 = vld [vmem:[%s2316 + $0x112] sm:$0xff]
        %v3219 = vld [vmem:[%s2316 + $0x122] sm:$0xff]
        %v3220 = vld [vmem:[%s2316 + $0x12a] sm:$0xff]
        %v3221 = vld [vmem:[%s2316 + $0x13a] sm:$0xff]
        %v3222 = vld [vmem:[%s2316 + $0x142] sm:$0xff]
        %v3223 = vld [vmem:[%s2316 + $0x152] sm:$0xff]
        %v3224 = vld [vmem:[%s2316 + $0x15a] sm:$0xff]
        %v3225 = vld [vmem:[%s2316 + $0x16a] sm:$0xff]
        %v3226 = vld [vmem:[%s2316 + $0x172] sm:$0xff]
        %3259 = vrot.lane.b32.xlu0 %v3195, 40
        %v3260 = vpop.permute.xlu0 %3259
        %3261 = vrot.lane.b32.xlu0 %v3196, 40
        %v3262 = vpop.permute.xlu0 %3261
        %3263 = vrot.lane.b32.xlu0 %v3197, 40
        %v3264 = vpop.permute.xlu0 %3263
        %3265 = vrot.lane.b32.xlu0 %v3198, 40
        %v3266 = vpop.permute.xlu0 %3265
        %3267 = vrot.lane.b32.xlu0 %v3199, 40
        %v3268 = vpop.permute.xlu0 %3267
        %3269 = vrot.lane.b32.xlu0 %v3200, 40
        %v3270 = vpop.permute.xlu0 %3269
        %3271 = vrot.lane.b32.xlu0 %v3201, 40
        %v3272 = vpop.permute.xlu0 %3271
        %3273 = vrot.lane.b32.xlu0 %v3202, 40
        %v3274 = vpop.permute.xlu0 %3273
        %3275 = vrot.lane.b32.xlu0 %v3203, 40
        %v3276 = vpop.permute.xlu0 %3275
        %3277 = vrot.lane.b32.xlu0 %v3204, 40
        %v3278 = vpop.permute.xlu0 %3277
        %3279 = vrot.lane.b32.xlu0 %v3205, 40
        %v3280 = vpop.permute.xlu0 %3279
        %3281 = vrot.lane.b32.xlu0 %v3206, 40
        %v3282 = vpop.permute.xlu0 %3281
        %3283 = vrot.lane.b32.xlu0 %v3207, 40
        %v3284 = vpop.permute.xlu0 %3283
        %3285 = vrot.lane.b32.xlu0 %v3208, 40
        %v3286 = vpop.permute.xlu0 %3285
        %3287 = vrot.lane.b32.xlu0 %v3209, 40
        %v3288 = vpop.permute.xlu0 %3287
        %3289 = vrot.lane.b32.xlu0 %v3210, 40
        %v3290 = vpop.permute.xlu0 %3289
        %3291 = vrot.lane.b32.xlu0 %v3211, 40
        %v3292 = vpop.permute.xlu0 %3291
        %3293 = vrot.lane.b32.xlu0 %v3212, 40
        %v3294 = vpop.permute.xlu0 %3293
        %3295 = vrot.lane.b32.xlu0 %v3213, 40
        %v3296 = vpop.permute.xlu0 %3295
        %3297 = vrot.lane.b32.xlu0 %v3214, 40
        %v3298 = vpop.permute.xlu0 %3297
        %3299 = vrot.lane.b32.xlu0 %v3215, 40
        %v3300 = vpop.permute.xlu0 %3299
        %3301 = vrot.lane.b32.xlu0 %v3216, 40
        %v3302 = vpop.permute.xlu0 %3301
        %3303 = vrot.lane.b32.xlu0 %v3217, 40
        %v3304 = vpop.permute.xlu0 %3303
        %3305 = vrot.lane.b32.xlu0 %v3218, 40
        %v3306 = vpop.permute.xlu0 %3305
        %3307 = vrot.lane.b32.xlu0 %v3219, 40
        %v3308 = vpop.permute.xlu0 %3307
        %3309 = vrot.lane.b32.xlu0 %v3220, 40
        %v3310 = vpop.permute.xlu0 %3309
        %3311 = vrot.lane.b32.xlu0 %v3221, 40
        %v3312 = vpop.permute.xlu0 %3311
        %3313 = vrot.lane.b32.xlu0 %v3222, 40
        %v3314 = vpop.permute.xlu0 %3313
        %3315 = vrot.lane.b32.xlu0 %v3223, 40
        %v3316 = vpop.permute.xlu0 %3315
        %3317 = vrot.lane.b32.xlu0 %v3224, 40
        %v3318 = vpop.permute.xlu0 %3317
        %3319 = vrot.lane.b32.xlu0 %v3225, 40
        %v3320 = vpop.permute.xlu0 %3319
        %3321 = vrot.lane.b32.xlu0 %v3226, 40
        %v3322 = vpop.permute.xlu0 %3321
        %vm3355 = vcmask 392512
        %3356 = vst.msk [vmem:[#allocation5] sm:$0xff] %vm3355, %v3260
        %3357 = vst.msk [vmem:[#allocation5 + $0x8] sm:$0xff] %vm3355, %v3262
        %3358 = vst.msk [vmem:[#allocation5 + $0x10] sm:$0xff] %vm3355, %v3264
        %3359 = vst.msk [vmem:[#allocation5 + $0x18] sm:$0xff] %vm3355, %v3266
        %3360 = vst.msk [vmem:[#allocation5 + $0x20] sm:$0xff] %vm3355, %v3268
        %3361 = vst.msk [vmem:[#allocation5 + $0x28] sm:$0xff] %vm3355, %v3270
        %3362 = vst.msk [vmem:[#allocation5 + $0x30] sm:$0xff] %vm3355, %v3272
        %3363 = vst.msk [vmem:[#allocation5 + $0x38] sm:$0xff] %vm3355, %v3274
        %3364 = vst.msk [vmem:[#allocation5 + $0x40] sm:$0xff] %vm3355, %v3276
        %3365 = vst.msk [vmem:[#allocation5 + $0x48] sm:$0xff] %vm3355, %v3278
        %3366 = vst.msk [vmem:[#allocation5 + $0x50] sm:$0xff] %vm3355, %v3280
        %3367 = vst.msk [vmem:[#allocation5 + $0x58] sm:$0xff] %vm3355, %v3282
        %3368 = vst.msk [vmem:[#allocation5 + $0x60] sm:$0xff] %vm3355, %v3284
        %3369 = vst.msk [vmem:[#allocation5 + $0x68] sm:$0xff] %vm3355, %v3286
        %3370 = vst.msk [vmem:[#allocation5 + $0x70] sm:$0xff] %vm3355, %v3288
        %3371 = vst.msk [vmem:[#allocation5 + $0x78] sm:$0xff] %vm3355, %v3290
        %3372 = vst.msk [vmem:[#allocation5 + $0x80] sm:$0xff] %vm3355, %v3292
        %3373 = vst.msk [vmem:[#allocation5 + $0x88] sm:$0xff] %vm3355, %v3294
        %3374 = vst.msk [vmem:[#allocation5 + $0x90] sm:$0xff] %vm3355, %v3296
        %3375 = vst.msk [vmem:[#allocation5 + $0x98] sm:$0xff] %vm3355, %v3298
        %3376 = vst.msk [vmem:[#allocation5 + $0xa0] sm:$0xff] %vm3355, %v3300
        %3377 = vst.msk [vmem:[#allocation5 + $0xa8] sm:$0xff] %vm3355, %v3302
        %3378 = vst.msk [vmem:[#allocation5 + $0xb0] sm:$0xff] %vm3355, %v3304
        %3379 = vst.msk [vmem:[#allocation5 + $0xb8] sm:$0xff] %vm3355, %v3306
        %3380 = vst.msk [vmem:[#allocation5 + $0xc0] sm:$0xff] %vm3355, %v3308
        %3381 = vst.msk [vmem:[#allocation5 + $0xc8] sm:$0xff] %vm3355, %v3310
        %3382 = vst.msk [vmem:[#allocation5 + $0xd0] sm:$0xff] %vm3355, %v3312
        %3383 = vst.msk [vmem:[#allocation5 + $0xd8] sm:$0xff] %vm3355, %v3314
        %3384 = vst.msk [vmem:[#allocation5 + $0xe0] sm:$0xff] %vm3355, %v3316
        %3385 = vst.msk [vmem:[#allocation5 + $0xe8] sm:$0xff] %vm3355, %v3318
        %3386 = vst.msk [vmem:[#allocation5 + $0xf0] sm:$0xff] %vm3355, %v3320
        %3387 = vst.msk [vmem:[#allocation5 + $0xf8] sm:$0xff] %vm3355, %v3322
        %s3388 = scalar_lea.vmem [#allocation3], 48
        %v3389 = vld [vmem:[%s3388] sm:$0xff]
        %v3390 = vld [vmem:[%s3388 + $0x8] sm:$0xff]
        %v3391 = vld [vmem:[%s3388 + $0x18] sm:$0xff]
        %v3392 = vld [vmem:[%s3388 + $0x20] sm:$0xff]
        %v3393 = vld [vmem:[%s3388 + $0x30] sm:$0xff]
        %v3394 = vld [vmem:[%s3388 + $0x38] sm:$0xff]
        %v3395 = vld [vmem:[%s3388 + $0x48] sm:$0xff]
        %v3396 = vld [vmem:[%s3388 + $0x50] sm:$0xff]
        %v3397 = vld [vmem:[%s3388 + $0x60] sm:$0xff]
        %v3398 = vld [vmem:[%s3388 + $0x68] sm:$0xff]
        %v3399 = vld [vmem:[%s3388 + $0x78] sm:$0xff]
        %v3400 = vld [vmem:[%s3388 + $0x80] sm:$0xff]
        %v3401 = vld [vmem:[%s3388 + $0x90] sm:$0xff]
        %v3402 = vld [vmem:[%s3388 + $0x98] sm:$0xff]
        %v3403 = vld [vmem:[%s3388 + $0xa8] sm:$0xff]
        %v3404 = vld [vmem:[%s3388 + $0xb0] sm:$0xff]
        %v3405 = vld [vmem:[%s3388 + $0xc0] sm:$0xff]
        %v3406 = vld [vmem:[%s3388 + $0xc8] sm:$0xff]
        %v3407 = vld [vmem:[%s3388 + $0xd8] sm:$0xff]
        %v3408 = vld [vmem:[%s3388 + $0xe0] sm:$0xff]
        %v3409 = vld [vmem:[%s3388 + $0xf0] sm:$0xff]
        %v3410 = vld [vmem:[%s3388 + $0xf8] sm:$0xff]
        %v3411 = vld [vmem:[%s3388 + $0x108] sm:$0xff]
        %v3412 = vld [vmem:[%s3388 + $0x110] sm:$0xff]
        %v3413 = vld [vmem:[%s3388 + $0x120] sm:$0xff]
        %v3414 = vld [vmem:[%s3388 + $0x128] sm:$0xff]
        %v3415 = vld [vmem:[%s3388 + $0x138] sm:$0xff]
        %v3416 = vld [vmem:[%s3388 + $0x140] sm:$0xff]
        %v3417 = vld [vmem:[%s3388 + $0x150] sm:$0xff]
        %v3418 = vld [vmem:[%s3388 + $0x158] sm:$0xff]
        %v3419 = vld [vmem:[%s3388 + $0x168] sm:$0xff]
        %v3420 = vld [vmem:[%s3388 + $0x170] sm:$0xff]
        %3453 = vrot.lane.b32.xlu0 %v3389, 48
        %v3454 = vpop.permute.xlu0 %3453
        %3455 = vrot.lane.b32.xlu0 %v3390, 48
        %v3456 = vpop.permute.xlu0 %3455
        %3457 = vrot.lane.b32.xlu0 %v3391, 48
        %v3458 = vpop.permute.xlu0 %3457
        %3459 = vrot.lane.b32.xlu0 %v3392, 48
        %v3460 = vpop.permute.xlu0 %3459
        %3461 = vrot.lane.b32.xlu0 %v3393, 48
        %v3462 = vpop.permute.xlu0 %3461
        %3463 = vrot.lane.b32.xlu0 %v3394, 48
        %v3464 = vpop.permute.xlu0 %3463
        %3465 = vrot.lane.b32.xlu0 %v3395, 48
        %v3466 = vpop.permute.xlu0 %3465
        %3467 = vrot.lane.b32.xlu0 %v3396, 48
        %v3468 = vpop.permute.xlu0 %3467
        %3469 = vrot.lane.b32.xlu0 %v3397, 48
        %v3470 = vpop.permute.xlu0 %3469
        %3471 = vrot.lane.b32.xlu0 %v3398, 48
        %v3472 = vpop.permute.xlu0 %3471
        %3473 = vrot.lane.b32.xlu0 %v3399, 48
        %v3474 = vpop.permute.xlu0 %3473
        %3475 = vrot.lane.b32.xlu0 %v3400, 48
        %v3476 = vpop.permute.xlu0 %3475
        %3477 = vrot.lane.b32.xlu0 %v3401, 48
        %v3478 = vpop.permute.xlu0 %3477
        %3479 = vrot.lane.b32.xlu0 %v3402, 48
        %v3480 = vpop.permute.xlu0 %3479
        %3481 = vrot.lane.b32.xlu0 %v3403, 48
        %v3482 = vpop.permute.xlu0 %3481
        %3483 = vrot.lane.b32.xlu0 %v3404, 48
        %v3484 = vpop.permute.xlu0 %3483
        %3485 = vrot.lane.b32.xlu0 %v3405, 48
        %v3486 = vpop.permute.xlu0 %3485
        %3487 = vrot.lane.b32.xlu0 %v3406, 48
        %v3488 = vpop.permute.xlu0 %3487
        %3489 = vrot.lane.b32.xlu0 %v3407, 48
        %v3490 = vpop.permute.xlu0 %3489
        %3491 = vrot.lane.b32.xlu0 %v3408, 48
        %v3492 = vpop.permute.xlu0 %3491
        %3493 = vrot.lane.b32.xlu0 %v3409, 48
        %v3494 = vpop.permute.xlu0 %3493
        %3495 = vrot.lane.b32.xlu0 %v3410, 48
        %v3496 = vpop.permute.xlu0 %3495
        %3497 = vrot.lane.b32.xlu0 %v3411, 48
        %v3498 = vpop.permute.xlu0 %3497
        %3499 = vrot.lane.b32.xlu0 %v3412, 48
        %v3500 = vpop.permute.xlu0 %3499
        %3501 = vrot.lane.b32.xlu0 %v3413, 48
        %v3502 = vpop.permute.xlu0 %3501
        %3503 = vrot.lane.b32.xlu0 %v3414, 48
        %v3504 = vpop.permute.xlu0 %3503
        %3505 = vrot.lane.b32.xlu0 %v3415, 48
        %v3506 = vpop.permute.xlu0 %3505
        %3507 = vrot.lane.b32.xlu0 %v3416, 48
        %v3508 = vpop.permute.xlu0 %3507
        %3509 = vrot.lane.b32.xlu0 %v3417, 48
        %v3510 = vpop.permute.xlu0 %3509
        %3511 = vrot.lane.b32.xlu0 %v3418, 48
        %v3512 = vpop.permute.xlu0 %3511
        %3513 = vrot.lane.b32.xlu0 %v3419, 48
        %v3514 = vpop.permute.xlu0 %3513
        %3515 = vrot.lane.b32.xlu0 %v3420, 48
        %v3516 = vpop.permute.xlu0 %3515
        %vm3549 = vcmask 458112
        %3550 = vst.msk [vmem:[#allocation5] sm:$0xff] %vm3549, %v3454
        %3551 = vst.msk [vmem:[#allocation5 + $0x8] sm:$0xff] %vm3549, %v3456
        %3552 = vst.msk [vmem:[#allocation5 + $0x10] sm:$0xff] %vm3549, %v3458
        %3553 = vst.msk [vmem:[#allocation5 + $0x18] sm:$0xff] %vm3549, %v3460
        %3554 = vst.msk [vmem:[#allocation5 + $0x20] sm:$0xff] %vm3549, %v3462
        %3555 = vst.msk [vmem:[#allocation5 + $0x28] sm:$0xff] %vm3549, %v3464
        %3556 = vst.msk [vmem:[#allocation5 + $0x30] sm:$0xff] %vm3549, %v3466
        %3557 = vst.msk [vmem:[#allocation5 + $0x38] sm:$0xff] %vm3549, %v3468
        %3558 = vst.msk [vmem:[#allocation5 + $0x40] sm:$0xff] %vm3549, %v3470
        %3559 = vst.msk [vmem:[#allocation5 + $0x48] sm:$0xff] %vm3549, %v3472
        %3560 = vst.msk [vmem:[#allocation5 + $0x50] sm:$0xff] %vm3549, %v3474
        %3561 = vst.msk [vmem:[#allocation5 + $0x58] sm:$0xff] %vm3549, %v3476
        %3562 = vst.msk [vmem:[#allocation5 + $0x60] sm:$0xff] %vm3549, %v3478
        %3563 = vst.msk [vmem:[#allocation5 + $0x68] sm:$0xff] %vm3549, %v3480
        %3564 = vst.msk [vmem:[#allocation5 + $0x70] sm:$0xff] %vm3549, %v3482
        %3565 = vst.msk [vmem:[#allocation5 + $0x78] sm:$0xff] %vm3549, %v3484
        %3566 = vst.msk [vmem:[#allocation5 + $0x80] sm:$0xff] %vm3549, %v3486
        %3567 = vst.msk [vmem:[#allocation5 + $0x88] sm:$0xff] %vm3549, %v3488
        %3568 = vst.msk [vmem:[#allocation5 + $0x90] sm:$0xff] %vm3549, %v3490
        %3569 = vst.msk [vmem:[#allocation5 + $0x98] sm:$0xff] %vm3549, %v3492
        %3570 = vst.msk [vmem:[#allocation5 + $0xa0] sm:$0xff] %vm3549, %v3494
        %3571 = vst.msk [vmem:[#allocation5 + $0xa8] sm:$0xff] %vm3549, %v3496
        %3572 = vst.msk [vmem:[#allocation5 + $0xb0] sm:$0xff] %vm3549, %v3498
        %3573 = vst.msk [vmem:[#allocation5 + $0xb8] sm:$0xff] %vm3549, %v3500
        %3574 = vst.msk [vmem:[#allocation5 + $0xc0] sm:$0xff] %vm3549, %v3502
        %3575 = vst.msk [vmem:[#allocation5 + $0xc8] sm:$0xff] %vm3549, %v3504
        %3576 = vst.msk [vmem:[#allocation5 + $0xd0] sm:$0xff] %vm3549, %v3506
        %3577 = vst.msk [vmem:[#allocation5 + $0xd8] sm:$0xff] %vm3549, %v3508
        %3578 = vst.msk [vmem:[#allocation5 + $0xe0] sm:$0xff] %vm3549, %v3510
        %3579 = vst.msk [vmem:[#allocation5 + $0xe8] sm:$0xff] %vm3549, %v3512
        %3580 = vst.msk [vmem:[#allocation5 + $0xf0] sm:$0xff] %vm3549, %v3514
        %3581 = vst.msk [vmem:[#allocation5 + $0xf8] sm:$0xff] %vm3549, %v3516
        %v3582 = vld [vmem:[%s3388 + $0x1] sm:$0xff]
        %v3583 = vld [vmem:[%s3388 + $0x9] sm:$0xff]
        %v3584 = vld [vmem:[%s3388 + $0x19] sm:$0xff]
        %v3585 = vld [vmem:[%s3388 + $0x21] sm:$0xff]
        %v3586 = vld [vmem:[%s3388 + $0x31] sm:$0xff]
        %v3587 = vld [vmem:[%s3388 + $0x39] sm:$0xff]
        %v3588 = vld [vmem:[%s3388 + $0x49] sm:$0xff]
        %v3589 = vld [vmem:[%s3388 + $0x51] sm:$0xff]
        %v3590 = vld [vmem:[%s3388 + $0x61] sm:$0xff]
        %v3591 = vld [vmem:[%s3388 + $0x69] sm:$0xff]
        %v3592 = vld [vmem:[%s3388 + $0x79] sm:$0xff]
        %v3593 = vld [vmem:[%s3388 + $0x81] sm:$0xff]
        %v3594 = vld [vmem:[%s3388 + $0x91] sm:$0xff]
        %v3595 = vld [vmem:[%s3388 + $0x99] sm:$0xff]
        %v3596 = vld [vmem:[%s3388 + $0xa9] sm:$0xff]
        %v3597 = vld [vmem:[%s3388 + $0xb1] sm:$0xff]
        %v3598 = vld [vmem:[%s3388 + $0xc1] sm:$0xff]
        %v3599 = vld [vmem:[%s3388 + $0xc9] sm:$0xff]
        %v3600 = vld [vmem:[%s3388 + $0xd9] sm:$0xff]
        %v3601 = vld [vmem:[%s3388 + $0xe1] sm:$0xff]
        %v3602 = vld [vmem:[%s3388 + $0xf1] sm:$0xff]
        %v3603 = vld [vmem:[%s3388 + $0xf9] sm:$0xff]
        %v3604 = vld [vmem:[%s3388 + $0x109] sm:$0xff]
        %v3605 = vld [vmem:[%s3388 + $0x111] sm:$0xff]
        %v3606 = vld [vmem:[%s3388 + $0x121] sm:$0xff]
        %v3607 = vld [vmem:[%s3388 + $0x129] sm:$0xff]
        %v3608 = vld [vmem:[%s3388 + $0x139] sm:$0xff]
        %v3609 = vld [vmem:[%s3388 + $0x141] sm:$0xff]
        %v3610 = vld [vmem:[%s3388 + $0x151] sm:$0xff]
        %v3611 = vld [vmem:[%s3388 + $0x159] sm:$0xff]
        %v3612 = vld [vmem:[%s3388 + $0x169] sm:$0xff]
        %v3613 = vld [vmem:[%s3388 + $0x171] sm:$0xff]
        %3646 = vrot.lane.b32.xlu0 %v3582, 56
        %v3647 = vpop.permute.xlu0 %3646
        %3648 = vrot.lane.b32.xlu0 %v3583, 56
        %v3649 = vpop.permute.xlu0 %3648
        %3650 = vrot.lane.b32.xlu0 %v3584, 56
        %v3651 = vpop.permute.xlu0 %3650
        %3652 = vrot.lane.b32.xlu0 %v3585, 56
        %v3653 = vpop.permute.xlu0 %3652
        %3654 = vrot.lane.b32.xlu0 %v3586, 56
        %v3655 = vpop.permute.xlu0 %3654
        %3656 = vrot.lane.b32.xlu0 %v3587, 56
        %v3657 = vpop.permute.xlu0 %3656
        %3658 = vrot.lane.b32.xlu0 %v3588, 56
        %v3659 = vpop.permute.xlu0 %3658
        %3660 = vrot.lane.b32.xlu0 %v3589, 56
        %v3661 = vpop.permute.xlu0 %3660
        %3662 = vrot.lane.b32.xlu0 %v3590, 56
        %v3663 = vpop.permute.xlu0 %3662
        %3664 = vrot.lane.b32.xlu0 %v3591, 56
        %v3665 = vpop.permute.xlu0 %3664
        %3666 = vrot.lane.b32.xlu0 %v3592, 56
        %v3667 = vpop.permute.xlu0 %3666
        %3668 = vrot.lane.b32.xlu0 %v3593, 56
        %v3669 = vpop.permute.xlu0 %3668
        %3670 = vrot.lane.b32.xlu0 %v3594, 56
        %v3671 = vpop.permute.xlu0 %3670
        %3672 = vrot.lane.b32.xlu0 %v3595, 56
        %v3673 = vpop.permute.xlu0 %3672
        %3674 = vrot.lane.b32.xlu0 %v3596, 56
        %v3675 = vpop.permute.xlu0 %3674
        %3676 = vrot.lane.b32.xlu0 %v3597, 56
        %v3677 = vpop.permute.xlu0 %3676
        %3678 = vrot.lane.b32.xlu0 %v3598, 56
        %v3679 = vpop.permute.xlu0 %3678
        %3680 = vrot.lane.b32.xlu0 %v3599, 56
        %v3681 = vpop.permute.xlu0 %3680
        %3682 = vrot.lane.b32.xlu0 %v3600, 56
        %v3683 = vpop.permute.xlu0 %3682
        %3684 = vrot.lane.b32.xlu0 %v3601, 56
        %v3685 = vpop.permute.xlu0 %3684
        %3686 = vrot.lane.b32.xlu0 %v3602, 56
        %v3687 = vpop.permute.xlu0 %3686
        %3688 = vrot.lane.b32.xlu0 %v3603, 56
        %v3689 = vpop.permute.xlu0 %3688
        %3690 = vrot.lane.b32.xlu0 %v3604, 56
        %v3691 = vpop.permute.xlu0 %3690
        %3692 = vrot.lane.b32.xlu0 %v3605, 56
        %v3693 = vpop.permute.xlu0 %3692
        %3694 = vrot.lane.b32.xlu0 %v3606, 56
        %v3695 = vpop.permute.xlu0 %3694
        %3696 = vrot.lane.b32.xlu0 %v3607, 56
        %v3697 = vpop.permute.xlu0 %3696
        %3698 = vrot.lane.b32.xlu0 %v3608, 56
        %v3699 = vpop.permute.xlu0 %3698
        %3700 = vrot.lane.b32.xlu0 %v3609, 56
        %v3701 = vpop.permute.xlu0 %3700
        %3702 = vrot.lane.b32.xlu0 %v3610, 56
        %v3703 = vpop.permute.xlu0 %3702
        %3704 = vrot.lane.b32.xlu0 %v3611, 56
        %v3705 = vpop.permute.xlu0 %3704
        %3706 = vrot.lane.b32.xlu0 %v3612, 56
        %v3707 = vpop.permute.xlu0 %3706
        %3708 = vrot.lane.b32.xlu0 %v3613, 56
        %v3709 = vpop.permute.xlu0 %3708
        %vm3742 = vcmask 523712
        %3743 = vst.msk [vmem:[#allocation5] sm:$0xff] %vm3742, %v3647
        %3744 = vst.msk [vmem:[#allocation5 + $0x8] sm:$0xff] %vm3742, %v3649
        %3745 = vst.msk [vmem:[#allocation5 + $0x10] sm:$0xff] %vm3742, %v3651
        %3746 = vst.msk [vmem:[#allocation5 + $0x18] sm:$0xff] %vm3742, %v3653
        %3747 = vst.msk [vmem:[#allocation5 + $0x20] sm:$0xff] %vm3742, %v3655
        %3748 = vst.msk [vmem:[#allocation5 + $0x28] sm:$0xff] %vm3742, %v3657
        %3749 = vst.msk [vmem:[#allocation5 + $0x30] sm:$0xff] %vm3742, %v3659
        %3750 = vst.msk [vmem:[#allocation5 + $0x38] sm:$0xff] %vm3742, %v3661
        %3751 = vst.msk [vmem:[#allocation5 + $0x40] sm:$0xff] %vm3742, %v3663
        %3752 = vst.msk [vmem:[#allocation5 + $0x48] sm:$0xff] %vm3742, %v3665
        %3753 = vst.msk [vmem:[#allocation5 + $0x50] sm:$0xff] %vm3742, %v3667
        %3754 = vst.msk [vmem:[#allocation5 + $0x58] sm:$0xff] %vm3742, %v3669
        %3755 = vst.msk [vmem:[#allocation5 + $0x60] sm:$0xff] %vm3742, %v3671
        %3756 = vst.msk [vmem:[#allocation5 + $0x68] sm:$0xff] %vm3742, %v3673
        %3757 = vst.msk [vmem:[#allocation5 + $0x70] sm:$0xff] %vm3742, %v3675
        %3758 = vst.msk [vmem:[#allocation5 + $0x78] sm:$0xff] %vm3742, %v3677
        %3759 = vst.msk [vmem:[#allocation5 + $0x80] sm:$0xff] %vm3742, %v3679
        %3760 = vst.msk [vmem:[#allocation5 + $0x88] sm:$0xff] %vm3742, %v3681
        %3761 = vst.msk [vmem:[#allocation5 + $0x90] sm:$0xff] %vm3742, %v3683
        %3762 = vst.msk [vmem:[#allocation5 + $0x98] sm:$0xff] %vm3742, %v3685
        %3763 = vst.msk [vmem:[#allocation5 + $0xa0] sm:$0xff] %vm3742, %v3687
        %3764 = vst.msk [vmem:[#allocation5 + $0xa8] sm:$0xff] %vm3742, %v3689
        %3765 = vst.msk [vmem:[#allocation5 + $0xb0] sm:$0xff] %vm3742, %v3691
        %3766 = vst.msk [vmem:[#allocation5 + $0xb8] sm:$0xff] %vm3742, %v3693
        %3767 = vst.msk [vmem:[#allocation5 + $0xc0] sm:$0xff] %vm3742, %v3695
        %3768 = vst.msk [vmem:[#allocation5 + $0xc8] sm:$0xff] %vm3742, %v3697
        %3769 = vst.msk [vmem:[#allocation5 + $0xd0] sm:$0xff] %vm3742, %v3699
        %3770 = vst.msk [vmem:[#allocation5 + $0xd8] sm:$0xff] %vm3742, %v3701
        %3771 = vst.msk [vmem:[#allocation5 + $0xe0] sm:$0xff] %vm3742, %v3703
        %3772 = vst.msk [vmem:[#allocation5 + $0xe8] sm:$0xff] %vm3742, %v3705
        %3773 = vst.msk [vmem:[#allocation5 + $0xf0] sm:$0xff] %vm3742, %v3707
        %3774 = vst.msk [vmem:[#allocation5 + $0xf8] sm:$0xff] %vm3742, %v3709
        %v3775 = vld [vmem:[%s3388 + $0x2] sm:$0xff]
        %v3776 = vld [vmem:[%s3388 + $0xa] sm:$0xff]
        %v3777 = vld [vmem:[%s3388 + $0x1a] sm:$0xff]
        %v3778 = vld [vmem:[%s3388 + $0x22] sm:$0xff]
        %v3779 = vld [vmem:[%s3388 + $0x32] sm:$0xff]
        %v3780 = vld [vmem:[%s3388 + $0x3a] sm:$0xff]
        %v3781 = vld [vmem:[%s3388 + $0x4a] sm:$0xff]
        %v3782 = vld [vmem:[%s3388 + $0x52] sm:$0xff]
        %v3783 = vld [vmem:[%s3388 + $0x62] sm:$0xff]
        %v3784 = vld [vmem:[%s3388 + $0x6a] sm:$0xff]
        %v3785 = vld [vmem:[%s3388 + $0x7a] sm:$0xff]
        %v3786 = vld [vmem:[%s3388 + $0x82] sm:$0xff]
        %v3787 = vld [vmem:[%s3388 + $0x92] sm:$0xff]
        %v3788 = vld [vmem:[%s3388 + $0x9a] sm:$0xff]
        %v3789 = vld [vmem:[%s3388 + $0xaa] sm:$0xff]
        %v3790 = vld [vmem:[%s3388 + $0xb2] sm:$0xff]
        %v3791 = vld [vmem:[%s3388 + $0xc2] sm:$0xff]
        %v3792 = vld [vmem:[%s3388 + $0xca] sm:$0xff]
        %v3793 = vld [vmem:[%s3388 + $0xda] sm:$0xff]
        %v3794 = vld [vmem:[%s3388 + $0xe2] sm:$0xff]
        %v3795 = vld [vmem:[%s3388 + $0xf2] sm:$0xff]
        %v3796 = vld [vmem:[%s3388 + $0xfa] sm:$0xff]
        %v3797 = vld [vmem:[%s3388 + $0x10a] sm:$0xff]
        %v3798 = vld [vmem:[%s3388 + $0x112] sm:$0xff]
        %v3799 = vld [vmem:[%s3388 + $0x122] sm:$0xff]
        %v3800 = vld [vmem:[%s3388 + $0x12a] sm:$0xff]
        %v3801 = vld [vmem:[%s3388 + $0x13a] sm:$0xff]
        %v3802 = vld [vmem:[%s3388 + $0x142] sm:$0xff]
        %v3803 = vld [vmem:[%s3388 + $0x152] sm:$0xff]
        %v3804 = vld [vmem:[%s3388 + $0x15a] sm:$0xff]
        %v3805 = vld [vmem:[%s3388 + $0x16a] sm:$0xff]
        %v3806 = vld [vmem:[%s3388 + $0x172] sm:$0xff]
        %3839 = vrot.lane.b32.xlu0 %v3775, 64
        %v3840 = vpop.permute.xlu0 %3839
        %3841 = vrot.lane.b32.xlu0 %v3776, 64
        %v3842 = vpop.permute.xlu0 %3841
        %3843 = vrot.lane.b32.xlu0 %v3777, 64
        %v3844 = vpop.permute.xlu0 %3843
        %3845 = vrot.lane.b32.xlu0 %v3778, 64
        %v3846 = vpop.permute.xlu0 %3845
        %3847 = vrot.lane.b32.xlu0 %v3779, 64
        %v3848 = vpop.permute.xlu0 %3847
        %3849 = vrot.lane.b32.xlu0 %v3780, 64
        %v3850 = vpop.permute.xlu0 %3849
        %3851 = vrot.lane.b32.xlu0 %v3781, 64
        %v3852 = vpop.permute.xlu0 %3851
        %3853 = vrot.lane.b32.xlu0 %v3782, 64
        %v3854 = vpop.permute.xlu0 %3853
        %3855 = vrot.lane.b32.xlu0 %v3783, 64
        %v3856 = vpop.permute.xlu0 %3855
        %3857 = vrot.lane.b32.xlu0 %v3784, 64
        %v3858 = vpop.permute.xlu0 %3857
        %3859 = vrot.lane.b32.xlu0 %v3785, 64
        %v3860 = vpop.permute.xlu0 %3859
        %3861 = vrot.lane.b32.xlu0 %v3786, 64
        %v3862 = vpop.permute.xlu0 %3861
        %3863 = vrot.lane.b32.xlu0 %v3787, 64
        %v3864 = vpop.permute.xlu0 %3863
        %3865 = vrot.lane.b32.xlu0 %v3788, 64
        %v3866 = vpop.permute.xlu0 %3865
        %3867 = vrot.lane.b32.xlu0 %v3789, 64
        %v3868 = vpop.permute.xlu0 %3867
        %3869 = vrot.lane.b32.xlu0 %v3790, 64
        %v3870 = vpop.permute.xlu0 %3869
        %3871 = vrot.lane.b32.xlu0 %v3791, 64
        %v3872 = vpop.permute.xlu0 %3871
        %3873 = vrot.lane.b32.xlu0 %v3792, 64
        %v3874 = vpop.permute.xlu0 %3873
        %3875 = vrot.lane.b32.xlu0 %v3793, 64
        %v3876 = vpop.permute.xlu0 %3875
        %3877 = vrot.lane.b32.xlu0 %v3794, 64
        %v3878 = vpop.permute.xlu0 %3877
        %3879 = vrot.lane.b32.xlu0 %v3795, 64
        %v3880 = vpop.permute.xlu0 %3879
        %3881 = vrot.lane.b32.xlu0 %v3796, 64
        %v3882 = vpop.permute.xlu0 %3881
        %3883 = vrot.lane.b32.xlu0 %v3797, 64
        %v3884 = vpop.permute.xlu0 %3883
        %3885 = vrot.lane.b32.xlu0 %v3798, 64
        %v3886 = vpop.permute.xlu0 %3885
        %3887 = vrot.lane.b32.xlu0 %v3799, 64
        %v3888 = vpop.permute.xlu0 %3887
        %3889 = vrot.lane.b32.xlu0 %v3800, 64
        %v3890 = vpop.permute.xlu0 %3889
        %3891 = vrot.lane.b32.xlu0 %v3801, 64
        %v3892 = vpop.permute.xlu0 %3891
        %3893 = vrot.lane.b32.xlu0 %v3802, 64
        %v3894 = vpop.permute.xlu0 %3893
        %3895 = vrot.lane.b32.xlu0 %v3803, 64
        %v3896 = vpop.permute.xlu0 %3895
        %3897 = vrot.lane.b32.xlu0 %v3804, 64
        %v3898 = vpop.permute.xlu0 %3897
        %3899 = vrot.lane.b32.xlu0 %v3805, 64
        %v3900 = vpop.permute.xlu0 %3899
        %3901 = vrot.lane.b32.xlu0 %v3806, 64
        %v3902 = vpop.permute.xlu0 %3901
        %vm3935 = vcmask 589312
        %3936 = vst.msk [vmem:[#allocation5] sm:$0xff] %vm3935, %v3840
        %3937 = vst.msk [vmem:[#allocation5 + $0x8] sm:$0xff] %vm3935, %v3842
        %3938 = vst.msk [vmem:[#allocation5 + $0x10] sm:$0xff] %vm3935, %v3844
        %3939 = vst.msk [vmem:[#allocation5 + $0x18] sm:$0xff] %vm3935, %v3846
        %3940 = vst.msk [vmem:[#allocation5 + $0x20] sm:$0xff] %vm3935, %v3848
        %3941 = vst.msk [vmem:[#allocation5 + $0x28] sm:$0xff] %vm3935, %v3850
        %3942 = vst.msk [vmem:[#allocation5 + $0x30] sm:$0xff] %vm3935, %v3852
        %3943 = vst.msk [vmem:[#allocation5 + $0x38] sm:$0xff] %vm3935, %v3854
        %3944 = vst.msk [vmem:[#allocation5 + $0x40] sm:$0xff] %vm3935, %v3856
        %3945 = vst.msk [vmem:[#allocation5 + $0x48] sm:$0xff] %vm3935, %v3858
        %3946 = vst.msk [vmem:[#allocation5 + $0x50] sm:$0xff] %vm3935, %v3860
        %3947 = vst.msk [vmem:[#allocation5 + $0x58] sm:$0xff] %vm3935, %v3862
        %3948 = vst.msk [vmem:[#allocation5 + $0x60] sm:$0xff] %vm3935, %v3864
        %3949 = vst.msk [vmem:[#allocation5 + $0x68] sm:$0xff] %vm3935, %v3866
        %3950 = vst.msk [vmem:[#allocation5 + $0x70] sm:$0xff] %vm3935, %v3868
        %3951 = vst.msk [vmem:[#allocation5 + $0x78] sm:$0xff] %vm3935, %v3870
        %3952 = vst.msk [vmem:[#allocation5 + $0x80] sm:$0xff] %vm3935, %v3872
        %3953 = vst.msk [vmem:[#allocation5 + $0x88] sm:$0xff] %vm3935, %v3874
        %3954 = vst.msk [vmem:[#allocation5 + $0x90] sm:$0xff] %vm3935, %v3876
        %3955 = vst.msk [vmem:[#allocation5 + $0x98] sm:$0xff] %vm3935, %v3878
        %3956 = vst.msk [vmem:[#allocation5 + $0xa0] sm:$0xff] %vm3935, %v3880
        %3957 = vst.msk [vmem:[#allocation5 + $0xa8] sm:$0xff] %vm3935, %v3882
        %3958 = vst.msk [vmem:[#allocation5 + $0xb0] sm:$0xff] %vm3935, %v3884
        %3959 = vst.msk [vmem:[#allocation5 + $0xb8] sm:$0xff] %vm3935, %v3886
        %3960 = vst.msk [vmem:[#allocation5 + $0xc0] sm:$0xff] %vm3935, %v3888
        %3961 = vst.msk [vmem:[#allocation5 + $0xc8] sm:$0xff] %vm3935, %v3890
        %3962 = vst.msk [vmem:[#allocation5 + $0xd0] sm:$0xff] %vm3935, %v3892
        %3963 = vst.msk [vmem:[#allocation5 + $0xd8] sm:$0xff] %vm3935, %v3894
        %3964 = vst.msk [vmem:[#allocation5 + $0xe0] sm:$0xff] %vm3935, %v3896
        %3965 = vst.msk [vmem:[#allocation5 + $0xe8] sm:$0xff] %vm3935, %v3898
        %3966 = vst.msk [vmem:[#allocation5 + $0xf0] sm:$0xff] %vm3935, %v3900
        %3967 = vst.msk [vmem:[#allocation5 + $0xf8] sm:$0xff] %vm3935, %v3902
        %v3968 = vld [vmem:[#allocation5] sm:$0xff]
        %v3969 = vld [vmem:[#allocation5 + $0x8] sm:$0xff]
        %v3970 = vld [vmem:[#allocation5 + $0x10] sm:$0xff]
        %v3971 = vld [vmem:[#allocation5 + $0x18] sm:$0xff]
        %v3972 = vld [vmem:[#allocation5 + $0x20] sm:$0xff]
        %v3973 = vld [vmem:[#allocation5 + $0x28] sm:$0xff]
        %v3974 = vld [vmem:[#allocation5 + $0x30] sm:$0xff]
        %v3975 = vld [vmem:[#allocation5 + $0x38] sm:$0xff]
        %v3976 = vld [vmem:[#allocation5 + $0x40] sm:$0xff]
        %v3977 = vld [vmem:[#allocation5 + $0x48] sm:$0xff]
        %v3978 = vld [vmem:[#allocation5 + $0x50] sm:$0xff]
        %v3979 = vld [vmem:[#allocation5 + $0x58] sm:$0xff]
        %v3980 = vld [vmem:[#allocation5 + $0x60] sm:$0xff]
        %v3981 = vld [vmem:[#allocation5 + $0x68] sm:$0xff]
        %v3982 = vld [vmem:[#allocation5 + $0x70] sm:$0xff]
        %v3983 = vld [vmem:[#allocation5 + $0x78] sm:$0xff]
        %v3984 = vld [vmem:[#allocation5 + $0x80] sm:$0xff]
        %v3985 = vld [vmem:[#allocation5 + $0x88] sm:$0xff]
        %v3986 = vld [vmem:[#allocation5 + $0x90] sm:$0xff]
        %v3987 = vld [vmem:[#allocation5 + $0x98] sm:$0xff]
        %v3988 = vld [vmem:[#allocation5 + $0xa0] sm:$0xff]
        %v3989 = vld [vmem:[#allocation5 + $0xa8] sm:$0xff]
        %v3990 = vld [vmem:[#allocation5 + $0xb0] sm:$0xff]
        %v3991 = vld [vmem:[#allocation5 + $0xb8] sm:$0xff]
        %v3992 = vld [vmem:[#allocation5 + $0xc0] sm:$0xff]
        %v3993 = vld [vmem:[#allocation5 + $0xc8] sm:$0xff]
        %v3994 = vld [vmem:[#allocation5 + $0xd0] sm:$0xff]
        %v3995 = vld [vmem:[#allocation5 + $0xd8] sm:$0xff]
        %v3996 = vld [vmem:[#allocation5 + $0xe0] sm:$0xff]
        %v3997 = vld [vmem:[#allocation5 + $0xe8] sm:$0xff]
        %v3998 = vld [vmem:[#allocation5 + $0xf0] sm:$0xff]
        %v3999 = vld [vmem:[#allocation5 + $0xf8] sm:$0xff]
        %v4001 = vperm.slane %v2358, 0
        %vm4003 = vcmask 588800
        %v4005 = vsel %vm4003, %v3968, 0
        %v4008 = vsel %vm4003, %v3969, 0
        %v4011 = vsel %vm4003, %v3970, 0
        %v4014 = vsel %vm4003, %v3971, 0
        %v4017 = vsel %vm4003, %v3972, 0
        %v4020 = vsel %vm4003, %v3973, 0
        %v4023 = vsel %vm4003, %v3974, 0
        %v4026 = vsel %vm4003, %v3975, 0
        %v4029 = vsel %vm4003, %v3976, 0
        %v4032 = vsel %vm4003, %v3977, 0
        %v4035 = vsel %vm4003, %v3978, 0
        %v4038 = vsel %vm4003, %v3979, 0
        %v4041 = vsel %vm4003, %v3980, 0
        %v4044 = vsel %vm4003, %v3981, 0
        %v4047 = vsel %vm4003, %v3982, 0
        %v4050 = vsel %vm4003, %v3983, 0
        %v4053 = vsel %vm4003, %v3984, 0
        %v4056 = vsel %vm4003, %v3985, 0
        %v4059 = vsel %vm4003, %v3986, 0
        %v4062 = vsel %vm4003, %v3987, 0
        %v4065 = vsel %vm4003, %v3988, 0
        %v4068 = vsel %vm4003, %v3989, 0
        %v4071 = vsel %vm4003, %v3990, 0
        %v4074 = vsel %vm4003, %v3991, 0
        %v4077 = vsel %vm4003, %v3992, 0
        %v4080 = vsel %vm4003, %v3993, 0
        %v4083 = vsel %vm4003, %v3994, 0
        %v4086 = vsel %vm4003, %v3995, 0
        %v4089 = vsel %vm4003, %v3996, 0
        %v4092 = vsel %vm4003, %v3997, 0
        %v4095 = vsel %vm4003, %v3998, 0
        %v4098 = vsel %vm4003, %v3999, 0
        %4100 = vmatpush.msra.mxu0 0.0
        %4101 = vmatpush.msra.mxu0 0.0
        %4102 = vmatpush.msra.mxu0 0.0
        %4103 = vmatpush.msra.mxu0 0.0
        %4104 = vmatpush.msra.mxu0 0.0
        %4105 = vmatpush.msra.mxu0 0.0
        %4106 = vmatpush.msra.mxu0 0.0
        %4107 = vmatpush.msra.mxu0 %v2357
        %4108 = vmatpush.msra.mxu0 %v2356
        %4109 = vmatpush.msra.mxu0 %v2355
        %4110 = vmatpush.msra.mxu0 %v2354
        %4111 = vmatpush.msra.mxu0 %v2353
        %4112 = vmatpush.msra.mxu0 %v2352
        %4113 = vmatpush.msra.mxu0 %v2351
        %4114 = vmatpush.msra.mxu0 %v2350
        %4115 = vmatpush.msra.mxu0 %v2349
        %4116 = vmatmul.f32.gmra.mxu0 %v4005
        %v4117 = vpop.f32.mrf.mxu0
        %v4118 = vadd.f32 %v4001, %v4117
        %4119 = vmatmul.f32.gmra.mxu0 %v4008
        %v4120 = vpop.f32.mrf.mxu0
        %v4121 = vadd.f32 %v4001, %v4120
        %4122 = vmatmul.f32.gmra.mxu0 %v4011
        %v4123 = vpop.f32.mrf.mxu0
        %v4124 = vadd.f32 %v4001, %v4123
        %4125 = vmatmul.f32.gmra.mxu0 %v4014
        %v4126 = vpop.f32.mrf.mxu0
        %v4127 = vadd.f32 %v4001, %v4126
        %4128 = vmatmul.f32.gmra.mxu0 %v4017
        %v4129 = vpop.f32.mrf.mxu0
        %v4130 = vadd.f32 %v4001, %v4129
        %4131 = vmatmul.f32.gmra.mxu0 %v4020
        %v4132 = vpop.f32.mrf.mxu0
        %v4133 = vadd.f32 %v4001, %v4132
        %4134 = vmatmul.f32.gmra.mxu0 %v4023
        %v4135 = vpop.f32.mrf.mxu0
        %v4136 = vadd.f32 %v4001, %v4135
        %4137 = vmatmul.f32.gmra.mxu0 %v4026
        %v4138 = vpop.f32.mrf.mxu0
        %v4139 = vadd.f32 %v4001, %v4138
        %4140 = vmatmul.f32.gmra.mxu0 %v4029
        %v4141 = vpop.f32.mrf.mxu0
        %v4142 = vadd.f32 %v4001, %v4141
        %4143 = vmatmul.f32.gmra.mxu0 %v4032
        %v4144 = vpop.f32.mrf.mxu0
        %v4145 = vadd.f32 %v4001, %v4144
        %4146 = vmatmul.f32.gmra.mxu0 %v4035
        %v4147 = vpop.f32.mrf.mxu0
        %v4148 = vadd.f32 %v4001, %v4147
        %4149 = vmatmul.f32.gmra.mxu0 %v4038
        %v4150 = vpop.f32.mrf.mxu0
        %v4151 = vadd.f32 %v4001, %v4150
        %4152 = vmatmul.f32.gmra.mxu0 %v4041
        %v4153 = vpop.f32.mrf.mxu0
        %v4154 = vadd.f32 %v4001, %v4153
        %4155 = vmatmul.f32.gmra.mxu0 %v4044
        %v4156 = vpop.f32.mrf.mxu0
        %v4157 = vadd.f32 %v4001, %v4156
        %4158 = vmatmul.f32.gmra.mxu0 %v4047
        %v4159 = vpop.f32.mrf.mxu0
        %v4160 = vadd.f32 %v4001, %v4159
        %4161 = vmatmul.f32.gmra.mxu0 %v4050
        %v4162 = vpop.f32.mrf.mxu0
        %v4163 = vadd.f32 %v4001, %v4162
        %4164 = vmatmul.f32.gmra.mxu0 %v4053
        %v4165 = vpop.f32.mrf.mxu0
        %v4166 = vadd.f32 %v4001, %v4165
        %4167 = vmatmul.f32.gmra.mxu0 %v4056
        %v4168 = vpop.f32.mrf.mxu0
        %v4169 = vadd.f32 %v4001, %v4168
        %4170 = vmatmul.f32.gmra.mxu0 %v4059
        %v4171 = vpop.f32.mrf.mxu0
        %v4172 = vadd.f32 %v4001, %v4171
        %4173 = vmatmul.f32.gmra.mxu0 %v4062
        %v4174 = vpop.f32.mrf.mxu0
        %v4175 = vadd.f32 %v4001, %v4174
        %4176 = vmatmul.f32.gmra.mxu0 %v4065
        %v4177 = vpop.f32.mrf.mxu0
        %v4178 = vadd.f32 %v4001, %v4177
        %4179 = vmatmul.f32.gmra.mxu0 %v4068
        %v4180 = vpop.f32.mrf.mxu0
        %v4181 = vadd.f32 %v4001, %v4180
        %4182 = vmatmul.f32.gmra.mxu0 %v4071
        %v4183 = vpop.f32.mrf.mxu0
        %v4184 = vadd.f32 %v4001, %v4183
        %4185 = vmatmul.f32.gmra.mxu0 %v4074
        %v4186 = vpop.f32.mrf.mxu0
        %v4187 = vadd.f32 %v4001, %v4186
        %4188 = vmatmul.f32.gmra.mxu0 %v4077
        %v4189 = vpop.f32.mrf.mxu0
        %v4190 = vadd.f32 %v4001, %v4189
        %4191 = vmatmul.f32.gmra.mxu0 %v4080
        %v4192 = vpop.f32.mrf.mxu0
        %v4193 = vadd.f32 %v4001, %v4192
        %4194 = vmatmul.f32.gmra.mxu0 %v4083
        %v4195 = vpop.f32.mrf.mxu0
        %v4196 = vadd.f32 %v4001, %v4195
        %4197 = vmatmul.f32.gmra.mxu0 %v4086
        %v4198 = vpop.f32.mrf.mxu0
        %v4199 = vadd.f32 %v4001, %v4198
        %4200 = vmatmul.f32.gmra.mxu0 %v4089
        %v4201 = vpop.f32.mrf.mxu0
        %v4202 = vadd.f32 %v4001, %v4201
        %4203 = vmatmul.f32.gmra.mxu0 %v4092
        %v4204 = vpop.f32.mrf.mxu0
        %v4205 = vadd.f32 %v4001, %v4204
        %4206 = vmatmul.f32.gmra.mxu0 %v4095
        %v4207 = vpop.f32.mrf.mxu0
        %v4208 = vadd.f32 %v4001, %v4207
        %4209 = vmatmul.f32.gmra.mxu0 %v4098
        %v4210 = vpop.f32.mrf.mxu0
        %v4211 = vadd.f32 %v4001, %v4210
        %4212 = vdwg.mxu0
        %v4213 = vmax.f32 %v4118, 0.0
        %v4214 = vmax.f32 %v4121, 0.0
        %v4215 = vmax.f32 %v4124, 0.0
        %v4216 = vmax.f32 %v4127, 0.0
        %v4217 = vmax.f32 %v4130, 0.0
        %v4218 = vmax.f32 %v4133, 0.0
        %v4219 = vmax.f32 %v4136, 0.0
        %v4220 = vmax.f32 %v4139, 0.0
        %v4221 = vmax.f32 %v4142, 0.0
        %v4222 = vmax.f32 %v4145, 0.0
        %v4223 = vmax.f32 %v4148, 0.0
        %v4224 = vmax.f32 %v4151, 0.0
        %v4225 = vmax.f32 %v4154, 0.0
        %v4226 = vmax.f32 %v4157, 0.0
        %v4227 = vmax.f32 %v4160, 0.0
        %v4228 = vmax.f32 %v4163, 0.0
        %v4229 = vmax.f32 %v4166, 0.0
        %v4230 = vmax.f32 %v4169, 0.0
        %v4231 = vmax.f32 %v4172, 0.0
        %v4232 = vmax.f32 %v4175, 0.0
        %v4233 = vmax.f32 %v4178, 0.0
        %v4234 = vmax.f32 %v4181, 0.0
        %v4235 = vmax.f32 %v4184, 0.0
        %v4236 = vmax.f32 %v4187, 0.0
        %v4237 = vmax.f32 %v4190, 0.0
        %v4238 = vmax.f32 %v4193, 0.0
        %v4239 = vmax.f32 %v4196, 0.0
        %v4240 = vmax.f32 %v4199, 0.0
        %v4241 = vmax.f32 %v4202, 0.0
        %v4242 = vmax.f32 %v4205, 0.0
        %v4243 = vmax.f32 %v4208, 0.0
        %v4244 = vmax.f32 %v4211, 0.0
        %4245 = vst.msk [vmem:[%s262] sm:$0xff] %vm2270, %v4213
        %4246 = vst.msk [vmem:[%s262 + $0x8] sm:$0xff] %vm2270, %v4214
        %4247 = vst.msk [vmem:[%s262 + $0x10] sm:$0xff] %vm2270, %v4215
        %4248 = vst.msk [vmem:[%s262 + $0x18] sm:$0xff] %vm2270, %v4216
        %4249 = vst.msk [vmem:[%s262 + $0x20] sm:$0xff] %vm2270, %v4217
        %4250 = vst.msk [vmem:[%s262 + $0x28] sm:$0xff] %vm2270, %v4218
        %4251 = vst.msk [vmem:[%s262 + $0x30] sm:$0xff] %vm2270, %v4219
        %4252 = vst.msk [vmem:[%s262 + $0x38] sm:$0xff] %vm2270, %v4220
        %4253 = vst.msk [vmem:[%s262 + $0x40] sm:$0xff] %vm2270, %v4221
        %4254 = vst.msk [vmem:[%s262 + $0x48] sm:$0xff] %vm2270, %v4222
        %4255 = vst.msk [vmem:[%s262 + $0x50] sm:$0xff] %vm2270, %v4223
        %4256 = vst.msk [vmem:[%s262 + $0x58] sm:$0xff] %vm2270, %v4224
        %4257 = vst.msk [vmem:[%s262 + $0x60] sm:$0xff] %vm2270, %v4225
        %4258 = vst.msk [vmem:[%s262 + $0x68] sm:$0xff] %vm2270, %v4226
        %4259 = vst.msk [vmem:[%s262 + $0x70] sm:$0xff] %vm2270, %v4227
        %4260 = vst.msk [vmem:[%s262 + $0x78] sm:$0xff] %vm2270, %v4228
        %4261 = vst.msk [vmem:[%s262 + $0x80] sm:$0xff] %vm2270, %v4229
        %4262 = vst.msk [vmem:[%s262 + $0x88] sm:$0xff] %vm2270, %v4230
        %4263 = vst.msk [vmem:[%s262 + $0x90] sm:$0xff] %vm2270, %v4231
        %4264 = vst.msk [vmem:[%s262 + $0x98] sm:$0xff] %vm2270, %v4232
        %4265 = vst.msk [vmem:[%s262 + $0xa0] sm:$0xff] %vm2270, %v4233
        %4266 = vst.msk [vmem:[%s262 + $0xa8] sm:$0xff] %vm2270, %v4234
        %4267 = vst.msk [vmem:[%s262 + $0xb0] sm:$0xff] %vm2270, %v4235
        %4268 = vst.msk [vmem:[%s262 + $0xb8] sm:$0xff] %vm2270, %v4236
        %4269 = vst.msk [vmem:[%s262 + $0xc0] sm:$0xff] %vm2270, %v4237
        %4270 = vst.msk [vmem:[%s262 + $0xc8] sm:$0xff] %vm2270, %v4238
        %4271 = vst.msk [vmem:[%s262 + $0xd0] sm:$0xff] %vm2270, %v4239
        %4272 = vst.msk [vmem:[%s262 + $0xd8] sm:$0xff] %vm2270, %v4240
        %4273 = vst.msk [vmem:[%s262 + $0xe0] sm:$0xff] %vm2270, %v4241
        %4274 = vst.msk [vmem:[%s262 + $0xe8] sm:$0xff] %vm2270, %v4242
        %4275 = vst.msk [vmem:[%s262 + $0xf0] sm:$0xff] %vm2270, %v4243
        %4276 = vst.msk [vmem:[%s262 + $0xf8] sm:$0xff] %vm2270, %v4244
        %v4277 = vsel %vm2270, %v4213, -inf
        %v4278 = vsel %vm2270, %v4215, -inf
        %v4279 = vmax.f32 %v4277, %v4278
        %v4280 = vsel %vm2270, %v4214, -inf
        %v4281 = vsel %vm2270, %v4216, -inf
        %v4282 = vmax.f32 %v4280, %v4281
        %v4283 = vsel %vm2270, %v4217, -inf
        %v4284 = vsel %vm2270, %v4219, -inf
        %v4285 = vmax.f32 %v4283, %v4284
        %v4286 = vsel %vm2270, %v4218, -inf
        %v4287 = vsel %vm2270, %v4220, -inf
        %v4288 = vmax.f32 %v4286, %v4287
        %v4289 = vsel %vm2270, %v4221, -inf
        %v4290 = vsel %vm2270, %v4223, -inf
        %v4291 = vmax.f32 %v4289, %v4290
        %v4292 = vsel %vm2270, %v4222, -inf
        %v4293 = vsel %vm2270, %v4224, -inf
        %v4294 = vmax.f32 %v4292, %v4293
        %v4295 = vsel %vm2270, %v4225, -inf
        %v4296 = vsel %vm2270, %v4227, -inf
        %v4297 = vmax.f32 %v4295, %v4296
        %v4298 = vsel %vm2270, %v4226, -inf
        %v4299 = vsel %vm2270, %v4228, -inf
        %v4300 = vmax.f32 %v4298, %v4299
        %v4301 = vsel %vm2270, %v4229, -inf
        %v4302 = vsel %vm2270, %v4231, -inf
        %v4303 = vmax.f32 %v4301, %v4302
        %v4304 = vsel %vm2270, %v4230, -inf
        %v4305 = vsel %vm2270, %v4232, -inf
        %v4306 = vmax.f32 %v4304, %v4305
        %v4307 = vsel %vm2270, %v4233, -inf
        %v4308 = vsel %vm2270, %v4235, -inf
        %v4309 = vmax.f32 %v4307, %v4308
        %v4310 = vsel %vm2270, %v4234, -inf
        %v4311 = vsel %vm2270, %v4236, -inf
        %v4312 = vmax.f32 %v4310, %v4311
        %v4313 = vsel %vm2270, %v4237, -inf
        %v4314 = vsel %vm2270, %v4239, -inf
        %v4315 = vmax.f32 %v4313, %v4314
        %v4316 = vsel %vm2270, %v4238, -inf
        %v4317 = vsel %vm2270, %v4240, -inf
        %v4318 = vmax.f32 %v4316, %v4317
        %v4319 = vsel %vm2270, %v4241, -inf
        %v4320 = vsel %vm2270, %v4243, -inf
        %v4321 = vmax.f32 %v4319, %v4320
        %v4322 = vsel %vm2270, %v4242, -inf
        %v4323 = vsel %vm2270, %v4244, -inf
        %v4324 = vmax.f32 %v4322, %v4323
        %v4341 = vrot.slane %v4279, 2
        %v4342 = vrot.slane %v4279, 4
        %v4343 = vrot.slane %v4279, 6
        %v4344 = vrot.slane %v4282, 2
        %v4345 = vrot.slane %v4282, 4
        %v4346 = vrot.slane %v4282, 6
        %v4347 = vrot.slane %v4285, 2
        %v4348 = vrot.slane %v4285, 4
        %v4349 = vrot.slane %v4285, 6
        %v4350 = vrot.slane %v4288, 2
        %v4351 = vrot.slane %v4288, 4
        %v4352 = vrot.slane %v4288, 6
        %v4353 = vrot.slane %v4291, 2
        %v4354 = vrot.slane %v4291, 4
        %v4355 = vrot.slane %v4291, 6
        %v4356 = vrot.slane %v4294, 2
        %v4357 = vrot.slane %v4294, 4
        %v4358 = vrot.slane %v4294, 6
        %v4359 = vrot.slane %v4297, 2
        %v4360 = vrot.slane %v4297, 4
        %v4361 = vrot.slane %v4297, 6
        %v4362 = vrot.slane %v4300, 2
        %v4363 = vrot.slane %v4300, 4
        %v4364 = vrot.slane %v4300, 6
        %v4365 = vrot.slane %v4303, 2
        %v4366 = vrot.slane %v4303, 4
        %v4367 = vrot.slane %v4303, 6
        %v4368 = vrot.slane %v4306, 2
        %v4369 = vrot.slane %v4306, 4
        %v4370 = vrot.slane %v4306, 6
        %v4371 = vrot.slane %v4309, 2
        %v4372 = vrot.slane %v4309, 4
        %v4373 = vrot.slane %v4309, 6
        %v4374 = vrot.slane %v4312, 2
        %v4375 = vrot.slane %v4312, 4
        %v4376 = vrot.slane %v4312, 6
        %v4377 = vrot.slane %v4315, 2
        %v4378 = vrot.slane %v4315, 4
        %v4379 = vrot.slane %v4315, 6
        %v4380 = vrot.slane %v4318, 2
        %v4381 = vrot.slane %v4318, 4
        %v4382 = vrot.slane %v4318, 6
        %v4383 = vrot.slane %v4321, 2
        %v4384 = vrot.slane %v4321, 4
        %v4385 = vrot.slane %v4321, 6
        %v4386 = vrot.slane %v4324, 2
        %v4387 = vrot.slane %v4324, 4
        %v4388 = vrot.slane %v4324, 6
        %v4437 = vsel %vm2273, %v4279, -inf
        %v4438 = vrot.slane %v4437, 4
        %v4439 = vmax.f32 %v4437, %v4438
        %v4440 = vrot.slane %v4439, 2
        %v4441 = vmax.f32 %v4439, %v4440
        %v4442 = vrot.slane %v4441, 1
        %v4443 = vmax.f32 %v4441, %v4442
        %v4444 = vsel %vm2273, %v4341, -inf
        %v4445 = vrot.slane %v4444, 4
        %v4446 = vmax.f32 %v4444, %v4445
        %v4447 = vrot.slane %v4446, 2
        %v4448 = vmax.f32 %v4446, %v4447
        %v4449 = vrot.slane %v4448, 1
        %v4450 = vmax.f32 %v4448, %v4449
        %v4451 = vsel %vm2273, %v4342, -inf
        %v4452 = vrot.slane %v4451, 4
        %v4453 = vmax.f32 %v4451, %v4452
        %v4454 = vrot.slane %v4453, 2
        %v4455 = vmax.f32 %v4453, %v4454
        %v4456 = vrot.slane %v4455, 1
        %v4457 = vmax.f32 %v4455, %v4456
        %v4458 = vsel %vm2273, %v4343, -inf
        %v4459 = vrot.slane %v4458, 4
        %v4460 = vmax.f32 %v4458, %v4459
        %v4461 = vrot.slane %v4460, 2
        %v4462 = vmax.f32 %v4460, %v4461
        %v4463 = vrot.slane %v4462, 1
        %v4464 = vmax.f32 %v4462, %v4463
        %v4465 = vsel %vm2273, %v4282, -inf
        %v4466 = vrot.slane %v4465, 4
        %v4467 = vmax.f32 %v4465, %v4466
        %v4468 = vrot.slane %v4467, 2
        %v4469 = vmax.f32 %v4467, %v4468
        %v4470 = vrot.slane %v4469, 1
        %v4471 = vmax.f32 %v4469, %v4470
        %v4472 = vsel %vm2273, %v4344, -inf
        %v4473 = vrot.slane %v4472, 4
        %v4474 = vmax.f32 %v4472, %v4473
        %v4475 = vrot.slane %v4474, 2
        %v4476 = vmax.f32 %v4474, %v4475
        %v4477 = vrot.slane %v4476, 1
        %v4478 = vmax.f32 %v4476, %v4477
        %v4479 = vsel %vm2273, %v4345, -inf
        %v4480 = vrot.slane %v4479, 4
        %v4481 = vmax.f32 %v4479, %v4480
        %v4482 = vrot.slane %v4481, 2
        %v4483 = vmax.f32 %v4481, %v4482
        %v4484 = vrot.slane %v4483, 1
        %v4485 = vmax.f32 %v4483, %v4484
        %v4486 = vsel %vm2273, %v4346, -inf
        %v4487 = vrot.slane %v4486, 4
        %v4488 = vmax.f32 %v4486, %v4487
        %v4489 = vrot.slane %v4488, 2
        %v4490 = vmax.f32 %v4488, %v4489
        %v4491 = vrot.slane %v4490, 1
        %v4492 = vmax.f32 %v4490, %v4491
        %v4493 = vsel %vm2273, %v4285, -inf
        %v4494 = vrot.slane %v4493, 4
        %v4495 = vmax.f32 %v4493, %v4494
        %v4496 = vrot.slane %v4495, 2
        %v4497 = vmax.f32 %v4495, %v4496
        %v4498 = vrot.slane %v4497, 1
        %v4499 = vmax.f32 %v4497, %v4498
        %v4500 = vsel %vm2273, %v4347, -inf
        %v4501 = vrot.slane %v4500, 4
        %v4502 = vmax.f32 %v4500, %v4501
        %v4503 = vrot.slane %v4502, 2
        %v4504 = vmax.f32 %v4502, %v4503
        %v4505 = vrot.slane %v4504, 1
        %v4506 = vmax.f32 %v4504, %v4505
        %v4507 = vsel %vm2273, %v4348, -inf
        %v4508 = vrot.slane %v4507, 4
        %v4509 = vmax.f32 %v4507, %v4508
        %v4510 = vrot.slane %v4509, 2
        %v4511 = vmax.f32 %v4509, %v4510
        %v4512 = vrot.slane %v4511, 1
        %v4513 = vmax.f32 %v4511, %v4512
        %v4514 = vsel %vm2273, %v4349, -inf
        %v4515 = vrot.slane %v4514, 4
        %v4516 = vmax.f32 %v4514, %v4515
        %v4517 = vrot.slane %v4516, 2
        %v4518 = vmax.f32 %v4516, %v4517
        %v4519 = vrot.slane %v4518, 1
        %v4520 = vmax.f32 %v4518, %v4519
        %v4521 = vsel %vm2273, %v4288, -inf
        %v4522 = vrot.slane %v4521, 4
        %v4523 = vmax.f32 %v4521, %v4522
        %v4524 = vrot.slane %v4523, 2
        %v4525 = vmax.f32 %v4523, %v4524
        %v4526 = vrot.slane %v4525, 1
        %v4527 = vmax.f32 %v4525, %v4526
        %v4528 = vsel %vm2273, %v4350, -inf
        %v4529 = vrot.slane %v4528, 4
        %v4530 = vmax.f32 %v4528, %v4529
        %v4531 = vrot.slane %v4530, 2
        %v4532 = vmax.f32 %v4530, %v4531
        %v4533 = vrot.slane %v4532, 1
        %v4534 = vmax.f32 %v4532, %v4533
        %v4535 = vsel %vm2273, %v4351, -inf
        %v4536 = vrot.slane %v4535, 4
        %v4537 = vmax.f32 %v4535, %v4536
        %v4538 = vrot.slane %v4537, 2
        %v4539 = vmax.f32 %v4537, %v4538
        %v4540 = vrot.slane %v4539, 1
        %v4541 = vmax.f32 %v4539, %v4540
        %v4542 = vsel %vm2273, %v4352, -inf
        %v4543 = vrot.slane %v4542, 4
        %v4544 = vmax.f32 %v4542, %v4543
        %v4545 = vrot.slane %v4544, 2
        %v4546 = vmax.f32 %v4544, %v4545
        %v4547 = vrot.slane %v4546, 1
        %v4548 = vmax.f32 %v4546, %v4547
        %v4549 = vsel %vm2273, %v4291, -inf
        %v4550 = vrot.slane %v4549, 4
        %v4551 = vmax.f32 %v4549, %v4550
        %v4552 = vrot.slane %v4551, 2
        %v4553 = vmax.f32 %v4551, %v4552
        %v4554 = vrot.slane %v4553, 1
        %v4555 = vmax.f32 %v4553, %v4554
        %v4556 = vsel %vm2273, %v4353, -inf
        %v4557 = vrot.slane %v4556, 4
        %v4558 = vmax.f32 %v4556, %v4557
        %v4559 = vrot.slane %v4558, 2
        %v4560 = vmax.f32 %v4558, %v4559
        %v4561 = vrot.slane %v4560, 1
        %v4562 = vmax.f32 %v4560, %v4561
        %v4563 = vsel %vm2273, %v4354, -inf
        %v4564 = vrot.slane %v4563, 4
        %v4565 = vmax.f32 %v4563, %v4564
        %v4566 = vrot.slane %v4565, 2
        %v4567 = vmax.f32 %v4565, %v4566
        %v4568 = vrot.slane %v4567, 1
        %v4569 = vmax.f32 %v4567, %v4568
        %v4570 = vsel %vm2273, %v4355, -inf
        %v4571 = vrot.slane %v4570, 4
        %v4572 = vmax.f32 %v4570, %v4571
        %v4573 = vrot.slane %v4572, 2
        %v4574 = vmax.f32 %v4572, %v4573
        %v4575 = vrot.slane %v4574, 1
        %v4576 = vmax.f32 %v4574, %v4575
        %v4577 = vsel %vm2273, %v4294, -inf
        %v4578 = vrot.slane %v4577, 4
        %v4579 = vmax.f32 %v4577, %v4578
        %v4580 = vrot.slane %v4579, 2
        %v4581 = vmax.f32 %v4579, %v4580
        %v4582 = vrot.slane %v4581, 1
        %v4583 = vmax.f32 %v4581, %v4582
        %v4584 = vsel %vm2273, %v4356, -inf
        %v4585 = vrot.slane %v4584, 4
        %v4586 = vmax.f32 %v4584, %v4585
        %v4587 = vrot.slane %v4586, 2
        %v4588 = vmax.f32 %v4586, %v4587
        %v4589 = vrot.slane %v4588, 1
        %v4590 = vmax.f32 %v4588, %v4589
        %v4591 = vsel %vm2273, %v4357, -inf
        %v4592 = vrot.slane %v4591, 4
        %v4593 = vmax.f32 %v4591, %v4592
        %v4594 = vrot.slane %v4593, 2
        %v4595 = vmax.f32 %v4593, %v4594
        %v4596 = vrot.slane %v4595, 1
        %v4597 = vmax.f32 %v4595, %v4596
        %v4598 = vsel %vm2273, %v4358, -inf
        %v4599 = vrot.slane %v4598, 4
        %v4600 = vmax.f32 %v4598, %v4599
        %v4601 = vrot.slane %v4600, 2
        %v4602 = vmax.f32 %v4600, %v4601
        %v4603 = vrot.slane %v4602, 1
        %v4604 = vmax.f32 %v4602, %v4603
        %v4605 = vsel %vm2273, %v4297, -inf
        %v4606 = vrot.slane %v4605, 4
        %v4607 = vmax.f32 %v4605, %v4606
        %v4608 = vrot.slane %v4607, 2
        %v4609 = vmax.f32 %v4607, %v4608
        %v4610 = vrot.slane %v4609, 1
        %v4611 = vmax.f32 %v4609, %v4610
        %v4612 = vsel %vm2273, %v4359, -inf
        %v4613 = vrot.slane %v4612, 4
        %v4614 = vmax.f32 %v4612, %v4613
        %v4615 = vrot.slane %v4614, 2
        %v4616 = vmax.f32 %v4614, %v4615
        %v4617 = vrot.slane %v4616, 1
        %v4618 = vmax.f32 %v4616, %v4617
        %v4619 = vsel %vm2273, %v4360, -inf
        %v4620 = vrot.slane %v4619, 4
        %v4621 = vmax.f32 %v4619, %v4620
        %v4622 = vrot.slane %v4621, 2
        %v4623 = vmax.f32 %v4621, %v4622
        %v4624 = vrot.slane %v4623, 1
        %v4625 = vmax.f32 %v4623, %v4624
        %v4626 = vsel %vm2273, %v4361, -inf
        %v4627 = vrot.slane %v4626, 4
        %v4628 = vmax.f32 %v4626, %v4627
        %v4629 = vrot.slane %v4628, 2
        %v4630 = vmax.f32 %v4628, %v4629
        %v4631 = vrot.slane %v4630, 1
        %v4632 = vmax.f32 %v4630, %v4631
        %v4633 = vsel %vm2273, %v4300, -inf
        %v4634 = vrot.slane %v4633, 4
        %v4635 = vmax.f32 %v4633, %v4634
        %v4636 = vrot.slane %v4635, 2
        %v4637 = vmax.f32 %v4635, %v4636
        %v4638 = vrot.slane %v4637, 1
        %v4639 = vmax.f32 %v4637, %v4638
        %v4640 = vsel %vm2273, %v4362, -inf
        %v4641 = vrot.slane %v4640, 4
        %v4642 = vmax.f32 %v4640, %v4641
        %v4643 = vrot.slane %v4642, 2
        %v4644 = vmax.f32 %v4642, %v4643
        %v4645 = vrot.slane %v4644, 1
        %v4646 = vmax.f32 %v4644, %v4645
        %v4647 = vsel %vm2273, %v4363, -inf
        %v4648 = vrot.slane %v4647, 4
        %v4649 = vmax.f32 %v4647, %v4648
        %v4650 = vrot.slane %v4649, 2
        %v4651 = vmax.f32 %v4649, %v4650
        %v4652 = vrot.slane %v4651, 1
        %v4653 = vmax.f32 %v4651, %v4652
        %v4654 = vsel %vm2273, %v4364, -inf
        %v4655 = vrot.slane %v4654, 4
        %v4656 = vmax.f32 %v4654, %v4655
        %v4657 = vrot.slane %v4656, 2
        %v4658 = vmax.f32 %v4656, %v4657
        %v4659 = vrot.slane %v4658, 1
        %v4660 = vmax.f32 %v4658, %v4659
        %v4661 = vsel %vm2273, %v4303, -inf
        %v4662 = vrot.slane %v4661, 4
        %v4663 = vmax.f32 %v4661, %v4662
        %v4664 = vrot.slane %v4663, 2
        %v4665 = vmax.f32 %v4663, %v4664
        %v4666 = vrot.slane %v4665, 1
        %v4667 = vmax.f32 %v4665, %v4666
        %v4668 = vsel %vm2273, %v4365, -inf
        %v4669 = vrot.slane %v4668, 4
        %v4670 = vmax.f32 %v4668, %v4669
        %v4671 = vrot.slane %v4670, 2
        %v4672 = vmax.f32 %v4670, %v4671
        %v4673 = vrot.slane %v4672, 1
        %v4674 = vmax.f32 %v4672, %v4673
        %v4675 = vsel %vm2273, %v4366, -inf
        %v4676 = vrot.slane %v4675, 4
        %v4677 = vmax.f32 %v4675, %v4676
        %v4678 = vrot.slane %v4677, 2
        %v4679 = vmax.f32 %v4677, %v4678
        %v4680 = vrot.slane %v4679, 1
        %v4681 = vmax.f32 %v4679, %v4680
        %v4682 = vsel %vm2273, %v4367, -inf
        %v4683 = vrot.slane %v4682, 4
        %v4684 = vmax.f32 %v4682, %v4683
        %v4685 = vrot.slane %v4684, 2
        %v4686 = vmax.f32 %v4684, %v4685
        %v4687 = vrot.slane %v4686, 1
        %v4688 = vmax.f32 %v4686, %v4687
        %v4689 = vsel %vm2273, %v4306, -inf
        %v4690 = vrot.slane %v4689, 4
        %v4691 = vmax.f32 %v4689, %v4690
        %v4692 = vrot.slane %v4691, 2
        %v4693 = vmax.f32 %v4691, %v4692
        %v4694 = vrot.slane %v4693, 1
        %v4695 = vmax.f32 %v4693, %v4694
        %v4696 = vsel %vm2273, %v4368, -inf
        %v4697 = vrot.slane %v4696, 4
        %v4698 = vmax.f32 %v4696, %v4697
        %v4699 = vrot.slane %v4698, 2
        %v4700 = vmax.f32 %v4698, %v4699
        %v4701 = vrot.slane %v4700, 1
        %v4702 = vmax.f32 %v4700, %v4701
        %v4703 = vsel %vm2273, %v4369, -inf
        %v4704 = vrot.slane %v4703, 4
        %v4705 = vmax.f32 %v4703, %v4704
        %v4706 = vrot.slane %v4705, 2
        %v4707 = vmax.f32 %v4705, %v4706
        %v4708 = vrot.slane %v4707, 1
        %v4709 = vmax.f32 %v4707, %v4708
        %v4710 = vsel %vm2273, %v4370, -inf
        %v4711 = vrot.slane %v4710, 4
        %v4712 = vmax.f32 %v4710, %v4711
        %v4713 = vrot.slane %v4712, 2
        %v4714 = vmax.f32 %v4712, %v4713
        %v4715 = vrot.slane %v4714, 1
        %v4716 = vmax.f32 %v4714, %v4715
        %v4717 = vsel %vm2273, %v4309, -inf
        %v4718 = vrot.slane %v4717, 4
        %v4719 = vmax.f32 %v4717, %v4718
        %v4720 = vrot.slane %v4719, 2
        %v4721 = vmax.f32 %v4719, %v4720
        %v4722 = vrot.slane %v4721, 1
        %v4723 = vmax.f32 %v4721, %v4722
        %v4724 = vsel %vm2273, %v4371, -inf
        %v4725 = vrot.slane %v4724, 4
        %v4726 = vmax.f32 %v4724, %v4725
        %v4727 = vrot.slane %v4726, 2
        %v4728 = vmax.f32 %v4726, %v4727
        %v4729 = vrot.slane %v4728, 1
        %v4730 = vmax.f32 %v4728, %v4729
        %v4731 = vsel %vm2273, %v4372, -inf
        %v4732 = vrot.slane %v4731, 4
        %v4733 = vmax.f32 %v4731, %v4732
        %v4734 = vrot.slane %v4733, 2
        %v4735 = vmax.f32 %v4733, %v4734
        %v4736 = vrot.slane %v4735, 1
        %v4737 = vmax.f32 %v4735, %v4736
        %v4738 = vsel %vm2273, %v4373, -inf
        %v4739 = vrot.slane %v4738, 4
        %v4740 = vmax.f32 %v4738, %v4739
        %v4741 = vrot.slane %v4740, 2
        %v4742 = vmax.f32 %v4740, %v4741
        %v4743 = vrot.slane %v4742, 1
        %v4744 = vmax.f32 %v4742, %v4743
        %v4745 = vsel %vm2273, %v4312, -inf
        %v4746 = vrot.slane %v4745, 4
        %v4747 = vmax.f32 %v4745, %v4746
        %v4748 = vrot.slane %v4747, 2
        %v4749 = vmax.f32 %v4747, %v4748
        %v4750 = vrot.slane %v4749, 1
        %v4751 = vmax.f32 %v4749, %v4750
        %v4752 = vsel %vm2273, %v4374, -inf
        %v4753 = vrot.slane %v4752, 4
        %v4754 = vmax.f32 %v4752, %v4753
        %v4755 = vrot.slane %v4754, 2
        %v4756 = vmax.f32 %v4754, %v4755
        %v4757 = vrot.slane %v4756, 1
        %v4758 = vmax.f32 %v4756, %v4757
        %v4759 = vsel %vm2273, %v4375, -inf
        %v4760 = vrot.slane %v4759, 4
        %v4761 = vmax.f32 %v4759, %v4760
        %v4762 = vrot.slane %v4761, 2
        %v4763 = vmax.f32 %v4761, %v4762
        %v4764 = vrot.slane %v4763, 1
        %v4765 = vmax.f32 %v4763, %v4764
        %v4766 = vsel %vm2273, %v4376, -inf
        %v4767 = vrot.slane %v4766, 4
        %v4768 = vmax.f32 %v4766, %v4767
        %v4769 = vrot.slane %v4768, 2
        %v4770 = vmax.f32 %v4768, %v4769
        %v4771 = vrot.slane %v4770, 1
        %v4772 = vmax.f32 %v4770, %v4771
        %v4773 = vsel %vm2273, %v4315, -inf
        %v4774 = vrot.slane %v4773, 4
        %v4775 = vmax.f32 %v4773, %v4774
        %v4776 = vrot.slane %v4775, 2
        %v4777 = vmax.f32 %v4775, %v4776
        %v4778 = vrot.slane %v4777, 1
        %v4779 = vmax.f32 %v4777, %v4778
        %v4780 = vsel %vm2273, %v4377, -inf
        %v4781 = vrot.slane %v4780, 4
        %v4782 = vmax.f32 %v4780, %v4781
        %v4783 = vrot.slane %v4782, 2
        %v4784 = vmax.f32 %v4782, %v4783
        %v4785 = vrot.slane %v4784, 1
        %v4786 = vmax.f32 %v4784, %v4785
        %v4787 = vsel %vm2273, %v4378, -inf
        %v4788 = vrot.slane %v4787, 4
        %v4789 = vmax.f32 %v4787, %v4788
        %v4790 = vrot.slane %v4789, 2
        %v4791 = vmax.f32 %v4789, %v4790
        %v4792 = vrot.slane %v4791, 1
        %v4793 = vmax.f32 %v4791, %v4792
        %v4794 = vsel %vm2273, %v4379, -inf
        %v4795 = vrot.slane %v4794, 4
        %v4796 = vmax.f32 %v4794, %v4795
        %v4797 = vrot.slane %v4796, 2
        %v4798 = vmax.f32 %v4796, %v4797
        %v4799 = vrot.slane %v4798, 1
        %v4800 = vmax.f32 %v4798, %v4799
        %v4801 = vsel %vm2273, %v4318, -inf
        %v4802 = vrot.slane %v4801, 4
        %v4803 = vmax.f32 %v4801, %v4802
        %v4804 = vrot.slane %v4803, 2
        %v4805 = vmax.f32 %v4803, %v4804
        %v4806 = vrot.slane %v4805, 1
        %v4807 = vmax.f32 %v4805, %v4806
        %v4808 = vsel %vm2273, %v4380, -inf
        %v4809 = vrot.slane %v4808, 4
        %v4810 = vmax.f32 %v4808, %v4809
        %v4811 = vrot.slane %v4810, 2
        %v4812 = vmax.f32 %v4810, %v4811
        %v4813 = vrot.slane %v4812, 1
        %v4814 = vmax.f32 %v4812, %v4813
        %v4815 = vsel %vm2273, %v4381, -inf
        %v4816 = vrot.slane %v4815, 4
        %v4817 = vmax.f32 %v4815, %v4816
        %v4818 = vrot.slane %v4817, 2
        %v4819 = vmax.f32 %v4817, %v4818
        %v4820 = vrot.slane %v4819, 1
        %v4821 = vmax.f32 %v4819, %v4820
        %v4822 = vsel %vm2273, %v4382, -inf
        %v4823 = vrot.slane %v4822, 4
        %v4824 = vmax.f32 %v4822, %v4823
        %v4825 = vrot.slane %v4824, 2
        %v4826 = vmax.f32 %v4824, %v4825
        %v4827 = vrot.slane %v4826, 1
        %v4828 = vmax.f32 %v4826, %v4827
        %v4829 = vsel %vm2273, %v4321, -inf
        %v4830 = vrot.slane %v4829, 4
        %v4831 = vmax.f32 %v4829, %v4830
        %v4832 = vrot.slane %v4831, 2
        %v4833 = vmax.f32 %v4831, %v4832
        %v4834 = vrot.slane %v4833, 1
        %v4835 = vmax.f32 %v4833, %v4834
        %v4836 = vsel %vm2273, %v4383, -inf
        %v4837 = vrot.slane %v4836, 4
        %v4838 = vmax.f32 %v4836, %v4837
        %v4839 = vrot.slane %v4838, 2
        %v4840 = vmax.f32 %v4838, %v4839
        %v4841 = vrot.slane %v4840, 1
        %v4842 = vmax.f32 %v4840, %v4841
        %v4843 = vsel %vm2273, %v4384, -inf
        %v4844 = vrot.slane %v4843, 4
        %v4845 = vmax.f32 %v4843, %v4844
        %v4846 = vrot.slane %v4845, 2
        %v4847 = vmax.f32 %v4845, %v4846
        %v4848 = vrot.slane %v4847, 1
        %v4849 = vmax.f32 %v4847, %v4848
        %v4850 = vsel %vm2273, %v4385, -inf
        %v4851 = vrot.slane %v4850, 4
        %v4852 = vmax.f32 %v4850, %v4851
        %v4853 = vrot.slane %v4852, 2
        %v4854 = vmax.f32 %v4852, %v4853
        %v4855 = vrot.slane %v4854, 1
        %v4856 = vmax.f32 %v4854, %v4855
        %v4857 = vsel %vm2273, %v4324, -inf
        %v4858 = vrot.slane %v4857, 4
        %v4859 = vmax.f32 %v4857, %v4858
        %v4860 = vrot.slane %v4859, 2
        %v4861 = vmax.f32 %v4859, %v4860
        %v4862 = vrot.slane %v4861, 1
        %v4863 = vmax.f32 %v4861, %v4862
        %v4864 = vsel %vm2273, %v4386, -inf
        %v4865 = vrot.slane %v4864, 4
        %v4866 = vmax.f32 %v4864, %v4865
        %v4867 = vrot.slane %v4866, 2
        %v4868 = vmax.f32 %v4866, %v4867
        %v4869 = vrot.slane %v4868, 1
        %v4870 = vmax.f32 %v4868, %v4869
        %v4871 = vsel %vm2273, %v4387, -inf
        %v4872 = vrot.slane %v4871, 4
        %v4873 = vmax.f32 %v4871, %v4872
        %v4874 = vrot.slane %v4873, 2
        %v4875 = vmax.f32 %v4873, %v4874
        %v4876 = vrot.slane %v4875, 1
        %v4877 = vmax.f32 %v4875, %v4876
        %v4878 = vsel %vm2273, %v4388, -inf
        %v4879 = vrot.slane %v4878, 4
        %v4880 = vmax.f32 %v4878, %v4879
        %v4881 = vrot.slane %v4880, 2
        %v4882 = vmax.f32 %v4880, %v4881
        %v4883 = vrot.slane %v4882, 1
        %v4884 = vmax.f32 %v4882, %v4883
        %vm4949 = vcmask 1041409
        %v4950 = vsel %vm4949, %v4450, %v4443
        %vm4951 = vcmask 1042434
        %v4952 = vsel %vm4951, %v4457, %v4950
        %vm4953 = vcmask 1043459
        %v4954 = vsel %vm4953, %v4464, %v4952
        %vm4955 = vcmask 1044484
        %v4956 = vsel %vm4955, %v4471, %v4954
        %vm4957 = vcmask 1045509
        %v4958 = vsel %vm4957, %v4478, %v4956
        %vm4959 = vcmask 1046534
        %v4960 = vsel %vm4959, %v4485, %v4958
        %vm4961 = vcmask 1047559
        %v4962 = vsel %vm4961, %v4492, %v4960
        %v4963 = vsel %vm4949, %v4506, %v4499
        %v4964 = vsel %vm4951, %v4513, %v4963
        %v4965 = vsel %vm4953, %v4520, %v4964
        %v4966 = vsel %vm4955, %v4527, %v4965
        %v4967 = vsel %vm4957, %v4534, %v4966
        %v4968 = vsel %vm4959, %v4541, %v4967
        %v4969 = vsel %vm4961, %v4548, %v4968
        %v4970 = vsel %vm4949, %v4562, %v4555
        %v4971 = vsel %vm4951, %v4569, %v4970
        %v4972 = vsel %vm4953, %v4576, %v4971
        %v4973 = vsel %vm4955, %v4583, %v4972
        %v4974 = vsel %vm4957, %v4590, %v4973
        %v4975 = vsel %vm4959, %v4597, %v4974
        %v4976 = vsel %vm4961, %v4604, %v4975
        %v4977 = vsel %vm4949, %v4618, %v4611
        %v4978 = vsel %vm4951, %v4625, %v4977
        %v4979 = vsel %vm4953, %v4632, %v4978
        %v4980 = vsel %vm4955, %v4639, %v4979
        %v4981 = vsel %vm4957, %v4646, %v4980
        %v4982 = vsel %vm4959, %v4653, %v4981
        %v4983 = vsel %vm4961, %v4660, %v4982
        %v4984 = vsel %vm4949, %v4674, %v4667
        %v4985 = vsel %vm4951, %v4681, %v4984
        %v4986 = vsel %vm4953, %v4688, %v4985
        %v4987 = vsel %vm4955, %v4695, %v4986
        %v4988 = vsel %vm4957, %v4702, %v4987
        %v4989 = vsel %vm4959, %v4709, %v4988
        %v4990 = vsel %vm4961, %v4716, %v4989
        %v4991 = vsel %vm4949, %v4730, %v4723
        %v4992 = vsel %vm4951, %v4737, %v4991
        %v4993 = vsel %vm4953, %v4744, %v4992
        %v4994 = vsel %vm4955, %v4751, %v4993
        %v4995 = vsel %vm4957, %v4758, %v4994
        %v4996 = vsel %vm4959, %v4765, %v4995
        %v4997 = vsel %vm4961, %v4772, %v4996
        %v4998 = vsel %vm4949, %v4786, %v4779
        %v4999 = vsel %vm4951, %v4793, %v4998
        %v5000 = vsel %vm4953, %v4800, %v4999
        %v5001 = vsel %vm4955, %v4807, %v5000
        %v5002 = vsel %vm4957, %v4814, %v5001
        %v5003 = vsel %vm4959, %v4821, %v5002
        %v5004 = vsel %vm4961, %v4828, %v5003
        %v5005 = vsel %vm4949, %v4842, %v4835
        %v5006 = vsel %vm4951, %v4849, %v5005
        %v5007 = vsel %vm4953, %v4856, %v5006
        %v5008 = vsel %vm4955, %v4863, %v5007
        %v5009 = vsel %vm4957, %v4870, %v5008
        %v5010 = vsel %vm4959, %v4877, %v5009
        %v5011 = vsel %vm4961, %v4884, %v5010
        %5020 = vst.msk [vmem:[%s252] sm:$0xff] %vm2270, %v4962
        %5021 = vst.msk [vmem:[%s252 + $0x8] sm:$0xff] %vm2270, %v4969
        %5022 = vst.msk [vmem:[%s252 + $0x10] sm:$0xff] %vm2270, %v4976
        %5023 = vst.msk [vmem:[%s252 + $0x18] sm:$0xff] %vm2270, %v4983
        %5024 = vst.msk [vmem:[%s252 + $0x20] sm:$0xff] %vm2270, %v4990
        %5025 = vst.msk [vmem:[%s252 + $0x28] sm:$0xff] %vm2270, %v4997
        %5026 = vst.msk [vmem:[%s252 + $0x30] sm:$0xff] %vm2270, %v5004
        %5027 = vst.msk [vmem:[%s252 + $0x38] sm:$0xff] %vm2270, %v5011
        %p5028 = scmp.lt.s32.totalorder %s21, 1
        %s5029 = scalar_select %p5028, %s21, 1
        %s5030 = smul.addr %s5029, 32
        %s5031 = smul.addr %s5030, 8
        %s5032 = scalar_lea.vmem %s5, %s5031
        %s5033 = sand.u32 %s165, 1
        %s5034 = scalar_lea.sflag [#allocation7], %s5033
        %s5035 = sand.u32 %s165, 1
        %s5036 = smul.addr %s5035, 64
        %s5037 = scalar_lea.vmem [#allocation6], %s5036
        // Predicated region
        $region41: #{tpu_custom_call.1} parent=39 // pred_check
          %p5038 = pneg %p149
        $region42: #{tpu_custom_call.1} parent=39 // pred_check_branch
          %5040 = sbr.rel (%p5038) target = $region44
        $region43: #{tpu_custom_call.1} parent=39 // pred_region
          _
        $region44: #{tpu_custom_call.1} parent=39 // pred_fallthru
          _
        // Predicated region
        $region45: #{tpu_custom_call.1} parent=39 // pred_check
          %p5041 = pneg %p175
        $region46: #{tpu_custom_call.1} parent=39 // pred_check_branch
          %5043 = sbr.rel (%p5041) target = $region48
        $region47: #{tpu_custom_call.1} parent=39 // pred_region
          %5045 = vsyncadd %s5034, 0
          %s5046 = smul.addr %s21, 8
          %s5047 = smul.addr %s5046, 8
          %s5048 = scalar_lea.hbm %s6, %s5047
          %s5049 = sshll.u32 %s5037, 4
          %s5050 = int_to_ptr.vmem [resolvable:$true] %s5049
          %s5051 = sshll.u32 %s5048, 4
          %s5052 = int_to_ptr.hbm [resolvable:$true] %s5051
          %5057 = dma.vmem_to_hbm [thread:$0]  %s5050, 1024, %s5052, %s5034, 128, 128, 8
        $region48: #{tpu_custom_call.1} parent=39 // pred_fallthru
          _
      $region40: #{tpu_custom_call.1} parent=5 // pred_fallthru
        _
      %p5058 = scmp.le.s32.totalorder 2, %s16
      // Predicated region
      $region49: #{tpu_custom_call.1} parent=5 // pred_check
        %p5059 = pneg %p5058
      $region50: #{tpu_custom_call.1} parent=5 // pred_check_branch
        %5061 = sbr.rel (%p5059) target = $region52
      $region51: #{tpu_custom_call.1} parent=5 // pred_region
        %s5062 = ssub.s32 %s16, 2
        // Predicated region
        $region53: #{tpu_custom_call.1} parent=51 // pred_check
          %p5063 = pneg %p155
        $region54: #{tpu_custom_call.1} parent=51 // pred_check_branch
          %5065 = sbr.rel (%p5063) target = $region56
        $region55: #{tpu_custom_call.1} parent=51 // pred_region
          %p5066 = scmp.lt.s32.totalorder %s22, 1
          %s5067 = scalar_select %p5066, %s22, 1
          %s5068 = smul.addr %s5067, 32
          %s5069 = smul.addr %s5068, 8
          %s5070 = scalar_lea.vmem %s5, %s5069
        $region56: #{tpu_custom_call.1} parent=51 // pred_fallthru
          _
        // Predicated region
        $region57: #{tpu_custom_call.1} parent=51 // pred_check
          %p5071 = pneg %p181
        $region58: #{tpu_custom_call.1} parent=51 // pred_check_branch
          %5073 = sbr.rel (%p5071) target = $region60
        $region59: #{tpu_custom_call.1} parent=51 // pred_region
          %s5074 = sand.u32 %s166, 1
          %s5075 = scalar_lea.sflag [#allocation7], %s5074
          %s5076 = sand.u32 %s166, 1
          %s5077 = smul.addr %s5076, 64
          %s5078 = scalar_lea.vmem [#allocation6], %s5077
          %5080 = dma.done %s5075, 1024
        $region60: #{tpu_custom_call.1} parent=51 // pred_fallthru
          _
      $region52: #{tpu_custom_call.1} parent=5 // pred_fallthru
        _
    $region6: #{tpu_custom_call.1} parent=1 // loop_footer
      %s20 = sadd.s32 1, %s16
    $region7: #{tpu_custom_call.1} parent=1 // loop_footer_branch
      %15 = sbr.rel target = $region3
    $region8: #{tpu_custom_call.1} parent=1 // loop_exit
      _
    %5081 = vsyncpa [#allocation7], 1
    %s5082 = scalar_lea.sflag [#allocation7], 1
    %5083 = vsyncpa %s5082, 1

</llo_original>
